<compile_context>
chip_gen: v7x
topology: tpu7x:2x2x1
jax: 0.10.0
libtpu: 0.0.40
codegen_flags: <defaults>
</compile_context>

<pallas_src>
import math
import functools
import numpy as np
import jax
import jax.numpy as jnp
from jax.experimental import pallas as pl
from jax.experimental.pallas import tpu as pltpu


def _equal_conv2d_kernel(x_ref, w_ref, b_ref, o_ref, acc_ref, *, K, Hout, Wout):
    """One batch element: 'valid' conv over the pre-padded NHWC tile.

    x_ref  : (1, Hp, Wp, Cin)      bf16, spatially pre-padded input
    w_ref  : (K*K, Cin, Opad)      bf16, equalized-lr scale already folded in
    b_ref  : (1, Opad)             f32 bias (zero-padded past Cout)
    o_ref  : (1, Hout*Wout, Opad)  f32 output (lane-dense, Opad multiple of 128)
    acc_ref: (Hout*Wout, Opad)     f32 VMEM scratch accumulator
    """
    C = x_ref.shape[-1]
    x = x_ref[0]                                              # (Hp, Wp, Cin) bf16
    for kh in range(K):
        for kw in range(K):
            tap = kh * K + kw
            patch = x[kh:kh + Hout, kw:kw + Wout, :].reshape(Hout * Wout, C)
            contrib = jnp.dot(patch, w_ref[tap],              # MXU, f32 accumulate
                              preferred_element_type=jnp.float32)
            if tap == 0:
                acc_ref[...] = contrib
            else:
                acc_ref[...] += contrib
    o_ref[0] = (acc_ref[...] + b_ref[...]).astype(o_ref.dtype)


def equal_conv2d_forward(x_nchw, weight, bias=None, *, stride=1, padding=0):
    """EqualConv2d forward.  x: (B, Cin, H, W) NCHW, weight: (O, Cin, K, K)."""
    # TODO(synk): stride > 1 is not implemented in the Pallas kernel
    # (module default is stride=1); only the stride=1 path is translated.
    assert stride == 1, "Pallas EqualConv2d kernel implements stride=1 only"

    B, Cin, H, W = x_nchw.shape
    O, Cin_w, K, _ = weight.shape
    assert Cin_w == Cin
    scale = 1.0 / math.sqrt(Cin * K * K)
    Hout = H + 2 * padding - K + 1
    Wout = W + 2 * padding - K + 1
    Opad = ((O + 127) // 128) * 128          # lane-dense output channels
    Opad = max(Opad, 128)

    # ---- glue: layout conversion, padding, grid-invariant parameter folding ----
    x = jnp.transpose(x_nchw, (0, 2, 3, 1)).astype(jnp.bfloat16)          # NHWC bf16
    x = jnp.pad(x, ((0, 0), (padding, padding), (padding, padding), (0, 0)))
    Hp, Wp = H + 2 * padding, W + 2 * padding

    w = weight.astype(jnp.float32) * scale                                # fold scale once
    w = jnp.transpose(w, (2, 3, 1, 0)).reshape(K * K, Cin, O)             # (K*K, Cin, O)
    w = jnp.pad(w, ((0, 0), (0, 0), (0, Opad - O))).astype(jnp.bfloat16)

    if bias is None:
        b = jnp.zeros((1, Opad), jnp.float32)
    else:
        b = jnp.pad(bias.astype(jnp.float32).reshape(1, O),
                    ((0, 0), (0, Opad - O)))

    kernel = functools.partial(_equal_conv2d_kernel, K=K, Hout=Hout, Wout=Wout)

    out_flat = pl.pallas_call(
        kernel,
        out_shape=jax.ShapeDtypeStruct((B, Hout * Wout, Opad), jnp.float32),
        grid=(B,),
        in_specs=[
            pl.BlockSpec((1, Hp, Wp, Cin), lambda i: (i, 0, 0, 0)),   # padded input
            pl.BlockSpec((K * K, Cin, Opad), lambda i: (0, 0, 0)),    # scaled weight
            pl.BlockSpec((1, Opad), lambda i: (0, 0)),                # bias
        ],
        out_specs=pl.BlockSpec((1, Hout * Wout, Opad), lambda i: (i, 0, 0)),
        scratch_shapes=[pltpu.VMEM((Hout * Wout, Opad), jnp.float32)],
        compiler_params=pltpu.CompilerParams(
            dimension_semantics=("parallel",)),
    )(x, w, b)

    out = out_flat[:, :, :O].reshape(B, Hout, Wout, O)
    return jnp.transpose(out, (0, 3, 1, 2))                              # back to NCHW


def reference_forward(x, weight, bias, *, stride=1, padding=0):
    """Pure-JAX f32 reference matching the PyTorch EqualConv2d forward."""
    Cin = x.shape[1]
    O, _, K, _ = weight.shape
    scale = 1.0 / math.sqrt(Cin * K * K)
    out = jax.lax.conv_general_dilated(
        x.astype(jnp.float32),
        (weight * scale).astype(jnp.float32),
        window_strides=(stride, stride),
        padding=[(padding, padding), (padding, padding)],
        dimension_numbers=("NCHW", "OIHW", "NCHW"))
    if bias is not None:
        out = out + bias.reshape(1, O, 1, 1)
    return out


if __name__ == "__main__":
    # Small shapes consistent with the module: B=2, Cin=4, Cout=8, K=3.
    B, Cin, Cout, K = 2, 4, 8, 3

    key = jax.random.PRNGKey(0)
    k1, k2, k3 = jax.random.split(key, 3)

    # EqualConv2d.weight ~ randn(out, in, k, k); bias is zeros(out) in __init__
    # (use small nonzero values here to exercise the bias path).
    weight = jax.random.normal(k1, (Cout, Cin, K, K), jnp.float32)
    bias = 0.1 * jax.random.normal(k2, (Cout,), jnp.float32)

    configs = [
        {"hw": (16, 16), "padding": 1},   # 'same'-style conv: 16x16 -> 16x16
        {"hw": (18, 18), "padding": 0},   # module-default padding=0: 18x18 -> 16x16
    ]

    for idx, cfg in enumerate(configs):
        H, W = cfg["hw"]
        pad = cfg["padding"]
        x = jax.random.normal(jax.random.fold_in(k3, idx),
                              (B, Cin, H, W), jnp.float32)         # NCHW like PyTorch

        out = jax.block_until_ready(
            equal_conv2d_forward(x, weight, bias, stride=1, padding=pad))
        ref = jax.block_until_ready(
            reference_forward(x, weight, bias, stride=1, padding=pad))

        assert out.shape == ref.shape, (out.shape, ref.shape)
        # bf16 MXU inputs with f32 accumulation -> slightly relaxed tolerance.
        max_err = float(np.max(np.abs(np.asarray(out) - np.asarray(ref))))
        assert np.allclose(np.asarray(out), np.asarray(ref),
                           rtol=2e-2, atol=2e-2), max_err

    print("KERNEL_OK")
</pallas_src>

<mosaic_0001>
module attributes {stable_mosaic.version = 11 : i64} {
  func.func @_equal_conv2d_kernel(%arg0: i32, %arg1: memref<1x18x18x4xbf16, #tpu.memory_space<vmem>>, %arg2: memref<9x4x128xbf16, #tpu.memory_space<vmem>>, %arg3: memref<1x128xf32, #tpu.memory_space<vmem>>, %arg4: memref<1x256x128xf32, #tpu.memory_space<vmem>>, %arg5: memref<256x128xf32, #tpu.memory_space<vmem>>) attributes {dimension_semantics = [#tpu.dimension_semantics<parallel>], iteration_bounds = array<i64: 2>, scalar_prefetch = 0 : i64, scratch_operands = 1 : i64, tpu.core_type = #tpu.core_type<tc>, window_params = [{transform_indices = @transform_0, window_bounds = array<i64: 1, 18, 18, 4>}, {pipeline_mode = #tpu.pipeline_mode<synchronous>, transform_indices = @transform_1, window_bounds = array<i64: 9, 4, 128>}, {pipeline_mode = #tpu.pipeline_mode<synchronous>, transform_indices = @transform_2, window_bounds = array<i64: 1, 128>}, {transform_indices = @transform_3, window_bounds = array<i64: 1, 256, 128>}]} {
    %c0 = arith.constant 0 : index
    %c0_0 = arith.constant 0 : index
    %c0_1 = arith.constant 0 : index
    %c0_2 = arith.constant 0 : index
    %0 = vector.load %arg1[%c0, %c0_0, %c0_1, %c0_2] : memref<1x18x18x4xbf16, #tpu.memory_space<vmem>>, vector<1x18x18x4xbf16>
    %1 = vector.shape_cast %0 : vector<1x18x18x4xbf16> to vector<18x18x4xbf16>
    %2 = vector.extract_strided_slice %1 {offsets = [0, 0, 0], sizes = [16, 16, 4], strides = [1, 1, 1]} : vector<18x18x4xbf16> to vector<16x16x4xbf16>
    %3 = vector.shape_cast %2 : vector<16x16x4xbf16> to vector<256x4xbf16>
    %c0_3 = arith.constant 0 : index
    %c0_4 = arith.constant 0 : index
    %c0_5 = arith.constant 0 : index
    %4 = vector.load %arg2[%c0_3, %c0_4, %c0_5] : memref<9x4x128xbf16, #tpu.memory_space<vmem>>, vector<1x4x128xbf16>
    %5 = vector.shape_cast %4 : vector<1x4x128xbf16> to vector<4x128xbf16>
    %cst = arith.constant dense<0.000000e+00> : vector<256x128xf32>
    %6 = tpu.matmul %3, %5, %cst {dimension_numbers = #tpu.dot_dimension_numbers<[1], [0], [0], [1], [0, 0, 1, 1], [], []>} : vector<256x4xbf16>, vector<4x128xbf16>, vector<256x128xf32> -> vector<256x128xf32>
    %c0_6 = arith.constant 0 : index
    %c0_7 = arith.constant 0 : index
    %7 = vector.load %arg5[%c0_6, %c0_7] : memref<256x128xf32, #tpu.memory_space<vmem>>, vector<256x128xf32>
    tpu.vector_store %arg5[%c0_6, %c0_7], %6 {strides = array<i32>} : memref<256x128xf32, #tpu.memory_space<vmem>>, vector<256x128xf32>,
    %8 = vector.extract_strided_slice %1 {offsets = [0, 1, 0], sizes = [16, 16, 4], strides = [1, 1, 1]} : vector<18x18x4xbf16> to vector<16x16x4xbf16>
    %9 = vector.shape_cast %8 : vector<16x16x4xbf16> to vector<256x4xbf16>
    %c1 = arith.constant 1 : index
    %c0_8 = arith.constant 0 : index
    %c0_9 = arith.constant 0 : index
    %10 = vector.load %arg2[%c1, %c0_8, %c0_9] : memref<9x4x128xbf16, #tpu.memory_space<vmem>>, vector<1x4x128xbf16>
    %11 = vector.shape_cast %10 : vector<1x4x128xbf16> to vector<4x128xbf16>
    %cst_10 = arith.constant dense<0.000000e+00> : vector<256x128xf32>
    %12 = tpu.matmul %9, %11, %cst_10 {dimension_numbers = #tpu.dot_dimension_numbers<[1], [0], [0], [1], [0, 0, 1, 1], [], []>} : vector<256x4xbf16>, vector<4x128xbf16>, vector<256x128xf32> -> vector<256x128xf32>
    %c0_11 = arith.constant 0 : index
    %c0_12 = arith.constant 0 : index
    %13 = vector.load %arg5[%c0_11, %c0_12] : memref<256x128xf32, #tpu.memory_space<vmem>>, vector<256x128xf32>
    %14 = arith.addf %13, %12 : vector<256x128xf32>
    %c0_13 = arith.constant 0 : index
    %c0_14 = arith.constant 0 : index
    %15 = vector.load %arg5[%c0_13, %c0_14] : memref<256x128xf32, #tpu.memory_space<vmem>>, vector<256x128xf32>
    tpu.vector_store %arg5[%c0_13, %c0_14], %14 {strides = array<i32>} : memref<256x128xf32, #tpu.memory_space<vmem>>, vector<256x128xf32>,
    %16 = vector.extract_strided_slice %1 {offsets = [0, 2, 0], sizes = [16, 16, 4], strides = [1, 1, 1]} : vector<18x18x4xbf16> to vector<16x16x4xbf16>
    %17 = vector.shape_cast %16 : vector<16x16x4xbf16> to vector<256x4xbf16>
    %c2 = arith.constant 2 : index
    %c0_15 = arith.constant 0 : index
    %c0_16 = arith.constant 0 : index
    %18 = vector.load %arg2[%c2, %c0_15, %c0_16] : memref<9x4x128xbf16, #tpu.memory_space<vmem>>, vector<1x4x128xbf16>
    %19 = vector.shape_cast %18 : vector<1x4x128xbf16> to vector<4x128xbf16>
    %cst_17 = arith.constant dense<0.000000e+00> : vector<256x128xf32>
    %20 = tpu.matmul %17, %19, %cst_17 {dimension_numbers = #tpu.dot_dimension_numbers<[1], [0], [0], [1], [0, 0, 1, 1], [], []>} : vector<256x4xbf16>, vector<4x128xbf16>, vector<256x128xf32> -> vector<256x128xf32>
    %c0_18 = arith.constant 0 : index
    %c0_19 = arith.constant 0 : index
    %21 = vector.load %arg5[%c0_18, %c0_19] : memref<256x128xf32, #tpu.memory_space<vmem>>, vector<256x128xf32>
    %22 = arith.addf %21, %20 : vector<256x128xf32>
    %c0_20 = arith.constant 0 : index
    %c0_21 = arith.constant 0 : index
    %23 = vector.load %arg5[%c0_20, %c0_21] : memref<256x128xf32, #tpu.memory_space<vmem>>, vector<256x128xf32>
    tpu.vector_store %arg5[%c0_20, %c0_21], %22 {strides = array<i32>} : memref<256x128xf32, #tpu.memory_space<vmem>>, vector<256x128xf32>,
    %24 = vector.extract_strided_slice %1 {offsets = [1, 0, 0], sizes = [16, 16, 4], strides = [1, 1, 1]} : vector<18x18x4xbf16> to vector<16x16x4xbf16>
    %25 = vector.shape_cast %24 : vector<16x16x4xbf16> to vector<256x4xbf16>
    %c3 = arith.constant 3 : index
    %c0_22 = arith.constant 0 : index
    %c0_23 = arith.constant 0 : index
    %26 = vector.load %arg2[%c3, %c0_22, %c0_23] : memref<9x4x128xbf16, #tpu.memory_space<vmem>>, vector<1x4x128xbf16>
    %27 = vector.shape_cast %26 : vector<1x4x128xbf16> to vector<4x128xbf16>
    %cst_24 = arith.constant dense<0.000000e+00> : vector<256x128xf32>
    %28 = tpu.matmul %25, %27, %cst_24 {dimension_numbers = #tpu.dot_dimension_numbers<[1], [0], [0], [1], [0, 0, 1, 1], [], []>} : vector<256x4xbf16>, vector<4x128xbf16>, vector<256x128xf32> -> vector<256x128xf32>
    %c0_25 = arith.constant 0 : index
    %c0_26 = arith.constant 0 : index
    %29 = vector.load %arg5[%c0_25, %c0_26] : memref<256x128xf32, #tpu.memory_space<vmem>>, vector<256x128xf32>
    %30 = arith.addf %29, %28 : vector<256x128xf32>
    %c0_27 = arith.constant 0 : index
    %c0_28 = arith.constant 0 : index
    %31 = vector.load %arg5[%c0_27, %c0_28] : memref<256x128xf32, #tpu.memory_space<vmem>>, vector<256x128xf32>
    tpu.vector_store %arg5[%c0_27, %c0_28], %30 {strides = array<i32>} : memref<256x128xf32, #tpu.memory_space<vmem>>, vector<256x128xf32>,
    %32 = vector.extract_strided_slice %1 {offsets = [1, 1, 0], sizes = [16, 16, 4], strides = [1, 1, 1]} : vector<18x18x4xbf16> to vector<16x16x4xbf16>
    %33 = vector.shape_cast %32 : vector<16x16x4xbf16> to vector<256x4xbf16>
    %c4 = arith.constant 4 : index
    %c0_29 = arith.constant 0 : index
    %c0_30 = arith.constant 0 : index
    %34 = vector.load %arg2[%c4, %c0_29, %c0_30] : memref<9x4x128xbf16, #tpu.memory_space<vmem>>, vector<1x4x128xbf16>
    %35 = vector.shape_cast %34 : vector<1x4x128xbf16> to vector<4x128xbf16>
    %cst_31 = arith.constant dense<0.000000e+00> : vector<256x128xf32>
    %36 = tpu.matmul %33, %35, %cst_31 {dimension_numbers = #tpu.dot_dimension_numbers<[1], [0], [0], [1], [0, 0, 1, 1], [], []>} : vector<256x4xbf16>, vector<4x128xbf16>, vector<256x128xf32> -> vector<256x128xf32>
    %c0_32 = arith.constant 0 : index
    %c0_33 = arith.constant 0 : index
    %37 = vector.load %arg5[%c0_32, %c0_33] : memref<256x128xf32, #tpu.memory_space<vmem>>, vector<256x128xf32>
    %38 = arith.addf %37, %36 : vector<256x128xf32>
    %c0_34 = arith.constant 0 : index
    %c0_35 = arith.constant 0 : index
    %39 = vector.load %arg5[%c0_34, %c0_35] : memref<256x128xf32, #tpu.memory_space<vmem>>, vector<256x128xf32>
    tpu.vector_store %arg5[%c0_34, %c0_35], %38 {strides = array<i32>} : memref<256x128xf32, #tpu.memory_space<vmem>>, vector<256x128xf32>,
    %40 = vector.extract_strided_slice %1 {offsets = [1, 2, 0], sizes = [16, 16, 4], strides = [1, 1, 1]} : vector<18x18x4xbf16> to vector<16x16x4xbf16>
    %41 = vector.shape_cast %40 : vector<16x16x4xbf16> to vector<256x4xbf16>
    %c5 = arith.constant 5 : index
    %c0_36 = arith.constant 0 : index
    %c0_37 = arith.constant 0 : index
    %42 = vector.load %arg2[%c5, %c0_36, %c0_37] : memref<9x4x128xbf16, #tpu.memory_space<vmem>>, vector<1x4x128xbf16>
    %43 = vector.shape_cast %42 : vector<1x4x128xbf16> to vector<4x128xbf16>
    %cst_38 = arith.constant dense<0.000000e+00> : vector<256x128xf32>
    %44 = tpu.matmul %41, %43, %cst_38 {dimension_numbers = #tpu.dot_dimension_numbers<[1], [0], [0], [1], [0, 0, 1, 1], [], []>} : vector<256x4xbf16>, vector<4x128xbf16>, vector<256x128xf32> -> vector<256x128xf32>
    %c0_39 = arith.constant 0 : index
    %c0_40 = arith.constant 0 : index
    %45 = vector.load %arg5[%c0_39, %c0_40] : memref<256x128xf32, #tpu.memory_space<vmem>>, vector<256x128xf32>
    %46 = arith.addf %45, %44 : vector<256x128xf32>
    %c0_41 = arith.constant 0 : index
    %c0_42 = arith.constant 0 : index
    %47 = vector.load %arg5[%c0_41, %c0_42] : memref<256x128xf32, #tpu.memory_space<vmem>>, vector<256x128xf32>
    tpu.vector_store %arg5[%c0_41, %c0_42], %46 {strides = array<i32>} : memref<256x128xf32, #tpu.memory_space<vmem>>, vector<256x128xf32>,
    %48 = vector.extract_strided_slice %1 {offsets = [2, 0, 0], sizes = [16, 16, 4], strides = [1, 1, 1]} : vector<18x18x4xbf16> to vector<16x16x4xbf16>
    %49 = vector.shape_cast %48 : vector<16x16x4xbf16> to vector<256x4xbf16>
    %c6 = arith.constant 6 : index
    %c0_43 = arith.constant 0 : index
    %c0_44 = arith.constant 0 : index
    %50 = vector.load %arg2[%c6, %c0_43, %c0_44] : memref<9x4x128xbf16, #tpu.memory_space<vmem>>, vector<1x4x128xbf16>
    %51 = vector.shape_cast %50 : vector<1x4x128xbf16> to vector<4x128xbf16>
    %cst_45 = arith.constant dense<0.000000e+00> : vector<256x128xf32>
    %52 = tpu.matmul %49, %51, %cst_45 {dimension_numbers = #tpu.dot_dimension_numbers<[1], [0], [0], [1], [0, 0, 1, 1], [], []>} : vector<256x4xbf16>, vector<4x128xbf16>, vector<256x128xf32> -> vector<256x128xf32>
    %c0_46 = arith.constant 0 : index
    %c0_47 = arith.constant 0 : index
    %53 = vector.load %arg5[%c0_46, %c0_47] : memref<256x128xf32, #tpu.memory_space<vmem>>, vector<256x128xf32>
    %54 = arith.addf %53, %52 : vector<256x128xf32>
    %c0_48 = arith.constant 0 : index
    %c0_49 = arith.constant 0 : index
    %55 = vector.load %arg5[%c0_48, %c0_49] : memref<256x128xf32, #tpu.memory_space<vmem>>, vector<256x128xf32>
    tpu.vector_store %arg5[%c0_48, %c0_49], %54 {strides = array<i32>} : memref<256x128xf32, #tpu.memory_space<vmem>>, vector<256x128xf32>,
    %56 = vector.extract_strided_slice %1 {offsets = [2, 1, 0], sizes = [16, 16, 4], strides = [1, 1, 1]} : vector<18x18x4xbf16> to vector<16x16x4xbf16>
    %57 = vector.shape_cast %56 : vector<16x16x4xbf16> to vector<256x4xbf16>
    %c7 = arith.constant 7 : index
    %c0_50 = arith.constant 0 : index
    %c0_51 = arith.constant 0 : index
    %58 = vector.load %arg2[%c7, %c0_50, %c0_51] : memref<9x4x128xbf16, #tpu.memory_space<vmem>>, vector<1x4x128xbf16>
    %59 = vector.shape_cast %58 : vector<1x4x128xbf16> to vector<4x128xbf16>
    %cst_52 = arith.constant dense<0.000000e+00> : vector<256x128xf32>
    %60 = tpu.matmul %57, %59, %cst_52 {dimension_numbers = #tpu.dot_dimension_numbers<[1], [0], [0], [1], [0, 0, 1, 1], [], []>} : vector<256x4xbf16>, vector<4x128xbf16>, vector<256x128xf32> -> vector<256x128xf32>
    %c0_53 = arith.constant 0 : index
    %c0_54 = arith.constant 0 : index
    %61 = vector.load %arg5[%c0_53, %c0_54] : memref<256x128xf32, #tpu.memory_space<vmem>>, vector<256x128xf32>
    %62 = arith.addf %61, %60 : vector<256x128xf32>
    %c0_55 = arith.constant 0 : index
    %c0_56 = arith.constant 0 : index
    %63 = vector.load %arg5[%c0_55, %c0_56] : memref<256x128xf32, #tpu.memory_space<vmem>>, vector<256x128xf32>
    tpu.vector_store %arg5[%c0_55, %c0_56], %62 {strides = array<i32>} : memref<256x128xf32, #tpu.memory_space<vmem>>, vector<256x128xf32>,
    %64 = vector.extract_strided_slice %1 {offsets = [2, 2, 0], sizes = [16, 16, 4], strides = [1, 1, 1]} : vector<18x18x4xbf16> to vector<16x16x4xbf16>
    %65 = vector.shape_cast %64 : vector<16x16x4xbf16> to vector<256x4xbf16>
    %c8 = arith.constant 8 : index
    %c0_57 = arith.constant 0 : index
    %c0_58 = arith.constant 0 : index
    %66 = vector.load %arg2[%c8, %c0_57, %c0_58] : memref<9x4x128xbf16, #tpu.memory_space<vmem>>, vector<1x4x128xbf16>
    %67 = vector.shape_cast %66 : vector<1x4x128xbf16> to vector<4x128xbf16>
    %cst_59 = arith.constant dense<0.000000e+00> : vector<256x128xf32>
    %68 = tpu.matmul %65, %67, %cst_59 {dimension_numbers = #tpu.dot_dimension_numbers<[1], [0], [0], [1], [0, 0, 1, 1], [], []>} : vector<256x4xbf16>, vector<4x128xbf16>, vector<256x128xf32> -> vector<256x128xf32>
    %c0_60 = arith.constant 0 : index
    %c0_61 = arith.constant 0 : index
    %69 = vector.load %arg5[%c0_60, %c0_61] : memref<256x128xf32, #tpu.memory_space<vmem>>, vector<256x128xf32>
    %70 = arith.addf %69, %68 : vector<256x128xf32>
    %c0_62 = arith.constant 0 : index
    %c0_63 = arith.constant 0 : index
    %71 = vector.load %arg5[%c0_62, %c0_63] : memref<256x128xf32, #tpu.memory_space<vmem>>, vector<256x128xf32>
    tpu.vector_store %arg5[%c0_62, %c0_63], %70 {strides = array<i32>} : memref<256x128xf32, #tpu.memory_space<vmem>>, vector<256x128xf32>,
    %c0_64 = arith.constant 0 : index
    %c0_65 = arith.constant 0 : index
    %72 = vector.load %arg5[%c0_64, %c0_65] : memref<256x128xf32, #tpu.memory_space<vmem>>, vector<256x128xf32>
    %c0_66 = arith.constant 0 : index
    %c0_67 = arith.constant 0 : index
    %73 = vector.load %arg3[%c0_66, %c0_67] : memref<1x128xf32, #tpu.memory_space<vmem>>, vector<1x128xf32>
    %74 = vector.broadcast %73 : vector<1x128xf32> to vector<256x128xf32>
    %75 = arith.addf %72, %74 : vector<256x128xf32>
    %c0_68 = arith.constant 0 : index
    %c0_69 = arith.constant 0 : index
    %c0_70 = arith.constant 0 : index
    %76 = vector.load %arg4[%c0_68, %c0_69, %c0_70] : memref<1x256x128xf32, #tpu.memory_space<vmem>>, vector<1x256x128xf32>
    %77 = vector.shape_cast %76 : vector<1x256x128xf32> to vector<256x128xf32>
    %78 = vector.shape_cast %75 : vector<256x128xf32> to vector<1x256x128xf32>
    tpu.vector_store %arg4[%c0_68, %c0_69, %c0_70], %78 {strides = array<i32>} : memref<1x256x128xf32, #tpu.memory_space<vmem>>, vector<1x256x128xf32>,
    return
  }
  func.func @transform_0(%arg0: i32) -> (i32, i32, i32, i32) {
    %c0_i32 = arith.constant 0 : i32
    %c0_i32_0 = arith.constant 0 : i32
    %c0_i32_1 = arith.constant 0 : i32
    %c0_i32_2 = arith.constant 0 : i32
    return %arg0, %c0_i32, %c0_i32_0, %c0_i32_1 : i32, i32, i32, i32
  }
  func.func @transform_1(%arg0: i32) -> (i32, i32, i32) {
    %c0_i32 = arith.constant 0 : i32
    %c0_i32_0 = arith.constant 0 : i32
    %c0_i32_1 = arith.constant 0 : i32
    %c0_i32_2 = arith.constant 0 : i32
    return %c0_i32, %c0_i32_0, %c0_i32_1 : i32, i32, i32
  }
  func.func @transform_2(%arg0: i32) -> (i32, i32) {
    %c0_i32 = arith.constant 0 : i32
    %c0_i32_0 = arith.constant 0 : i32
    %c0_i32_1 = arith.constant 0 : i32
    return %c0_i32, %c0_i32_0 : i32, i32
  }
  func.func @transform_3(%arg0: i32) -> (i32, i32, i32) {
    %c0_i32 = arith.constant 0 : i32
    %c0_i32_0 = arith.constant 0 : i32
    %c0_i32_1 = arith.constant 0 : i32
    return %arg0, %c0_i32, %c0_i32_0 : i32, i32, i32
  }
}

</mosaic_0001>

<llo_original>
// kernel: tpu_custom_call.1
$region0: #{tpu_custom_call.1}
  #allocation0 [shape = 'u32[]', space=smem, size = 0x4, offset = 0x4, fixed_abs, tag = 'smem constant byte address 0x4 - core index']
  #allocation1 [shape = 'u32[144,128]{1,0:T(1,128)}', space=vmem, size = 0x12000, scoped, tag = 'internal scratch']
  #allocation2 [shape = 'f32[256,128]{1,0:T(8,128)}', space=vmem, size = 0x20000, scoped, tag = 'scratch operand']
  %s0 = inlined_call_operand.vmem [shape: bf16[2,18,18,4], index: 0, kind: input, shape index: {}]
  %s1 = inlined_call_operand.vmem [shape: bf16[9,4,128], index: 1, kind: input, shape index: {}]
  %s2 = inlined_call_operand.vmem [shape: f32[1,128], index: 2, kind: input, shape index: {}]
  %s3 = inlined_call_operand.hbm [shape: f32[2,256,128], index: 3, kind: output, shape index: {}]
  %s4 = sld [smem:[#allocation0]]
  $region45: #{tpu_custom_call.1} parent=0
    _
  %s6 = ssub.s32 1, %s4
  %s7 = scalar_select 0, %s6, %s4
  $region1: #{tpu_custom_call.1} parent=0
    #allocation3 [shape = 'u8[262144]{0}', space=vmem, size = 0x40000, scoped, tag = 'output window, operand 0']
    #allocation4 [shape = 's32[2]{0}', space=sflag, size = 0x8, scoped, tag = 'scoped memory for tpu_custom_call.1']
    %8 = vsyncpa [#allocation4], 0
    %s9 = scalar_lea.sflag [#allocation4], 1
    %10 = vsyncpa %s9, 0
    loop: start=0, step=1, limit=4
    $region2: #{tpu_custom_call.1} parent=1 // loop_pre_header
      _
    $region3: #{tpu_custom_call.1} parent=1 // loop_header
      %s12 = sphi 0, %s16
      %p13 = scmp.ge.s32.totalorder %s12, 4
      %s22 = sphi 0, %s24
      %s25 = sphi 0, %s22
      %s26 = sphi 0, %s25
      %s42 = sphi 0, %s26
      %s46 = sphi 0, %s46
      %s48 = sphi 0, %s46
      %s49 = sphi 0, %s48
      %s63 = sphi 0, %s49
      %s67 = sphi 0, %s67
      %s69 = sphi 0, %s67
      %s70 = sphi 0, %s69
      %s84 = sphi 0, %s70
      %s90 = sphi 0, %s92
      %s93 = sphi 0, %s90
      %s94 = sphi 0, %s93
      %s110 = sphi 0, %s94
    $region4: #{tpu_custom_call.1} parent=1 // loop_header_branch
      %15 = sbr.rel (%p13) target = $region8
    $region5: #{tpu_custom_call.1} parent=1 // loop_body
      %s17 = ssub.s32 %s12, 1
      %s18 = ssub.s32 %s12, 2
      %s19 = sadd.s32 %s12, 1
      %s20 = ssub.s32 %s12, %s19
      %p21 = scmp.eq.s32.totalorder %s20, 0
      %s23 = sadd.s32 %s22, 1
      %s24 = scalar_select %p21, %s22, %s23
      %p27 = pneg %p21
      %p28 = scmp.eq.s32.totalorder %s12, 1
      %p29 = por %p27, %p28
      %p30 = scmp.ne.s32.totalorder %s22, %s25
      %p31 = scmp.eq.s32.totalorder %s12, 0
      %p32 = por %p30, %p31
      %p33 = scmp.ne.s32.totalorder %s22, %s25
      %p34 = scmp.eq.s32.totalorder %s17, 1
      %p35 = por %p33, %p34
      %p36 = scmp.ne.s32.totalorder %s25, %s26
      %p37 = scmp.eq.s32.totalorder %s17, 0
      %p38 = por %p36, %p37
      %p39 = scmp.ne.s32.totalorder %s25, %s26
      %p40 = scmp.eq.s32.totalorder %s18, 1
      %p41 = por %p39, %p40
      %p43 = scmp.ne.s32.totalorder %s26, %s42
      %p44 = scmp.eq.s32.totalorder %s18, 0
      %p45 = por %p43, %p44
      %s47 = sadd.s32 %s46, 1
      %p50 = scmp.eq.s32.totalorder %s12, 1
      %p51 = scmp.ne.s32.totalorder %s46, %s48
      %p52 = scmp.eq.s32.totalorder %s12, 0
      %p53 = por %p51, %p52
      %p54 = scmp.ne.s32.totalorder %s46, %s48
      %p55 = scmp.eq.s32.totalorder %s17, 1
      %p56 = por %p54, %p55
      %p57 = scmp.ne.s32.totalorder %s48, %s49
      %p58 = scmp.eq.s32.totalorder %s17, 0
      %p59 = por %p57, %p58
      %p60 = scmp.ne.s32.totalorder %s48, %s49
      %p61 = scmp.eq.s32.totalorder %s18, 1
      %p62 = por %p60, %p61
      %p64 = scmp.ne.s32.totalorder %s49, %s63
      %p65 = scmp.eq.s32.totalorder %s18, 0
      %p66 = por %p64, %p65
      %s68 = sadd.s32 %s67, 1
      %p71 = scmp.eq.s32.totalorder %s12, 1
      %p72 = scmp.ne.s32.totalorder %s67, %s69
      %p73 = scmp.eq.s32.totalorder %s12, 0
      %p74 = por %p72, %p73
      %p75 = scmp.ne.s32.totalorder %s67, %s69
      %p76 = scmp.eq.s32.totalorder %s17, 1
      %p77 = por %p75, %p76
      %p78 = scmp.ne.s32.totalorder %s69, %s70
      %p79 = scmp.eq.s32.totalorder %s17, 0
      %p80 = por %p78, %p79
      %p81 = scmp.ne.s32.totalorder %s69, %s70
      %p82 = scmp.eq.s32.totalorder %s18, 1
      %p83 = por %p81, %p82
      %p85 = scmp.ne.s32.totalorder %s70, %s84
      %p86 = scmp.eq.s32.totalorder %s18, 0
      %p87 = por %p85, %p86
      %s88 = ssub.s32 %s12, %s19
      %p89 = scmp.eq.s32.totalorder %s88, 0
      %s91 = sadd.s32 %s90, 1
      %s92 = scalar_select %p89, %s90, %s91
      %p95 = pneg %p89
      %p96 = scmp.eq.s32.totalorder %s12, 1
      %p97 = por %p95, %p96
      %p98 = scmp.ne.s32.totalorder %s90, %s93
      %p99 = scmp.eq.s32.totalorder %s12, 0
      %p100 = por %p98, %p99
      %p101 = scmp.ne.s32.totalorder %s90, %s93
      %p102 = scmp.eq.s32.totalorder %s17, 1
      %p103 = por %p101, %p102
      %p104 = scmp.ne.s32.totalorder %s93, %s94
      %p105 = scmp.eq.s32.totalorder %s17, 0
      %p106 = por %p104, %p105
      %p107 = scmp.ne.s32.totalorder %s93, %s94
      %p108 = scmp.eq.s32.totalorder %s18, 1
      %p109 = por %p107, %p108
      %p111 = scmp.ne.s32.totalorder %s94, %s110
      %p112 = scmp.eq.s32.totalorder %s18, 0
      %p113 = por %p111, %p112
      %p114 = scmp.le.s32.totalorder 1, %s12
      %p115 = scmp.lt.s32.totalorder %s12, 3
      %p116 = pnand %p114, %p115
      %p117 = pneg %p116
      // Predicated region
      $region9: #{tpu_custom_call.1} parent=5 // pred_check
        _
      $region10: #{tpu_custom_call.1} parent=5 // pred_check_branch
        %119 = sbr.rel (%p116) target = $region12
      $region11: #{tpu_custom_call.1} parent=5 // pred_region
        %s120 = ssub.s32 %s12, 1
        // Predicated region
        $region13: #{tpu_custom_call.1} parent=11 // pred_check
          %p121 = pneg %p59
        $region14: #{tpu_custom_call.1} parent=11 // pred_check_branch
          %123 = sbr.rel (%p121) target = $region16
        $region15: #{tpu_custom_call.1} parent=11 // pred_region
          _
        $region16: #{tpu_custom_call.1} parent=11 // pred_fallthru
          _
        // Predicated region
        $region17: #{tpu_custom_call.1} parent=11 // pred_check
          %p124 = pneg %p80
        $region18: #{tpu_custom_call.1} parent=11 // pred_check_branch
          %126 = sbr.rel (%p124) target = $region20
        $region19: #{tpu_custom_call.1} parent=11 // pred_region
          _
        $region20: #{tpu_custom_call.1} parent=11 // pred_fallthru
          _
      $region12: #{tpu_custom_call.1} parent=5 // pred_fallthru
        _
      %p127 = scmp.lt.s32.totalorder %s12, 2
      // Predicated region
      $region21: #{tpu_custom_call.1} parent=5 // pred_check
        %p128 = pneg %p127
      $region22: #{tpu_custom_call.1} parent=5 // pred_check_branch
        %130 = sbr.rel (%p128) target = $region24
      $region23: #{tpu_custom_call.1} parent=5 // pred_region
        // Predicated region
        $region25: #{tpu_custom_call.1} parent=23 // pred_check
          %p131 = pneg %p32
        $region26: #{tpu_custom_call.1} parent=23 // pred_check_branch
          %133 = sbr.rel (%p131) target = $region28
        $region27: #{tpu_custom_call.1} parent=23 // pred_region
          %p134 = scmp.lt.s32.totalorder %s12, 1
          %s135 = scalar_select %p134, %s12, 1
          %s136 = smul.addr %s135, 54
          %s137 = smul.addr %s136, 4
          %s138 = scalar_lea.vmem %s0, %s137
        $region28: #{tpu_custom_call.1} parent=23 // pred_fallthru
          _
      $region24: #{tpu_custom_call.1} parent=5 // pred_fallthru
        _
      %p139 = scmp.le.s32.totalorder 1, %s12
      %p140 = scmp.lt.s32.totalorder %s12, 3
      %p141 = pnand %p139, %p140
      %p142 = pneg %p141
      // Predicated region
      $region29: #{tpu_custom_call.1} parent=5 // pred_check
        _
      $region30: #{tpu_custom_call.1} parent=5 // pred_check_branch
        %144 = sbr.rel (%p141) target = $region32
      $region31: #{tpu_custom_call.1} parent=5 // pred_region
        %s145 = ssub.s32 %s12, 1
        %p146 = scmp.lt.s32.totalorder %s17, 1
        %s147 = scalar_select %p146, %s17, 1
        %s148 = smul.addr %s147, 54
        %s149 = smul.addr %s148, 4
        %s150 = scalar_lea.vmem %s0, %s149
        %p151 = pneg %p38
        %p152 = pneg %p35
        %p153 = pneg %p59
        %p154 = pneg %p56
        %p155 = pneg %p80
        %p156 = pneg %p77
        %p157 = pneg %p106
        %p158 = pneg %p103
        %s159 = sand.u32 %s93, 1
        %s160 = scalar_lea.sflag [#allocation4], %s159
        %s161 = sand.u32 %s93, 1
        %s162 = smul.addr %s161, 256
        %s163 = scalar_lea.vmem [#allocation3], %s162
        %p164 = scmp.lt.s32.totalorder %s17, 1
        %s165 = scalar_select %p164, %s17, 1
        %s166 = smul.addr %s165, 54
        %s167 = smul.addr %s166, 4
        %s168 = scalar_lea.vmem %s0, %s167
        %v170 = vld [vmem:[%s168] sm:$0xf]
        %v171 = vld [vmem:[%s168 + $0x4] sm:$0xf]
        %v172 = vld [vmem:[%s168 + $0x8] sm:$0x1]
        %v173 = vld [vmem:[%s168 + $0xc] sm:$0xf]
        %v174 = vld [vmem:[%s168 + $0x10] sm:$0xf]
        %v175 = vld [vmem:[%s168 + $0x14] sm:$0x1]
        %v176 = vld [vmem:[%s168 + $0x18] sm:$0xf]
        %v177 = vld [vmem:[%s168 + $0x1c] sm:$0xf]
        %v178 = vld [vmem:[%s168 + $0x20] sm:$0x1]
        %v179 = vld [vmem:[%s168 + $0x24] sm:$0xf]
        %v180 = vld [vmem:[%s168 + $0x28] sm:$0xf]
        %v181 = vld [vmem:[%s168 + $0x2c] sm:$0x1]
        %v182 = vld [vmem:[%s168 + $0x30] sm:$0xf]
        %v183 = vld [vmem:[%s168 + $0x34] sm:$0xf]
        %v184 = vld [vmem:[%s168 + $0x38] sm:$0x1]
        %v185 = vld [vmem:[%s168 + $0x3c] sm:$0xf]
        %v186 = vld [vmem:[%s168 + $0x40] sm:$0xf]
        %v187 = vld [vmem:[%s168 + $0x44] sm:$0x1]
        %v188 = vld [vmem:[%s168 + $0x48] sm:$0xf]
        %v189 = vld [vmem:[%s168 + $0x4c] sm:$0xf]
        %v190 = vld [vmem:[%s168 + $0x50] sm:$0x1]
        %v191 = vld [vmem:[%s168 + $0x54] sm:$0xf]
        %v192 = vld [vmem:[%s168 + $0x58] sm:$0xf]
        %v193 = vld [vmem:[%s168 + $0x5c] sm:$0x1]
        %v194 = vld [vmem:[%s168 + $0x60] sm:$0xf]
        %v195 = vld [vmem:[%s168 + $0x64] sm:$0xf]
        %v196 = vld [vmem:[%s168 + $0x68] sm:$0x1]
        %v197 = vld [vmem:[%s168 + $0x6c] sm:$0xf]
        %v198 = vld [vmem:[%s168 + $0x70] sm:$0xf]
        %v199 = vld [vmem:[%s168 + $0x74] sm:$0x1]
        %v200 = vld [vmem:[%s168 + $0x78] sm:$0xf]
        %v201 = vld [vmem:[%s168 + $0x7c] sm:$0xf]
        %v202 = vld [vmem:[%s168 + $0x80] sm:$0x1]
        %v203 = vld [vmem:[%s168 + $0x84] sm:$0xf]
        %v204 = vld [vmem:[%s168 + $0x88] sm:$0xf]
        %v205 = vld [vmem:[%s168 + $0x8c] sm:$0x1]
        %v206 = vld [vmem:[%s168 + $0x90] sm:$0xf]
        %v207 = vld [vmem:[%s168 + $0x94] sm:$0xf]
        %v208 = vld [vmem:[%s168 + $0x98] sm:$0x1]
        %v209 = vld [vmem:[%s168 + $0x9c] sm:$0xf]
        %v210 = vld [vmem:[%s168 + $0xa0] sm:$0xf]
        %v211 = vld [vmem:[%s168 + $0xa4] sm:$0x1]
        %v212 = vld [vmem:[%s168 + $0xa8] sm:$0xf]
        %v213 = vld [vmem:[%s168 + $0xac] sm:$0xf]
        %v214 = vld [vmem:[%s168 + $0xb0] sm:$0x1]
        %v215 = vld [vmem:[%s168 + $0xb4] sm:$0xf]
        %v216 = vld [vmem:[%s168 + $0xb8] sm:$0xf]
        %v217 = vld [vmem:[%s168 + $0xbc] sm:$0x1]
        %v218 = vld [vmem:[%s168 + $0xc0] sm:$0xf]
        %v219 = vld [vmem:[%s168 + $0xc4] sm:$0xf]
        %v220 = vld [vmem:[%s168 + $0xc8] sm:$0x1]
        %v221 = vld [vmem:[%s168 + $0xcc] sm:$0xf]
        %v222 = vld [vmem:[%s168 + $0xd0] sm:$0xf]
        %v223 = vld [vmem:[%s168 + $0xd4] sm:$0x1]
        %v224 = vld [vmem:[%s1] sm:$0x3]
        %v257 = vunpack.c.l.b16 %v170
        %v258 = vunpack.c.l.b16 %v171
        %v259 = vunpack.c.l.b16 %v173
        %v260 = vunpack.c.l.b16 %v174
        %v261 = vunpack.c.l.b16 %v176
        %v262 = vunpack.c.l.b16 %v177
        %v263 = vunpack.c.l.b16 %v179
        %v264 = vunpack.c.l.b16 %v180
        %v265 = vunpack.c.l.b16 %v182
        %v266 = vunpack.c.l.b16 %v183
        %v267 = vunpack.c.l.b16 %v185
        %v268 = vunpack.c.l.b16 %v186
        %v269 = vunpack.c.l.b16 %v188
        %v270 = vunpack.c.l.b16 %v189
        %v271 = vunpack.c.l.b16 %v191
        %v272 = vunpack.c.l.b16 %v192
        %v273 = vunpack.c.l.b16 %v194
        %v274 = vunpack.c.l.b16 %v195
        %v275 = vunpack.c.l.b16 %v197
        %v276 = vunpack.c.l.b16 %v198
        %v277 = vunpack.c.l.b16 %v200
        %v278 = vunpack.c.l.b16 %v201
        %v279 = vunpack.c.l.b16 %v203
        %v280 = vunpack.c.l.b16 %v204
        %v281 = vunpack.c.l.b16 %v206
        %v282 = vunpack.c.l.b16 %v207
        %v283 = vunpack.c.l.b16 %v209
        %v284 = vunpack.c.l.b16 %v210
        %v285 = vunpack.c.l.b16 %v212
        %v286 = vunpack.c.l.b16 %v213
        %v287 = vunpack.c.l.b16 %v215
        %v288 = vunpack.c.l.b16 %v216
        %v289 = vpack.c.b16 %v258, %v257
        %v290 = vpack.c.b16 %v260, %v259
        %v291 = vpack.c.b16 %v262, %v261
        %v292 = vpack.c.b16 %v264, %v263
        %v293 = vpack.c.b16 %v266, %v265
        %v294 = vpack.c.b16 %v268, %v267
        %v295 = vpack.c.b16 %v270, %v269
        %v296 = vpack.c.b16 %v272, %v271
        %v297 = vpack.c.b16 %v274, %v273
        %v298 = vpack.c.b16 %v276, %v275
        %v299 = vpack.c.b16 %v278, %v277
        %v300 = vpack.c.b16 %v280, %v279
        %v301 = vpack.c.b16 %v282, %v281
        %v302 = vpack.c.b16 %v284, %v283
        %v303 = vpack.c.b16 %v286, %v285
        %v304 = vpack.c.b16 %v288, %v287
        %vm305 = vcmask 31744
        %v307 = vsel %vm305, %v289, 0
        %v310 = vsel %vm305, %v290, 0
        %v313 = vsel %vm305, %v291, 0
        %v316 = vsel %vm305, %v292, 0
        %v319 = vsel %vm305, %v293, 0
        %v322 = vsel %vm305, %v294, 0
        %v325 = vsel %vm305, %v295, 0
        %v328 = vsel %vm305, %v296, 0
        %v331 = vsel %vm305, %v297, 0
        %v334 = vsel %vm305, %v298, 0
        %v337 = vsel %vm305, %v299, 0
        %v340 = vsel %vm305, %v300, 0
        %v343 = vsel %vm305, %v301, 0
        %v346 = vsel %vm305, %v302, 0
        %v349 = vsel %vm305, %v303, 0
        %v352 = vsel %vm305, %v304, 0
        %vm354 = vcmask 1041408
        %v356 = vsel %vm354, %v224, 0
        %358 = vmatprep.subr.bf16.mxu0 0
        %359 = vmatpush1.bf16.msra.mxu0 %v356
        %360 = vmatprep.subr.bf16.mxu0 0
        %361 = vmatpush1.bf16.msra.mxu0 0
        %362 = vmatprep.subr.bf16.mxu0 0
        %363 = vmatpush1.bf16.msra.mxu0 0
        %364 = vmatprep.subr.bf16.mxu0 0
        %365 = vmatpush1.bf16.msra.mxu0 0
        %366 = vmatprep.subr.bf16.mxu0 0
        %367 = vmatpush1.bf16.msra.mxu0 0
        %368 = vmatprep.subr.bf16.mxu0 0
        %369 = vmatpush1.bf16.msra.mxu0 0
        %370 = vmatprep.subr.bf16.mxu0 0
        %371 = vmatpush1.bf16.msra.mxu0 0
        %372 = vmatprep.subr.bf16.mxu0 0
        %373 = vmatpush1.bf16.msra.mxu0 0
        %374 = vmatprep.subr.bf16.mxu0 0
        %375 = vmatpush1.bf16.msra.mxu0 0
        %376 = vmatprep.subr.bf16.mxu0 0
        %377 = vmatpush1.bf16.msra.mxu0 0
        %378 = vmatprep.subr.bf16.mxu0 0
        %379 = vmatpush1.bf16.msra.mxu0 0
        %380 = vmatprep.subr.bf16.mxu0 0
        %381 = vmatpush1.bf16.msra.mxu0 0
        %382 = vmatprep.subr.bf16.mxu0 0
        %383 = vmatpush1.bf16.msra.mxu0 0
        %384 = vmatprep.subr.bf16.mxu0 0
        %385 = vmatpush1.bf16.msra.mxu0 0
        %386 = vmatprep.subr.bf16.mxu0 0
        %387 = vmatpush1.bf16.msra.mxu0 0
        %388 = vmatprep.subr.bf16.mxu0 0
        %389 = vmatpush1.bf16.msra.mxu0 0
        %390 = vmatprep.mubr.bf16.mxu0 0
        %391 = vmatmul.mubr.bf16.gmra.mrb[0].mxu0 %v307
        %v392 = vpop.f32.mrb[0].mxu0
        %v393 = vadd.f32 0.0, %v392
        %v394 = vpop.f32.mrb[0].mxu0
        %v395 = vpop.f32.mrb[0].mxu0
        %v396 = vadd.f32 0.0, %v395
        %v397 = vpop.f32.mrb[0].mxu0
        %398 = vmatprep.mubr.bf16.mxu0 0
        %399 = vmatmul.mubr.bf16.gmra.mrb[0].mxu0 %v310
        %v400 = vpop.f32.mrb[0].mxu0
        %v401 = vadd.f32 0.0, %v400
        %v402 = vpop.f32.mrb[0].mxu0
        %v403 = vpop.f32.mrb[0].mxu0
        %v404 = vadd.f32 0.0, %v403
        %v405 = vpop.f32.mrb[0].mxu0
        %406 = vmatprep.mubr.bf16.mxu0 0
        %407 = vmatmul.mubr.bf16.gmra.mrb[0].mxu0 %v313
        %v408 = vpop.f32.mrb[0].mxu0
        %v409 = vadd.f32 0.0, %v408
        %v410 = vpop.f32.mrb[0].mxu0
        %v411 = vpop.f32.mrb[0].mxu0
        %v412 = vadd.f32 0.0, %v411
        %v413 = vpop.f32.mrb[0].mxu0
        %414 = vmatprep.mubr.bf16.mxu0 0
        %415 = vmatmul.mubr.bf16.gmra.mrb[0].mxu0 %v316
        %v416 = vpop.f32.mrb[0].mxu0
        %v417 = vadd.f32 0.0, %v416
        %v418 = vpop.f32.mrb[0].mxu0
        %v419 = vpop.f32.mrb[0].mxu0
        %v420 = vadd.f32 0.0, %v419
        %v421 = vpop.f32.mrb[0].mxu0
        %422 = vmatprep.mubr.bf16.mxu0 0
        %423 = vmatmul.mubr.bf16.gmra.mrb[0].mxu0 %v319
        %v424 = vpop.f32.mrb[0].mxu0
        %v425 = vadd.f32 0.0, %v424
        %v426 = vpop.f32.mrb[0].mxu0
        %v427 = vpop.f32.mrb[0].mxu0
        %v428 = vadd.f32 0.0, %v427
        %v429 = vpop.f32.mrb[0].mxu0
        %430 = vmatprep.mubr.bf16.mxu0 0
        %431 = vmatmul.mubr.bf16.gmra.mrb[0].mxu0 %v322
        %v432 = vpop.f32.mrb[0].mxu0
        %v433 = vadd.f32 0.0, %v432
        %v434 = vpop.f32.mrb[0].mxu0
        %v435 = vpop.f32.mrb[0].mxu0
        %v436 = vadd.f32 0.0, %v435
        %v437 = vpop.f32.mrb[0].mxu0
        %438 = vmatprep.mubr.bf16.mxu0 0
        %439 = vmatmul.mubr.bf16.gmra.mrb[0].mxu0 %v325
        %v440 = vpop.f32.mrb[0].mxu0
        %v441 = vadd.f32 0.0, %v440
        %v442 = vpop.f32.mrb[0].mxu0
        %v443 = vpop.f32.mrb[0].mxu0
        %v444 = vadd.f32 0.0, %v443
        %v445 = vpop.f32.mrb[0].mxu0
        %446 = vmatprep.mubr.bf16.mxu0 0
        %447 = vmatmul.mubr.bf16.gmra.mrb[0].mxu0 %v328
        %v448 = vpop.f32.mrb[0].mxu0
        %v449 = vadd.f32 0.0, %v448
        %v450 = vpop.f32.mrb[0].mxu0
        %v451 = vpop.f32.mrb[0].mxu0
        %v452 = vadd.f32 0.0, %v451
        %v453 = vpop.f32.mrb[0].mxu0
        %454 = vmatprep.mubr.bf16.mxu0 0
        %455 = vmatmul.mubr.bf16.gmra.mrb[0].mxu0 %v331
        %v456 = vpop.f32.mrb[0].mxu0
        %v457 = vadd.f32 0.0, %v456
        %v458 = vpop.f32.mrb[0].mxu0
        %v459 = vpop.f32.mrb[0].mxu0
        %v460 = vadd.f32 0.0, %v459
        %v461 = vpop.f32.mrb[0].mxu0
        %462 = vmatprep.mubr.bf16.mxu0 0
        %463 = vmatmul.mubr.bf16.gmra.mrb[0].mxu0 %v334
        %v464 = vpop.f32.mrb[0].mxu0
        %v465 = vadd.f32 0.0, %v464
        %v466 = vpop.f32.mrb[0].mxu0
        %v467 = vpop.f32.mrb[0].mxu0
        %v468 = vadd.f32 0.0, %v467
        %v469 = vpop.f32.mrb[0].mxu0
        %470 = vmatprep.mubr.bf16.mxu0 0
        %471 = vmatmul.mubr.bf16.gmra.mrb[0].mxu0 %v337
        %v472 = vpop.f32.mrb[0].mxu0
        %v473 = vadd.f32 0.0, %v472
        %v474 = vpop.f32.mrb[0].mxu0
        %v475 = vpop.f32.mrb[0].mxu0
        %v476 = vadd.f32 0.0, %v475
        %v477 = vpop.f32.mrb[0].mxu0
        %478 = vmatprep.mubr.bf16.mxu0 0
        %479 = vmatmul.mubr.bf16.gmra.mrb[0].mxu0 %v340
        %v480 = vpop.f32.mrb[0].mxu0
        %v481 = vadd.f32 0.0, %v480
        %v482 = vpop.f32.mrb[0].mxu0
        %v483 = vpop.f32.mrb[0].mxu0
        %v484 = vadd.f32 0.0, %v483
        %v485 = vpop.f32.mrb[0].mxu0
        %486 = vmatprep.mubr.bf16.mxu0 0
        %487 = vmatmul.mubr.bf16.gmra.mrb[0].mxu0 %v343
        %v488 = vpop.f32.mrb[0].mxu0
        %v489 = vadd.f32 0.0, %v488
        %v490 = vpop.f32.mrb[0].mxu0
        %v491 = vpop.f32.mrb[0].mxu0
        %v492 = vadd.f32 0.0, %v491
        %v493 = vpop.f32.mrb[0].mxu0
        %494 = vmatprep.mubr.bf16.mxu0 0
        %495 = vmatmul.mubr.bf16.gmra.mrb[0].mxu0 %v346
        %v496 = vpop.f32.mrb[0].mxu0
        %v497 = vadd.f32 0.0, %v496
        %v498 = vpop.f32.mrb[0].mxu0
        %v499 = vpop.f32.mrb[0].mxu0
        %v500 = vadd.f32 0.0, %v499
        %v501 = vpop.f32.mrb[0].mxu0
        %502 = vmatprep.mubr.bf16.mxu0 0
        %503 = vmatmul.mubr.bf16.gmra.mrb[0].mxu0 %v349
        %v504 = vpop.f32.mrb[0].mxu0
        %v505 = vadd.f32 0.0, %v504
        %v506 = vpop.f32.mrb[0].mxu0
        %v507 = vpop.f32.mrb[0].mxu0
        %v508 = vadd.f32 0.0, %v507
        %v509 = vpop.f32.mrb[0].mxu0
        %510 = vmatprep.mubr.bf16.mxu0 0
        %511 = vmatmul.mubr.bf16.gmra.mrb[0].mxu0 %v352
        %v512 = vpop.f32.mrb[0].mxu0
        %v513 = vadd.f32 0.0, %v512
        %v514 = vpop.f32.mrb[0].mxu0
        %v515 = vpop.f32.mrb[0].mxu0
        %v516 = vadd.f32 0.0, %v515
        %v517 = vpop.f32.mrb[0].mxu0
        %518 = vdwg.mxu0
        %519 = vst [vmem:[#allocation2] sm:$0xff] %v393
        %520 = vst [vmem:[#allocation2 + $0x8] sm:$0xff] %v396
        %521 = vst [vmem:[#allocation2 + $0x10] sm:$0xff] %v401
        %522 = vst [vmem:[#allocation2 + $0x18] sm:$0xff] %v404
        %523 = vst [vmem:[#allocation2 + $0x20] sm:$0xff] %v409
        %524 = vst [vmem:[#allocation2 + $0x28] sm:$0xff] %v412
        %525 = vst [vmem:[#allocation2 + $0x30] sm:$0xff] %v417
        %526 = vst [vmem:[#allocation2 + $0x38] sm:$0xff] %v420
        %527 = vst [vmem:[#allocation2 + $0x40] sm:$0xff] %v425
        %528 = vst [vmem:[#allocation2 + $0x48] sm:$0xff] %v428
        %529 = vst [vmem:[#allocation2 + $0x50] sm:$0xff] %v433
        %530 = vst [vmem:[#allocation2 + $0x58] sm:$0xff] %v436
        %531 = vst [vmem:[#allocation2 + $0x60] sm:$0xff] %v441
        %532 = vst [vmem:[#allocation2 + $0x68] sm:$0xff] %v444
        %533 = vst [vmem:[#allocation2 + $0x70] sm:$0xff] %v449
        %534 = vst [vmem:[#allocation2 + $0x78] sm:$0xff] %v452
        %535 = vst [vmem:[#allocation2 + $0x80] sm:$0xff] %v457
        %536 = vst [vmem:[#allocation2 + $0x88] sm:$0xff] %v460
        %537 = vst [vmem:[#allocation2 + $0x90] sm:$0xff] %v465
        %538 = vst [vmem:[#allocation2 + $0x98] sm:$0xff] %v468
        %539 = vst [vmem:[#allocation2 + $0xa0] sm:$0xff] %v473
        %540 = vst [vmem:[#allocation2 + $0xa8] sm:$0xff] %v476
        %541 = vst [vmem:[#allocation2 + $0xb0] sm:$0xff] %v481
        %542 = vst [vmem:[#allocation2 + $0xb8] sm:$0xff] %v484
        %543 = vst [vmem:[#allocation2 + $0xc0] sm:$0xff] %v489
        %544 = vst [vmem:[#allocation2 + $0xc8] sm:$0xff] %v492
        %545 = vst [vmem:[#allocation2 + $0xd0] sm:$0xff] %v497
        %546 = vst [vmem:[#allocation2 + $0xd8] sm:$0xff] %v500
        %547 = vst [vmem:[#allocation2 + $0xe0] sm:$0xff] %v505
        %548 = vst [vmem:[#allocation2 + $0xe8] sm:$0xff] %v508
        %549 = vst [vmem:[#allocation2 + $0xf0] sm:$0xff] %v513
        %550 = vst [vmem:[#allocation2 + $0xf8] sm:$0xff] %v516
        %vm551 = vsmask.f32 3328
        %vm552 = vsmask.f32 7440
        %vm553 = vmor %vm551, %vm552
        %v555 = vshrl.u32 %v170, 16
        %v557 = vrot.slane %v555, 4
        %v558 = vshll.u32 %v170, 16
        %v560 = vrot.slane %v558, 5
        %v561 = vor.u32 %v557, %v560
        %v562 = vrot.slane %v561, 4
        %v564 = vshll.u32 %v171, 16
        %v566 = vrot.slane %v564, 5
        %v567 = vsel %vm553, %v562, %v566
        %v568 = vshrl.u32 %v171, 16
        %v570 = vrot.slane %v568, 4
        %v571 = vor.u32 %v570, %v566
        %v572 = vrot.slane %v571, 4
        %v574 = vshll.u32 %v172, 16
        %v576 = vrot.slane %v574, 5
        %v577 = vsel %vm553, %v572, %v576
        %v579 = vshrl.u32 %v173, 16
        %v581 = vrot.slane %v579, 4
        %v582 = vshll.u32 %v173, 16
        %v584 = vrot.slane %v582, 5
        %v585 = vor.u32 %v581, %v584
        %v586 = vrot.slane %v585, 4
        %v588 = vshll.u32 %v174, 16
        %v590 = vrot.slane %v588, 5
        %v591 = vsel %vm553, %v586, %v590
        %v592 = vshrl.u32 %v174, 16
        %v594 = vrot.slane %v592, 4
        %v595 = vor.u32 %v594, %v590
        %v596 = vrot.slane %v595, 4
        %v598 = vshll.u32 %v175, 16
        %v600 = vrot.slane %v598, 5
        %v601 = vsel %vm553, %v596, %v600
        %v603 = vshrl.u32 %v176, 16
        %v605 = vrot.slane %v603, 4
        %v606 = vshll.u32 %v176, 16
        %v608 = vrot.slane %v606, 5
        %v609 = vor.u32 %v605, %v608
        %v610 = vrot.slane %v609, 4
        %v612 = vshll.u32 %v177, 16
        %v614 = vrot.slane %v612, 5
        %v615 = vsel %vm553, %v610, %v614
        %v616 = vshrl.u32 %v177, 16
        %v618 = vrot.slane %v616, 4
        %v619 = vor.u32 %v618, %v614
        %v620 = vrot.slane %v619, 4
        %v622 = vshll.u32 %v178, 16
        %v624 = vrot.slane %v622, 5
        %v625 = vsel %vm553, %v620, %v624
        %v627 = vshrl.u32 %v179, 16
        %v629 = vrot.slane %v627, 4
        %v630 = vshll.u32 %v179, 16
        %v632 = vrot.slane %v630, 5
        %v633 = vor.u32 %v629, %v632
        %v634 = vrot.slane %v633, 4
        %v636 = vshll.u32 %v180, 16
        %v638 = vrot.slane %v636, 5
        %v639 = vsel %vm553, %v634, %v638
        %v640 = vshrl.u32 %v180, 16
        %v642 = vrot.slane %v640, 4
        %v643 = vor.u32 %v642, %v638
        %v644 = vrot.slane %v643, 4
        %v646 = vshll.u32 %v181, 16
        %v648 = vrot.slane %v646, 5
        %v649 = vsel %vm553, %v644, %v648
        %v651 = vshrl.u32 %v182, 16
        %v653 = vrot.slane %v651, 4
        %v654 = vshll.u32 %v182, 16
        %v656 = vrot.slane %v654, 5
        %v657 = vor.u32 %v653, %v656
        %v658 = vrot.slane %v657, 4
        %v660 = vshll.u32 %v183, 16
        %v662 = vrot.slane %v660, 5
        %v663 = vsel %vm553, %v658, %v662
        %v664 = vshrl.u32 %v183, 16
        %v666 = vrot.slane %v664, 4
        %v667 = vor.u32 %v666, %v662
        %v668 = vrot.slane %v667, 4
        %v670 = vshll.u32 %v184, 16
        %v672 = vrot.slane %v670, 5
        %v673 = vsel %vm553, %v668, %v672
        %v675 = vshrl.u32 %v185, 16
        %v677 = vrot.slane %v675, 4
        %v678 = vshll.u32 %v185, 16
        %v680 = vrot.slane %v678, 5
        %v681 = vor.u32 %v677, %v680
        %v682 = vrot.slane %v681, 4
        %v684 = vshll.u32 %v186, 16
        %v686 = vrot.slane %v684, 5
        %v687 = vsel %vm553, %v682, %v686
        %v688 = vshrl.u32 %v186, 16
        %v690 = vrot.slane %v688, 4
        %v691 = vor.u32 %v690, %v686
        %v692 = vrot.slane %v691, 4
        %v694 = vshll.u32 %v187, 16
        %v696 = vrot.slane %v694, 5
        %v697 = vsel %vm553, %v692, %v696
        %v699 = vshrl.u32 %v188, 16
        %v701 = vrot.slane %v699, 4
        %v702 = vshll.u32 %v188, 16
        %v704 = vrot.slane %v702, 5
        %v705 = vor.u32 %v701, %v704
        %v706 = vrot.slane %v705, 4
        %v708 = vshll.u32 %v189, 16
        %v710 = vrot.slane %v708, 5
        %v711 = vsel %vm553, %v706, %v710
        %v712 = vshrl.u32 %v189, 16
        %v714 = vrot.slane %v712, 4
        %v715 = vor.u32 %v714, %v710
        %v716 = vrot.slane %v715, 4
        %v718 = vshll.u32 %v190, 16
        %v720 = vrot.slane %v718, 5
        %v721 = vsel %vm553, %v716, %v720
        %v723 = vshrl.u32 %v191, 16
        %v725 = vrot.slane %v723, 4
        %v726 = vshll.u32 %v191, 16
        %v728 = vrot.slane %v726, 5
        %v729 = vor.u32 %v725, %v728
        %v730 = vrot.slane %v729, 4
        %v732 = vshll.u32 %v192, 16
        %v734 = vrot.slane %v732, 5
        %v735 = vsel %vm553, %v730, %v734
        %v736 = vshrl.u32 %v192, 16
        %v738 = vrot.slane %v736, 4
        %v739 = vor.u32 %v738, %v734
        %v740 = vrot.slane %v739, 4
        %v742 = vshll.u32 %v193, 16
        %v744 = vrot.slane %v742, 5
        %v745 = vsel %vm553, %v740, %v744
        %v747 = vshrl.u32 %v194, 16
        %v749 = vrot.slane %v747, 4
        %v750 = vshll.u32 %v194, 16
        %v752 = vrot.slane %v750, 5
        %v753 = vor.u32 %v749, %v752
        %v754 = vrot.slane %v753, 4
        %v756 = vshll.u32 %v195, 16
        %v758 = vrot.slane %v756, 5
        %v759 = vsel %vm553, %v754, %v758
        %v760 = vshrl.u32 %v195, 16
        %v762 = vrot.slane %v760, 4
        %v763 = vor.u32 %v762, %v758
        %v764 = vrot.slane %v763, 4
        %v766 = vshll.u32 %v196, 16
        %v768 = vrot.slane %v766, 5
        %v769 = vsel %vm553, %v764, %v768
        %v771 = vshrl.u32 %v197, 16
        %v773 = vrot.slane %v771, 4
        %v774 = vshll.u32 %v197, 16
        %v776 = vrot.slane %v774, 5
        %v777 = vor.u32 %v773, %v776
        %v778 = vrot.slane %v777, 4
        %v780 = vshll.u32 %v198, 16
        %v782 = vrot.slane %v780, 5
        %v783 = vsel %vm553, %v778, %v782
        %v784 = vshrl.u32 %v198, 16
        %v786 = vrot.slane %v784, 4
        %v787 = vor.u32 %v786, %v782
        %v788 = vrot.slane %v787, 4
        %v790 = vshll.u32 %v199, 16
        %v792 = vrot.slane %v790, 5
        %v793 = vsel %vm553, %v788, %v792
        %v795 = vshrl.u32 %v200, 16
        %v797 = vrot.slane %v795, 4
        %v798 = vshll.u32 %v200, 16
        %v800 = vrot.slane %v798, 5
        %v801 = vor.u32 %v797, %v800
        %v802 = vrot.slane %v801, 4
        %v804 = vshll.u32 %v201, 16
        %v806 = vrot.slane %v804, 5
        %v807 = vsel %vm553, %v802, %v806
        %v808 = vshrl.u32 %v201, 16
        %v810 = vrot.slane %v808, 4
        %v811 = vor.u32 %v810, %v806
        %v812 = vrot.slane %v811, 4
        %v814 = vshll.u32 %v202, 16
        %v816 = vrot.slane %v814, 5
        %v817 = vsel %vm553, %v812, %v816
        %v819 = vshrl.u32 %v203, 16
        %v821 = vrot.slane %v819, 4
        %v822 = vshll.u32 %v203, 16
        %v824 = vrot.slane %v822, 5
        %v825 = vor.u32 %v821, %v824
        %v826 = vrot.slane %v825, 4
        %v828 = vshll.u32 %v204, 16
        %v830 = vrot.slane %v828, 5
        %v831 = vsel %vm553, %v826, %v830
        %v832 = vshrl.u32 %v204, 16
        %v834 = vrot.slane %v832, 4
        %v835 = vor.u32 %v834, %v830
        %v836 = vrot.slane %v835, 4
        %v838 = vshll.u32 %v205, 16
        %v840 = vrot.slane %v838, 5
        %v841 = vsel %vm553, %v836, %v840
        %v843 = vshrl.u32 %v206, 16
        %v845 = vrot.slane %v843, 4
        %v846 = vshll.u32 %v206, 16
        %v848 = vrot.slane %v846, 5
        %v849 = vor.u32 %v845, %v848
        %v850 = vrot.slane %v849, 4
        %v852 = vshll.u32 %v207, 16
        %v854 = vrot.slane %v852, 5
        %v855 = vsel %vm553, %v850, %v854
        %v856 = vshrl.u32 %v207, 16
        %v858 = vrot.slane %v856, 4
        %v859 = vor.u32 %v858, %v854
        %v860 = vrot.slane %v859, 4
        %v862 = vshll.u32 %v208, 16
        %v864 = vrot.slane %v862, 5
        %v865 = vsel %vm553, %v860, %v864
        %v867 = vshrl.u32 %v209, 16
        %v869 = vrot.slane %v867, 4
        %v870 = vshll.u32 %v209, 16
        %v872 = vrot.slane %v870, 5
        %v873 = vor.u32 %v869, %v872
        %v874 = vrot.slane %v873, 4
        %v876 = vshll.u32 %v210, 16
        %v878 = vrot.slane %v876, 5
        %v879 = vsel %vm553, %v874, %v878
        %v880 = vshrl.u32 %v210, 16
        %v882 = vrot.slane %v880, 4
        %v883 = vor.u32 %v882, %v878
        %v884 = vrot.slane %v883, 4
        %v886 = vshll.u32 %v211, 16
        %v888 = vrot.slane %v886, 5
        %v889 = vsel %vm553, %v884, %v888
        %v891 = vshrl.u32 %v212, 16
        %v893 = vrot.slane %v891, 4
        %v894 = vshll.u32 %v212, 16
        %v896 = vrot.slane %v894, 5
        %v897 = vor.u32 %v893, %v896
        %v898 = vrot.slane %v897, 4
        %v900 = vshll.u32 %v213, 16
        %v902 = vrot.slane %v900, 5
        %v903 = vsel %vm553, %v898, %v902
        %v904 = vshrl.u32 %v213, 16
        %v906 = vrot.slane %v904, 4
        %v907 = vor.u32 %v906, %v902
        %v908 = vrot.slane %v907, 4
        %v910 = vshll.u32 %v214, 16
        %v912 = vrot.slane %v910, 5
        %v913 = vsel %vm553, %v908, %v912
        %v915 = vshrl.u32 %v215, 16
        %v917 = vrot.slane %v915, 4
        %v918 = vshll.u32 %v215, 16
        %v920 = vrot.slane %v918, 5
        %v921 = vor.u32 %v917, %v920
        %v922 = vrot.slane %v921, 4
        %v924 = vshll.u32 %v216, 16
        %v926 = vrot.slane %v924, 5
        %v927 = vsel %vm553, %v922, %v926
        %v928 = vshrl.u32 %v216, 16
        %v930 = vrot.slane %v928, 4
        %v931 = vor.u32 %v930, %v926
        %v932 = vrot.slane %v931, 4
        %v934 = vshll.u32 %v217, 16
        %v936 = vrot.slane %v934, 5
        %v937 = vsel %vm553, %v932, %v936
        %s938 = scalar_lea.vmem %s1, 2
        %v939 = vld [vmem:[%s938] sm:$0x3]
        %v940 = vunpack.c.l.b16 %v567
        %v941 = vunpack.c.l.b16 %v577
        %v942 = vunpack.c.l.b16 %v591
        %v943 = vunpack.c.l.b16 %v601
        %v944 = vunpack.c.l.b16 %v615
        %v945 = vunpack.c.l.b16 %v625
        %v946 = vunpack.c.l.b16 %v639
        %v947 = vunpack.c.l.b16 %v649
        %v948 = vunpack.c.l.b16 %v663
        %v949 = vunpack.c.l.b16 %v673
        %v950 = vunpack.c.l.b16 %v687
        %v951 = vunpack.c.l.b16 %v697
        %v952 = vunpack.c.l.b16 %v711
        %v953 = vunpack.c.l.b16 %v721
        %v954 = vunpack.c.l.b16 %v735
        %v955 = vunpack.c.l.b16 %v745
        %v956 = vunpack.c.l.b16 %v759
        %v957 = vunpack.c.l.b16 %v769
        %v958 = vunpack.c.l.b16 %v783
        %v959 = vunpack.c.l.b16 %v793
        %v960 = vunpack.c.l.b16 %v807
        %v961 = vunpack.c.l.b16 %v817
        %v962 = vunpack.c.l.b16 %v831
        %v963 = vunpack.c.l.b16 %v841
        %v964 = vunpack.c.l.b16 %v855
        %v965 = vunpack.c.l.b16 %v865
        %v966 = vunpack.c.l.b16 %v879
        %v967 = vunpack.c.l.b16 %v889
        %v968 = vunpack.c.l.b16 %v903
        %v969 = vunpack.c.l.b16 %v913
        %v970 = vunpack.c.l.b16 %v927
        %v971 = vunpack.c.l.b16 %v937
        %v972 = vpack.c.b16 %v941, %v940
        %v973 = vpack.c.b16 %v943, %v942
        %v974 = vpack.c.b16 %v945, %v944
        %v975 = vpack.c.b16 %v947, %v946
        %v976 = vpack.c.b16 %v949, %v948
        %v977 = vpack.c.b16 %v951, %v950
        %v978 = vpack.c.b16 %v953, %v952
        %v979 = vpack.c.b16 %v955, %v954
        %v980 = vpack.c.b16 %v957, %v956
        %v981 = vpack.c.b16 %v959, %v958
        %v982 = vpack.c.b16 %v961, %v960
        %v983 = vpack.c.b16 %v963, %v962
        %v984 = vpack.c.b16 %v965, %v964
        %v985 = vpack.c.b16 %v967, %v966
        %v986 = vpack.c.b16 %v969, %v968
        %v987 = vpack.c.b16 %v971, %v970
        %v989 = vsel %vm305, %v972, 0
        %v992 = vsel %vm305, %v973, 0
        %v995 = vsel %vm305, %v974, 0
        %v998 = vsel %vm305, %v975, 0
        %v1001 = vsel %vm305, %v976, 0
        %v1004 = vsel %vm305, %v977, 0
        %v1007 = vsel %vm305, %v978, 0
        %v1010 = vsel %vm305, %v979, 0
        %v1013 = vsel %vm305, %v980, 0
        %v1016 = vsel %vm305, %v981, 0
        %v1019 = vsel %vm305, %v982, 0
        %v1022 = vsel %vm305, %v983, 0
        %v1025 = vsel %vm305, %v984, 0
        %v1028 = vsel %vm305, %v985, 0
        %v1031 = vsel %vm305, %v986, 0
        %v1034 = vsel %vm305, %v987, 0
        %v1037 = vsel %vm354, %v939, 0
        %1039 = vmatprep.subr.bf16.mxu0 0
        %1040 = vmatpush1.bf16.msra.mxu0 %v1037
        %1041 = vmatprep.subr.bf16.mxu0 0
        %1042 = vmatpush1.bf16.msra.mxu0 0
        %1043 = vmatprep.subr.bf16.mxu0 0
        %1044 = vmatpush1.bf16.msra.mxu0 0
        %1045 = vmatprep.subr.bf16.mxu0 0
        %1046 = vmatpush1.bf16.msra.mxu0 0
        %1047 = vmatprep.subr.bf16.mxu0 0
        %1048 = vmatpush1.bf16.msra.mxu0 0
        %1049 = vmatprep.subr.bf16.mxu0 0
        %1050 = vmatpush1.bf16.msra.mxu0 0
        %1051 = vmatprep.subr.bf16.mxu0 0
        %1052 = vmatpush1.bf16.msra.mxu0 0
        %1053 = vmatprep.subr.bf16.mxu0 0
        %1054 = vmatpush1.bf16.msra.mxu0 0
        %1055 = vmatprep.subr.bf16.mxu0 0
        %1056 = vmatpush1.bf16.msra.mxu0 0
        %1057 = vmatprep.subr.bf16.mxu0 0
        %1058 = vmatpush1.bf16.msra.mxu0 0
        %1059 = vmatprep.subr.bf16.mxu0 0
        %1060 = vmatpush1.bf16.msra.mxu0 0
        %1061 = vmatprep.subr.bf16.mxu0 0
        %1062 = vmatpush1.bf16.msra.mxu0 0
        %1063 = vmatprep.subr.bf16.mxu0 0
        %1064 = vmatpush1.bf16.msra.mxu0 0
        %1065 = vmatprep.subr.bf16.mxu0 0
        %1066 = vmatpush1.bf16.msra.mxu0 0
        %1067 = vmatprep.subr.bf16.mxu0 0
        %1068 = vmatpush1.bf16.msra.mxu0 0
        %1069 = vmatprep.subr.bf16.mxu0 0
        %1070 = vmatpush1.bf16.msra.mxu0 0
        %1071 = vmatprep.mubr.bf16.mxu0 0
        %1072 = vmatmul.mubr.bf16.gmra.mrb[0].mxu0 %v989
        %v1073 = vpop.f32.mrb[0].mxu0
        %v1074 = vadd.f32 0.0, %v1073
        %v1075 = vpop.f32.mrb[0].mxu0
        %v1076 = vpop.f32.mrb[0].mxu0
        %v1077 = vadd.f32 0.0, %v1076
        %v1078 = vpop.f32.mrb[0].mxu0
        %1079 = vmatprep.mubr.bf16.mxu0 0
        %1080 = vmatmul.mubr.bf16.gmra.mrb[0].mxu0 %v992
        %v1081 = vpop.f32.mrb[0].mxu0
        %v1082 = vadd.f32 0.0, %v1081
        %v1083 = vpop.f32.mrb[0].mxu0
        %v1084 = vpop.f32.mrb[0].mxu0
        %v1085 = vadd.f32 0.0, %v1084
        %v1086 = vpop.f32.mrb[0].mxu0
        %1087 = vmatprep.mubr.bf16.mxu0 0
        %1088 = vmatmul.mubr.bf16.gmra.mrb[0].mxu0 %v995
        %v1089 = vpop.f32.mrb[0].mxu0
        %v1090 = vadd.f32 0.0, %v1089
        %v1091 = vpop.f32.mrb[0].mxu0
        %v1092 = vpop.f32.mrb[0].mxu0
        %v1093 = vadd.f32 0.0, %v1092
        %v1094 = vpop.f32.mrb[0].mxu0
        %1095 = vmatprep.mubr.bf16.mxu0 0
        %1096 = vmatmul.mubr.bf16.gmra.mrb[0].mxu0 %v998
        %v1097 = vpop.f32.mrb[0].mxu0
        %v1098 = vadd.f32 0.0, %v1097
        %v1099 = vpop.f32.mrb[0].mxu0
        %v1100 = vpop.f32.mrb[0].mxu0
        %v1101 = vadd.f32 0.0, %v1100
        %v1102 = vpop.f32.mrb[0].mxu0
        %1103 = vmatprep.mubr.bf16.mxu0 0
        %1104 = vmatmul.mubr.bf16.gmra.mrb[0].mxu0 %v1001
        %v1105 = vpop.f32.mrb[0].mxu0
        %v1106 = vadd.f32 0.0, %v1105
        %v1107 = vpop.f32.mrb[0].mxu0
        %v1108 = vpop.f32.mrb[0].mxu0
        %v1109 = vadd.f32 0.0, %v1108
        %v1110 = vpop.f32.mrb[0].mxu0
        %1111 = vmatprep.mubr.bf16.mxu0 0
        %1112 = vmatmul.mubr.bf16.gmra.mrb[0].mxu0 %v1004
        %v1113 = vpop.f32.mrb[0].mxu0
        %v1114 = vadd.f32 0.0, %v1113
        %v1115 = vpop.f32.mrb[0].mxu0
        %v1116 = vpop.f32.mrb[0].mxu0
        %v1117 = vadd.f32 0.0, %v1116
        %v1118 = vpop.f32.mrb[0].mxu0
        %1119 = vmatprep.mubr.bf16.mxu0 0
        %1120 = vmatmul.mubr.bf16.gmra.mrb[0].mxu0 %v1007
        %v1121 = vpop.f32.mrb[0].mxu0
        %v1122 = vadd.f32 0.0, %v1121
        %v1123 = vpop.f32.mrb[0].mxu0
        %v1124 = vpop.f32.mrb[0].mxu0
        %v1125 = vadd.f32 0.0, %v1124
        %v1126 = vpop.f32.mrb[0].mxu0
        %1127 = vmatprep.mubr.bf16.mxu0 0
        %1128 = vmatmul.mubr.bf16.gmra.mrb[0].mxu0 %v1010
        %v1129 = vpop.f32.mrb[0].mxu0
        %v1130 = vadd.f32 0.0, %v1129
        %v1131 = vpop.f32.mrb[0].mxu0
        %v1132 = vpop.f32.mrb[0].mxu0
        %v1133 = vadd.f32 0.0, %v1132
        %v1134 = vpop.f32.mrb[0].mxu0
        %1135 = vmatprep.mubr.bf16.mxu0 0
        %1136 = vmatmul.mubr.bf16.gmra.mrb[0].mxu0 %v1013
        %v1137 = vpop.f32.mrb[0].mxu0
        %v1138 = vadd.f32 0.0, %v1137
        %v1139 = vpop.f32.mrb[0].mxu0
        %v1140 = vpop.f32.mrb[0].mxu0
        %v1141 = vadd.f32 0.0, %v1140
        %v1142 = vpop.f32.mrb[0].mxu0
        %1143 = vmatprep.mubr.bf16.mxu0 0
        %1144 = vmatmul.mubr.bf16.gmra.mrb[0].mxu0 %v1016
        %v1145 = vpop.f32.mrb[0].mxu0
        %v1146 = vadd.f32 0.0, %v1145
        %v1147 = vpop.f32.mrb[0].mxu0
        %v1148 = vpop.f32.mrb[0].mxu0
        %v1149 = vadd.f32 0.0, %v1148
        %v1150 = vpop.f32.mrb[0].mxu0
        %1151 = vmatprep.mubr.bf16.mxu0 0
        %1152 = vmatmul.mubr.bf16.gmra.mrb[0].mxu0 %v1019
        %v1153 = vpop.f32.mrb[0].mxu0
        %v1154 = vadd.f32 0.0, %v1153
        %v1155 = vpop.f32.mrb[0].mxu0
        %v1156 = vpop.f32.mrb[0].mxu0
        %v1157 = vadd.f32 0.0, %v1156
        %v1158 = vpop.f32.mrb[0].mxu0
        %1159 = vmatprep.mubr.bf16.mxu0 0
        %1160 = vmatmul.mubr.bf16.gmra.mrb[0].mxu0 %v1022
        %v1161 = vpop.f32.mrb[0].mxu0
        %v1162 = vadd.f32 0.0, %v1161
        %v1163 = vpop.f32.mrb[0].mxu0
        %v1164 = vpop.f32.mrb[0].mxu0
        %v1165 = vadd.f32 0.0, %v1164
        %v1166 = vpop.f32.mrb[0].mxu0
        %1167 = vmatprep.mubr.bf16.mxu0 0
        %1168 = vmatmul.mubr.bf16.gmra.mrb[0].mxu0 %v1025
        %v1169 = vpop.f32.mrb[0].mxu0
        %v1170 = vadd.f32 0.0, %v1169
        %v1171 = vpop.f32.mrb[0].mxu0
        %v1172 = vpop.f32.mrb[0].mxu0
        %v1173 = vadd.f32 0.0, %v1172
        %v1174 = vpop.f32.mrb[0].mxu0
        %1175 = vmatprep.mubr.bf16.mxu0 0
        %1176 = vmatmul.mubr.bf16.gmra.mrb[0].mxu0 %v1028
        %v1177 = vpop.f32.mrb[0].mxu0
        %v1178 = vadd.f32 0.0, %v1177
        %v1179 = vpop.f32.mrb[0].mxu0
        %v1180 = vpop.f32.mrb[0].mxu0
        %v1181 = vadd.f32 0.0, %v1180
        %v1182 = vpop.f32.mrb[0].mxu0
        %1183 = vmatprep.mubr.bf16.mxu0 0
        %1184 = vmatmul.mubr.bf16.gmra.mrb[0].mxu0 %v1031
        %v1185 = vpop.f32.mrb[0].mxu0
        %v1186 = vadd.f32 0.0, %v1185
        %v1187 = vpop.f32.mrb[0].mxu0
        %v1188 = vpop.f32.mrb[0].mxu0
        %v1189 = vadd.f32 0.0, %v1188
        %v1190 = vpop.f32.mrb[0].mxu0
        %1191 = vmatprep.mubr.bf16.mxu0 0
        %1192 = vmatmul.mubr.bf16.gmra.mrb[0].mxu0 %v1034
        %v1193 = vpop.f32.mrb[0].mxu0
        %v1194 = vadd.f32 0.0, %v1193
        %v1195 = vpop.f32.mrb[0].mxu0
        %v1196 = vpop.f32.mrb[0].mxu0
        %v1197 = vadd.f32 0.0, %v1196
        %v1198 = vpop.f32.mrb[0].mxu0
        %1199 = vdwg.mxu0
        %v1200 = vld [vmem:[#allocation2] sm:$0xff]
        %v1201 = vld [vmem:[#allocation2 + $0x8] sm:$0xff]
        %v1202 = vld [vmem:[#allocation2 + $0x10] sm:$0xff]
        %v1203 = vld [vmem:[#allocation2 + $0x18] sm:$0xff]
        %v1204 = vld [vmem:[#allocation2 + $0x20] sm:$0xff]
        %v1205 = vld [vmem:[#allocation2 + $0x28] sm:$0xff]
        %v1206 = vld [vmem:[#allocation2 + $0x30] sm:$0xff]
        %v1207 = vld [vmem:[#allocation2 + $0x38] sm:$0xff]
        %v1208 = vld [vmem:[#allocation2 + $0x40] sm:$0xff]
        %v1209 = vld [vmem:[#allocation2 + $0x48] sm:$0xff]
        %v1210 = vld [vmem:[#allocation2 + $0x50] sm:$0xff]
        %v1211 = vld [vmem:[#allocation2 + $0x58] sm:$0xff]
        %v1212 = vld [vmem:[#allocation2 + $0x60] sm:$0xff]
        %v1213 = vld [vmem:[#allocation2 + $0x68] sm:$0xff]
        %v1214 = vld [vmem:[#allocation2 + $0x70] sm:$0xff]
        %v1215 = vld [vmem:[#allocation2 + $0x78] sm:$0xff]
        %v1216 = vld [vmem:[#allocation2 + $0x80] sm:$0xff]
        %v1217 = vld [vmem:[#allocation2 + $0x88] sm:$0xff]
        %v1218 = vld [vmem:[#allocation2 + $0x90] sm:$0xff]
        %v1219 = vld [vmem:[#allocation2 + $0x98] sm:$0xff]
        %v1220 = vld [vmem:[#allocation2 + $0xa0] sm:$0xff]
        %v1221 = vld [vmem:[#allocation2 + $0xa8] sm:$0xff]
        %v1222 = vld [vmem:[#allocation2 + $0xb0] sm:$0xff]
        %v1223 = vld [vmem:[#allocation2 + $0xb8] sm:$0xff]
        %v1224 = vld [vmem:[#allocation2 + $0xc0] sm:$0xff]
        %v1225 = vld [vmem:[#allocation2 + $0xc8] sm:$0xff]
        %v1226 = vld [vmem:[#allocation2 + $0xd0] sm:$0xff]
        %v1227 = vld [vmem:[#allocation2 + $0xd8] sm:$0xff]
        %v1228 = vld [vmem:[#allocation2 + $0xe0] sm:$0xff]
        %v1229 = vld [vmem:[#allocation2 + $0xe8] sm:$0xff]
        %v1230 = vld [vmem:[#allocation2 + $0xf0] sm:$0xff]
        %v1231 = vld [vmem:[#allocation2 + $0xf8] sm:$0xff]
        %v1232 = vadd.f32 %v1200, %v1074
        %v1233 = vadd.f32 %v1201, %v1077
        %v1234 = vadd.f32 %v1202, %v1082
        %v1235 = vadd.f32 %v1203, %v1085
        %v1236 = vadd.f32 %v1204, %v1090
        %v1237 = vadd.f32 %v1205, %v1093
        %v1238 = vadd.f32 %v1206, %v1098
        %v1239 = vadd.f32 %v1207, %v1101
        %v1240 = vadd.f32 %v1208, %v1106
        %v1241 = vadd.f32 %v1209, %v1109
        %v1242 = vadd.f32 %v1210, %v1114
        %v1243 = vadd.f32 %v1211, %v1117
        %v1244 = vadd.f32 %v1212, %v1122
        %v1245 = vadd.f32 %v1213, %v1125
        %v1246 = vadd.f32 %v1214, %v1130
        %v1247 = vadd.f32 %v1215, %v1133
        %v1248 = vadd.f32 %v1216, %v1138
        %v1249 = vadd.f32 %v1217, %v1141
        %v1250 = vadd.f32 %v1218, %v1146
        %v1251 = vadd.f32 %v1219, %v1149
        %v1252 = vadd.f32 %v1220, %v1154
        %v1253 = vadd.f32 %v1221, %v1157
        %v1254 = vadd.f32 %v1222, %v1162
        %v1255 = vadd.f32 %v1223, %v1165
        %v1256 = vadd.f32 %v1224, %v1170
        %v1257 = vadd.f32 %v1225, %v1173
        %v1258 = vadd.f32 %v1226, %v1178
        %v1259 = vadd.f32 %v1227, %v1181
        %v1260 = vadd.f32 %v1228, %v1186
        %v1261 = vadd.f32 %v1229, %v1189
        %v1262 = vadd.f32 %v1230, %v1194
        %v1263 = vadd.f32 %v1231, %v1197
        %1264 = vst [vmem:[#allocation2] sm:$0xff] %v1232
        %1265 = vst [vmem:[#allocation2 + $0x8] sm:$0xff] %v1233
        %1266 = vst [vmem:[#allocation2 + $0x10] sm:$0xff] %v1234
        %1267 = vst [vmem:[#allocation2 + $0x18] sm:$0xff] %v1235
        %1268 = vst [vmem:[#allocation2 + $0x20] sm:$0xff] %v1236
        %1269 = vst [vmem:[#allocation2 + $0x28] sm:$0xff] %v1237
        %1270 = vst [vmem:[#allocation2 + $0x30] sm:$0xff] %v1238
        %1271 = vst [vmem:[#allocation2 + $0x38] sm:$0xff] %v1239
        %1272 = vst [vmem:[#allocation2 + $0x40] sm:$0xff] %v1240
        %1273 = vst [vmem:[#allocation2 + $0x48] sm:$0xff] %v1241
        %1274 = vst [vmem:[#allocation2 + $0x50] sm:$0xff] %v1242
        %1275 = vst [vmem:[#allocation2 + $0x58] sm:$0xff] %v1243
        %1276 = vst [vmem:[#allocation2 + $0x60] sm:$0xff] %v1244
        %1277 = vst [vmem:[#allocation2 + $0x68] sm:$0xff] %v1245
        %1278 = vst [vmem:[#allocation2 + $0x70] sm:$0xff] %v1246
        %1279 = vst [vmem:[#allocation2 + $0x78] sm:$0xff] %v1247
        %1280 = vst [vmem:[#allocation2 + $0x80] sm:$0xff] %v1248
        %1281 = vst [vmem:[#allocation2 + $0x88] sm:$0xff] %v1249
        %1282 = vst [vmem:[#allocation2 + $0x90] sm:$0xff] %v1250
        %1283 = vst [vmem:[#allocation2 + $0x98] sm:$0xff] %v1251
        %1284 = vst [vmem:[#allocation2 + $0xa0] sm:$0xff] %v1252
        %1285 = vst [vmem:[#allocation2 + $0xa8] sm:$0xff] %v1253
        %1286 = vst [vmem:[#allocation2 + $0xb0] sm:$0xff] %v1254
        %1287 = vst [vmem:[#allocation2 + $0xb8] sm:$0xff] %v1255
        %1288 = vst [vmem:[#allocation2 + $0xc0] sm:$0xff] %v1256
        %1289 = vst [vmem:[#allocation2 + $0xc8] sm:$0xff] %v1257
        %1290 = vst [vmem:[#allocation2 + $0xd0] sm:$0xff] %v1258
        %1291 = vst [vmem:[#allocation2 + $0xd8] sm:$0xff] %v1259
        %1292 = vst [vmem:[#allocation2 + $0xe0] sm:$0xff] %v1260
        %1293 = vst [vmem:[#allocation2 + $0xe8] sm:$0xff] %v1261
        %1294 = vst [vmem:[#allocation2 + $0xf0] sm:$0xff] %v1262
        %1295 = vst [vmem:[#allocation2 + $0xf8] sm:$0xff] %v1263
        %vm1312 = vcmask 1042432
        %vm1313 = vcmask 1046532
        %vm1314 = vmor %vm1312, %vm1313
        %v1315 = vrot.slane %v170, 5
        %v1316 = vrot.slane %v1315, 4
        %v1317 = vrot.slane %v171, 5
        %v1318 = vsel %vm1314, %v1316, %v1317
        %v1319 = vrot.slane %v1317, 4
        %v1320 = vrot.slane %v172, 5
        %v1321 = vsel %vm1314, %v1319, %v1320
        %v1322 = vrot.slane %v173, 5
        %v1323 = vrot.slane %v1322, 4
        %v1324 = vrot.slane %v174, 5
        %v1325 = vsel %vm1314, %v1323, %v1324
        %v1326 = vrot.slane %v1324, 4
        %v1327 = vrot.slane %v175, 5
        %v1328 = vsel %vm1314, %v1326, %v1327
        %v1329 = vrot.slane %v176, 5
        %v1330 = vrot.slane %v1329, 4
        %v1331 = vrot.slane %v177, 5
        %v1332 = vsel %vm1314, %v1330, %v1331
        %v1333 = vrot.slane %v1331, 4
        %v1334 = vrot.slane %v178, 5
        %v1335 = vsel %vm1314, %v1333, %v1334
        %v1336 = vrot.slane %v179, 5
        %v1337 = vrot.slane %v1336, 4
        %v1338 = vrot.slane %v180, 5
        %v1339 = vsel %vm1314, %v1337, %v1338
        %v1340 = vrot.slane %v1338, 4
        %v1341 = vrot.slane %v181, 5
        %v1342 = vsel %vm1314, %v1340, %v1341
        %v1343 = vrot.slane %v182, 5
        %v1344 = vrot.slane %v1343, 4
        %v1345 = vrot.slane %v183, 5
        %v1346 = vsel %vm1314, %v1344, %v1345
        %v1347 = vrot.slane %v1345, 4
        %v1348 = vrot.slane %v184, 5
        %v1349 = vsel %vm1314, %v1347, %v1348
        %v1350 = vrot.slane %v185, 5
        %v1351 = vrot.slane %v1350, 4
        %v1352 = vrot.slane %v186, 5
        %v1353 = vsel %vm1314, %v1351, %v1352
        %v1354 = vrot.slane %v1352, 4
        %v1355 = vrot.slane %v187, 5
        %v1356 = vsel %vm1314, %v1354, %v1355
        %v1357 = vrot.slane %v188, 5
        %v1358 = vrot.slane %v1357, 4
        %v1359 = vrot.slane %v189, 5
        %v1360 = vsel %vm1314, %v1358, %v1359
        %v1361 = vrot.slane %v1359, 4
        %v1362 = vrot.slane %v190, 5
        %v1363 = vsel %vm1314, %v1361, %v1362
        %v1364 = vrot.slane %v191, 5
        %v1365 = vrot.slane %v1364, 4
        %v1366 = vrot.slane %v192, 5
        %v1367 = vsel %vm1314, %v1365, %v1366
        %v1368 = vrot.slane %v1366, 4
        %v1369 = vrot.slane %v193, 5
        %v1370 = vsel %vm1314, %v1368, %v1369
        %v1371 = vrot.slane %v194, 5
        %v1372 = vrot.slane %v1371, 4
        %v1373 = vrot.slane %v195, 5
        %v1374 = vsel %vm1314, %v1372, %v1373
        %v1375 = vrot.slane %v1373, 4
        %v1376 = vrot.slane %v196, 5
        %v1377 = vsel %vm1314, %v1375, %v1376
        %v1378 = vrot.slane %v197, 5
        %v1379 = vrot.slane %v1378, 4
        %v1380 = vrot.slane %v198, 5
        %v1381 = vsel %vm1314, %v1379, %v1380
        %v1382 = vrot.slane %v1380, 4
        %v1383 = vrot.slane %v199, 5
        %v1384 = vsel %vm1314, %v1382, %v1383
        %v1385 = vrot.slane %v200, 5
        %v1386 = vrot.slane %v1385, 4
        %v1387 = vrot.slane %v201, 5
        %v1388 = vsel %vm1314, %v1386, %v1387
        %v1389 = vrot.slane %v1387, 4
        %v1390 = vrot.slane %v202, 5
        %v1391 = vsel %vm1314, %v1389, %v1390
        %v1392 = vrot.slane %v203, 5
        %v1393 = vrot.slane %v1392, 4
        %v1394 = vrot.slane %v204, 5
        %v1395 = vsel %vm1314, %v1393, %v1394
        %v1396 = vrot.slane %v1394, 4
        %v1397 = vrot.slane %v205, 5
        %v1398 = vsel %vm1314, %v1396, %v1397
        %v1399 = vrot.slane %v206, 5
        %v1400 = vrot.slane %v1399, 4
        %v1401 = vrot.slane %v207, 5
        %v1402 = vsel %vm1314, %v1400, %v1401
        %v1403 = vrot.slane %v1401, 4
        %v1404 = vrot.slane %v208, 5
        %v1405 = vsel %vm1314, %v1403, %v1404
        %v1406 = vrot.slane %v209, 5
        %v1407 = vrot.slane %v1406, 4
        %v1408 = vrot.slane %v210, 5
        %v1409 = vsel %vm1314, %v1407, %v1408
        %v1410 = vrot.slane %v1408, 4
        %v1411 = vrot.slane %v211, 5
        %v1412 = vsel %vm1314, %v1410, %v1411
        %v1413 = vrot.slane %v212, 5
        %v1414 = vrot.slane %v1413, 4
        %v1415 = vrot.slane %v213, 5
        %v1416 = vsel %vm1314, %v1414, %v1415
        %v1417 = vrot.slane %v1415, 4
        %v1418 = vrot.slane %v214, 5
        %v1419 = vsel %vm1314, %v1417, %v1418
        %v1420 = vrot.slane %v215, 5
        %v1421 = vrot.slane %v1420, 4
        %v1422 = vrot.slane %v216, 5
        %v1423 = vsel %vm1314, %v1421, %v1422
        %v1424 = vrot.slane %v1422, 4
        %v1425 = vrot.slane %v217, 5
        %v1426 = vsel %vm1314, %v1424, %v1425
        %s1427 = scalar_lea.vmem %s1, 4
        %v1428 = vld [vmem:[%s1427] sm:$0x3]
        %v1429 = vunpack.c.l.b16 %v1318
        %v1430 = vunpack.c.l.b16 %v1321
        %v1431 = vunpack.c.l.b16 %v1325
        %v1432 = vunpack.c.l.b16 %v1328
        %v1433 = vunpack.c.l.b16 %v1332
        %v1434 = vunpack.c.l.b16 %v1335
        %v1435 = vunpack.c.l.b16 %v1339
        %v1436 = vunpack.c.l.b16 %v1342
        %v1437 = vunpack.c.l.b16 %v1346
        %v1438 = vunpack.c.l.b16 %v1349
        %v1439 = vunpack.c.l.b16 %v1353
        %v1440 = vunpack.c.l.b16 %v1356
        %v1441 = vunpack.c.l.b16 %v1360
        %v1442 = vunpack.c.l.b16 %v1363
        %v1443 = vunpack.c.l.b16 %v1367
        %v1444 = vunpack.c.l.b16 %v1370
        %v1445 = vunpack.c.l.b16 %v1374
        %v1446 = vunpack.c.l.b16 %v1377
        %v1447 = vunpack.c.l.b16 %v1381
        %v1448 = vunpack.c.l.b16 %v1384
        %v1449 = vunpack.c.l.b16 %v1388
        %v1450 = vunpack.c.l.b16 %v1391
        %v1451 = vunpack.c.l.b16 %v1395
        %v1452 = vunpack.c.l.b16 %v1398
        %v1453 = vunpack.c.l.b16 %v1402
        %v1454 = vunpack.c.l.b16 %v1405
        %v1455 = vunpack.c.l.b16 %v1409
        %v1456 = vunpack.c.l.b16 %v1412
        %v1457 = vunpack.c.l.b16 %v1416
        %v1458 = vunpack.c.l.b16 %v1419
        %v1459 = vunpack.c.l.b16 %v1423
        %v1460 = vunpack.c.l.b16 %v1426
        %v1461 = vpack.c.b16 %v1430, %v1429
        %v1462 = vpack.c.b16 %v1432, %v1431
        %v1463 = vpack.c.b16 %v1434, %v1433
        %v1464 = vpack.c.b16 %v1436, %v1435
        %v1465 = vpack.c.b16 %v1438, %v1437
        %v1466 = vpack.c.b16 %v1440, %v1439
        %v1467 = vpack.c.b16 %v1442, %v1441
        %v1468 = vpack.c.b16 %v1444, %v1443
        %v1469 = vpack.c.b16 %v1446, %v1445
        %v1470 = vpack.c.b16 %v1448, %v1447
        %v1471 = vpack.c.b16 %v1450, %v1449
        %v1472 = vpack.c.b16 %v1452, %v1451
        %v1473 = vpack.c.b16 %v1454, %v1453
        %v1474 = vpack.c.b16 %v1456, %v1455
        %v1475 = vpack.c.b16 %v1458, %v1457
        %v1476 = vpack.c.b16 %v1460, %v1459
        %v1478 = vsel %vm305, %v1461, 0
        %v1481 = vsel %vm305, %v1462, 0
        %v1484 = vsel %vm305, %v1463, 0
        %v1487 = vsel %vm305, %v1464, 0
        %v1490 = vsel %vm305, %v1465, 0
        %v1493 = vsel %vm305, %v1466, 0
        %v1496 = vsel %vm305, %v1467, 0
        %v1499 = vsel %vm305, %v1468, 0
        %v1502 = vsel %vm305, %v1469, 0
        %v1505 = vsel %vm305, %v1470, 0
        %v1508 = vsel %vm305, %v1471, 0
        %v1511 = vsel %vm305, %v1472, 0
        %v1514 = vsel %vm305, %v1473, 0
        %v1517 = vsel %vm305, %v1474, 0
        %v1520 = vsel %vm305, %v1475, 0
        %v1523 = vsel %vm305, %v1476, 0
        %v1526 = vsel %vm354, %v1428, 0
        %1528 = vmatprep.subr.bf16.mxu0 0
        %1529 = vmatpush1.bf16.msra.mxu0 %v1526
        %1530 = vmatprep.subr.bf16.mxu0 0
        %1531 = vmatpush1.bf16.msra.mxu0 0
        %1532 = vmatprep.subr.bf16.mxu0 0
        %1533 = vmatpush1.bf16.msra.mxu0 0
        %1534 = vmatprep.subr.bf16.mxu0 0
        %1535 = vmatpush1.bf16.msra.mxu0 0
        %1536 = vmatprep.subr.bf16.mxu0 0
        %1537 = vmatpush1.bf16.msra.mxu0 0
        %1538 = vmatprep.subr.bf16.mxu0 0
        %1539 = vmatpush1.bf16.msra.mxu0 0
        %1540 = vmatprep.subr.bf16.mxu0 0
        %1541 = vmatpush1.bf16.msra.mxu0 0
        %1542 = vmatprep.subr.bf16.mxu0 0
        %1543 = vmatpush1.bf16.msra.mxu0 0
        %1544 = vmatprep.subr.bf16.mxu0 0
        %1545 = vmatpush1.bf16.msra.mxu0 0
        %1546 = vmatprep.subr.bf16.mxu0 0
        %1547 = vmatpush1.bf16.msra.mxu0 0
        %1548 = vmatprep.subr.bf16.mxu0 0
        %1549 = vmatpush1.bf16.msra.mxu0 0
        %1550 = vmatprep.subr.bf16.mxu0 0
        %1551 = vmatpush1.bf16.msra.mxu0 0
        %1552 = vmatprep.subr.bf16.mxu0 0
        %1553 = vmatpush1.bf16.msra.mxu0 0
        %1554 = vmatprep.subr.bf16.mxu0 0
        %1555 = vmatpush1.bf16.msra.mxu0 0
        %1556 = vmatprep.subr.bf16.mxu0 0
        %1557 = vmatpush1.bf16.msra.mxu0 0
        %1558 = vmatprep.subr.bf16.mxu0 0
        %1559 = vmatpush1.bf16.msra.mxu0 0
        %1560 = vmatprep.mubr.bf16.mxu0 0
        %1561 = vmatmul.mubr.bf16.gmra.mrb[0].mxu0 %v1478
        %v1562 = vpop.f32.mrb[0].mxu0
        %v1563 = vadd.f32 0.0, %v1562
        %v1564 = vpop.f32.mrb[0].mxu0
        %v1565 = vpop.f32.mrb[0].mxu0
        %v1566 = vadd.f32 0.0, %v1565
        %v1567 = vpop.f32.mrb[0].mxu0
        %1568 = vmatprep.mubr.bf16.mxu0 0
        %1569 = vmatmul.mubr.bf16.gmra.mrb[0].mxu0 %v1481
        %v1570 = vpop.f32.mrb[0].mxu0
        %v1571 = vadd.f32 0.0, %v1570
        %v1572 = vpop.f32.mrb[0].mxu0
        %v1573 = vpop.f32.mrb[0].mxu0
        %v1574 = vadd.f32 0.0, %v1573
        %v1575 = vpop.f32.mrb[0].mxu0
        %1576 = vmatprep.mubr.bf16.mxu0 0
        %1577 = vmatmul.mubr.bf16.gmra.mrb[0].mxu0 %v1484
        %v1578 = vpop.f32.mrb[0].mxu0
        %v1579 = vadd.f32 0.0, %v1578
        %v1580 = vpop.f32.mrb[0].mxu0
        %v1581 = vpop.f32.mrb[0].mxu0
        %v1582 = vadd.f32 0.0, %v1581
        %v1583 = vpop.f32.mrb[0].mxu0
        %1584 = vmatprep.mubr.bf16.mxu0 0
        %1585 = vmatmul.mubr.bf16.gmra.mrb[0].mxu0 %v1487
        %v1586 = vpop.f32.mrb[0].mxu0
        %v1587 = vadd.f32 0.0, %v1586
        %v1588 = vpop.f32.mrb[0].mxu0
        %v1589 = vpop.f32.mrb[0].mxu0
        %v1590 = vadd.f32 0.0, %v1589
        %v1591 = vpop.f32.mrb[0].mxu0
        %1592 = vmatprep.mubr.bf16.mxu0 0
        %1593 = vmatmul.mubr.bf16.gmra.mrb[0].mxu0 %v1490
        %v1594 = vpop.f32.mrb[0].mxu0
        %v1595 = vadd.f32 0.0, %v1594
        %v1596 = vpop.f32.mrb[0].mxu0
        %v1597 = vpop.f32.mrb[0].mxu0
        %v1598 = vadd.f32 0.0, %v1597
        %v1599 = vpop.f32.mrb[0].mxu0
        %1600 = vmatprep.mubr.bf16.mxu0 0
        %1601 = vmatmul.mubr.bf16.gmra.mrb[0].mxu0 %v1493
        %v1602 = vpop.f32.mrb[0].mxu0
        %v1603 = vadd.f32 0.0, %v1602
        %v1604 = vpop.f32.mrb[0].mxu0
        %v1605 = vpop.f32.mrb[0].mxu0
        %v1606 = vadd.f32 0.0, %v1605
        %v1607 = vpop.f32.mrb[0].mxu0
        %1608 = vmatprep.mubr.bf16.mxu0 0
        %1609 = vmatmul.mubr.bf16.gmra.mrb[0].mxu0 %v1496
        %v1610 = vpop.f32.mrb[0].mxu0
        %v1611 = vadd.f32 0.0, %v1610
        %v1612 = vpop.f32.mrb[0].mxu0
        %v1613 = vpop.f32.mrb[0].mxu0
        %v1614 = vadd.f32 0.0, %v1613
        %v1615 = vpop.f32.mrb[0].mxu0
        %1616 = vmatprep.mubr.bf16.mxu0 0
        %1617 = vmatmul.mubr.bf16.gmra.mrb[0].mxu0 %v1499
        %v1618 = vpop.f32.mrb[0].mxu0
        %v1619 = vadd.f32 0.0, %v1618
        %v1620 = vpop.f32.mrb[0].mxu0
        %v1621 = vpop.f32.mrb[0].mxu0
        %v1622 = vadd.f32 0.0, %v1621
        %v1623 = vpop.f32.mrb[0].mxu0
        %1624 = vmatprep.mubr.bf16.mxu0 0
        %1625 = vmatmul.mubr.bf16.gmra.mrb[0].mxu0 %v1502
        %v1626 = vpop.f32.mrb[0].mxu0
        %v1627 = vadd.f32 0.0, %v1626
        %v1628 = vpop.f32.mrb[0].mxu0
        %v1629 = vpop.f32.mrb[0].mxu0
        %v1630 = vadd.f32 0.0, %v1629
        %v1631 = vpop.f32.mrb[0].mxu0
        %1632 = vmatprep.mubr.bf16.mxu0 0
        %1633 = vmatmul.mubr.bf16.gmra.mrb[0].mxu0 %v1505
        %v1634 = vpop.f32.mrb[0].mxu0
        %v1635 = vadd.f32 0.0, %v1634
        %v1636 = vpop.f32.mrb[0].mxu0
        %v1637 = vpop.f32.mrb[0].mxu0
        %v1638 = vadd.f32 0.0, %v1637
        %v1639 = vpop.f32.mrb[0].mxu0
        %1640 = vmatprep.mubr.bf16.mxu0 0
        %1641 = vmatmul.mubr.bf16.gmra.mrb[0].mxu0 %v1508
        %v1642 = vpop.f32.mrb[0].mxu0
        %v1643 = vadd.f32 0.0, %v1642
        %v1644 = vpop.f32.mrb[0].mxu0
        %v1645 = vpop.f32.mrb[0].mxu0
        %v1646 = vadd.f32 0.0, %v1645
        %v1647 = vpop.f32.mrb[0].mxu0
        %1648 = vmatprep.mubr.bf16.mxu0 0
        %1649 = vmatmul.mubr.bf16.gmra.mrb[0].mxu0 %v1511
        %v1650 = vpop.f32.mrb[0].mxu0
        %v1651 = vadd.f32 0.0, %v1650
        %v1652 = vpop.f32.mrb[0].mxu0
        %v1653 = vpop.f32.mrb[0].mxu0
        %v1654 = vadd.f32 0.0, %v1653
        %v1655 = vpop.f32.mrb[0].mxu0
        %1656 = vmatprep.mubr.bf16.mxu0 0
        %1657 = vmatmul.mubr.bf16.gmra.mrb[0].mxu0 %v1514
        %v1658 = vpop.f32.mrb[0].mxu0
        %v1659 = vadd.f32 0.0, %v1658
        %v1660 = vpop.f32.mrb[0].mxu0
        %v1661 = vpop.f32.mrb[0].mxu0
        %v1662 = vadd.f32 0.0, %v1661
        %v1663 = vpop.f32.mrb[0].mxu0
        %1664 = vmatprep.mubr.bf16.mxu0 0
        %1665 = vmatmul.mubr.bf16.gmra.mrb[0].mxu0 %v1517
        %v1666 = vpop.f32.mrb[0].mxu0
        %v1667 = vadd.f32 0.0, %v1666
        %v1668 = vpop.f32.mrb[0].mxu0
        %v1669 = vpop.f32.mrb[0].mxu0
        %v1670 = vadd.f32 0.0, %v1669
        %v1671 = vpop.f32.mrb[0].mxu0
        %1672 = vmatprep.mubr.bf16.mxu0 0
        %1673 = vmatmul.mubr.bf16.gmra.mrb[0].mxu0 %v1520
        %v1674 = vpop.f32.mrb[0].mxu0
        %v1675 = vadd.f32 0.0, %v1674
        %v1676 = vpop.f32.mrb[0].mxu0
        %v1677 = vpop.f32.mrb[0].mxu0
        %v1678 = vadd.f32 0.0, %v1677
        %v1679 = vpop.f32.mrb[0].mxu0
        %1680 = vmatprep.mubr.bf16.mxu0 0
        %1681 = vmatmul.mubr.bf16.gmra.mrb[0].mxu0 %v1523
        %v1682 = vpop.f32.mrb[0].mxu0
        %v1683 = vadd.f32 0.0, %v1682
        %v1684 = vpop.f32.mrb[0].mxu0
        %v1685 = vpop.f32.mrb[0].mxu0
        %v1686 = vadd.f32 0.0, %v1685
        %v1687 = vpop.f32.mrb[0].mxu0
        %1688 = vdwg.mxu0
        %v1689 = vld [vmem:[#allocation2] sm:$0xff]
        %v1690 = vld [vmem:[#allocation2 + $0x8] sm:$0xff]
        %v1691 = vld [vmem:[#allocation2 + $0x10] sm:$0xff]
        %v1692 = vld [vmem:[#allocation2 + $0x18] sm:$0xff]
        %v1693 = vld [vmem:[#allocation2 + $0x20] sm:$0xff]
        %v1694 = vld [vmem:[#allocation2 + $0x28] sm:$0xff]
        %v1695 = vld [vmem:[#allocation2 + $0x30] sm:$0xff]
        %v1696 = vld [vmem:[#allocation2 + $0x38] sm:$0xff]
        %v1697 = vld [vmem:[#allocation2 + $0x40] sm:$0xff]
        %v1698 = vld [vmem:[#allocation2 + $0x48] sm:$0xff]
        %v1699 = vld [vmem:[#allocation2 + $0x50] sm:$0xff]
        %v1700 = vld [vmem:[#allocation2 + $0x58] sm:$0xff]
        %v1701 = vld [vmem:[#allocation2 + $0x60] sm:$0xff]
        %v1702 = vld [vmem:[#allocation2 + $0x68] sm:$0xff]
        %v1703 = vld [vmem:[#allocation2 + $0x70] sm:$0xff]
        %v1704 = vld [vmem:[#allocation2 + $0x78] sm:$0xff]
        %v1705 = vld [vmem:[#allocation2 + $0x80] sm:$0xff]
        %v1706 = vld [vmem:[#allocation2 + $0x88] sm:$0xff]
        %v1707 = vld [vmem:[#allocation2 + $0x90] sm:$0xff]
        %v1708 = vld [vmem:[#allocation2 + $0x98] sm:$0xff]
        %v1709 = vld [vmem:[#allocation2 + $0xa0] sm:$0xff]
        %v1710 = vld [vmem:[#allocation2 + $0xa8] sm:$0xff]
        %v1711 = vld [vmem:[#allocation2 + $0xb0] sm:$0xff]
        %v1712 = vld [vmem:[#allocation2 + $0xb8] sm:$0xff]
        %v1713 = vld [vmem:[#allocation2 + $0xc0] sm:$0xff]
        %v1714 = vld [vmem:[#allocation2 + $0xc8] sm:$0xff]
        %v1715 = vld [vmem:[#allocation2 + $0xd0] sm:$0xff]
        %v1716 = vld [vmem:[#allocation2 + $0xd8] sm:$0xff]
        %v1717 = vld [vmem:[#allocation2 + $0xe0] sm:$0xff]
        %v1718 = vld [vmem:[#allocation2 + $0xe8] sm:$0xff]
        %v1719 = vld [vmem:[#allocation2 + $0xf0] sm:$0xff]
        %v1720 = vld [vmem:[#allocation2 + $0xf8] sm:$0xff]
        %v1721 = vadd.f32 %v1689, %v1563
        %v1722 = vadd.f32 %v1690, %v1566
        %v1723 = vadd.f32 %v1691, %v1571
        %v1724 = vadd.f32 %v1692, %v1574
        %v1725 = vadd.f32 %v1693, %v1579
        %v1726 = vadd.f32 %v1694, %v1582
        %v1727 = vadd.f32 %v1695, %v1587
        %v1728 = vadd.f32 %v1696, %v1590
        %v1729 = vadd.f32 %v1697, %v1595
        %v1730 = vadd.f32 %v1698, %v1598
        %v1731 = vadd.f32 %v1699, %v1603
        %v1732 = vadd.f32 %v1700, %v1606
        %v1733 = vadd.f32 %v1701, %v1611
        %v1734 = vadd.f32 %v1702, %v1614
        %v1735 = vadd.f32 %v1703, %v1619
        %v1736 = vadd.f32 %v1704, %v1622
        %v1737 = vadd.f32 %v1705, %v1627
        %v1738 = vadd.f32 %v1706, %v1630
        %v1739 = vadd.f32 %v1707, %v1635
        %v1740 = vadd.f32 %v1708, %v1638
        %v1741 = vadd.f32 %v1709, %v1643
        %v1742 = vadd.f32 %v1710, %v1646
        %v1743 = vadd.f32 %v1711, %v1651
        %v1744 = vadd.f32 %v1712, %v1654
        %v1745 = vadd.f32 %v1713, %v1659
        %v1746 = vadd.f32 %v1714, %v1662
        %v1747 = vadd.f32 %v1715, %v1667
        %v1748 = vadd.f32 %v1716, %v1670
        %v1749 = vadd.f32 %v1717, %v1675
        %v1750 = vadd.f32 %v1718, %v1678
        %v1751 = vadd.f32 %v1719, %v1683
        %v1752 = vadd.f32 %v1720, %v1686
        %1753 = vst [vmem:[#allocation2] sm:$0xff] %v1721
        %1754 = vst [vmem:[#allocation2 + $0x8] sm:$0xff] %v1722
        %1755 = vst [vmem:[#allocation2 + $0x10] sm:$0xff] %v1723
        %1756 = vst [vmem:[#allocation2 + $0x18] sm:$0xff] %v1724
        %1757 = vst [vmem:[#allocation2 + $0x20] sm:$0xff] %v1725
        %1758 = vst [vmem:[#allocation2 + $0x28] sm:$0xff] %v1726
        %1759 = vst [vmem:[#allocation2 + $0x30] sm:$0xff] %v1727
        %1760 = vst [vmem:[#allocation2 + $0x38] sm:$0xff] %v1728
        %1761 = vst [vmem:[#allocation2 + $0x40] sm:$0xff] %v1729
        %1762 = vst [vmem:[#allocation2 + $0x48] sm:$0xff] %v1730
        %1763 = vst [vmem:[#allocation2 + $0x50] sm:$0xff] %v1731
        %1764 = vst [vmem:[#allocation2 + $0x58] sm:$0xff] %v1732
        %1765 = vst [vmem:[#allocation2 + $0x60] sm:$0xff] %v1733
        %1766 = vst [vmem:[#allocation2 + $0x68] sm:$0xff] %v1734
        %1767 = vst [vmem:[#allocation2 + $0x70] sm:$0xff] %v1735
        %1768 = vst [vmem:[#allocation2 + $0x78] sm:$0xff] %v1736
        %1769 = vst [vmem:[#allocation2 + $0x80] sm:$0xff] %v1737
        %1770 = vst [vmem:[#allocation2 + $0x88] sm:$0xff] %v1738
        %1771 = vst [vmem:[#allocation2 + $0x90] sm:$0xff] %v1739
        %1772 = vst [vmem:[#allocation2 + $0x98] sm:$0xff] %v1740
        %1773 = vst [vmem:[#allocation2 + $0xa0] sm:$0xff] %v1741
        %1774 = vst [vmem:[#allocation2 + $0xa8] sm:$0xff] %v1742
        %1775 = vst [vmem:[#allocation2 + $0xb0] sm:$0xff] %v1743
        %1776 = vst [vmem:[#allocation2 + $0xb8] sm:$0xff] %v1744
        %1777 = vst [vmem:[#allocation2 + $0xc0] sm:$0xff] %v1745
        %1778 = vst [vmem:[#allocation2 + $0xc8] sm:$0xff] %v1746
        %1779 = vst [vmem:[#allocation2 + $0xd0] sm:$0xff] %v1747
        %1780 = vst [vmem:[#allocation2 + $0xd8] sm:$0xff] %v1748
        %1781 = vst [vmem:[#allocation2 + $0xe0] sm:$0xff] %v1749
        %1782 = vst [vmem:[#allocation2 + $0xe8] sm:$0xff] %v1750
        %1783 = vst [vmem:[#allocation2 + $0xf0] sm:$0xff] %v1751
        %1784 = vst [vmem:[#allocation2 + $0xf8] sm:$0xff] %v1752
        %s1785 = scalar_lea.vmem %s1, 6
        %v1786 = vld [vmem:[%s1785] sm:$0x3]
        %v1789 = vunpack.c.l.b16 %v218
        %v1790 = vunpack.c.l.b16 %v219
        %v1791 = vpack.c.b16 %v1790, %v1789
        %v1793 = vsel %vm305, %v1791, 0
        %v1796 = vsel %vm354, %v1786, 0
        %1798 = vmatprep.subr.bf16.mxu0 0
        %1799 = vmatpush1.bf16.msra.mxu0 %v1796
        %1800 = vmatprep.subr.bf16.mxu0 0
        %1801 = vmatpush1.bf16.msra.mxu0 0
        %1802 = vmatprep.subr.bf16.mxu0 0
        %1803 = vmatpush1.bf16.msra.mxu0 0
        %1804 = vmatprep.subr.bf16.mxu0 0
        %1805 = vmatpush1.bf16.msra.mxu0 0
        %1806 = vmatprep.subr.bf16.mxu0 0
        %1807 = vmatpush1.bf16.msra.mxu0 0
        %1808 = vmatprep.subr.bf16.mxu0 0
        %1809 = vmatpush1.bf16.msra.mxu0 0
        %1810 = vmatprep.subr.bf16.mxu0 0
        %1811 = vmatpush1.bf16.msra.mxu0 0
        %1812 = vmatprep.subr.bf16.mxu0 0
        %1813 = vmatpush1.bf16.msra.mxu0 0
        %1814 = vmatprep.subr.bf16.mxu0 0
        %1815 = vmatpush1.bf16.msra.mxu0 0
        %1816 = vmatprep.subr.bf16.mxu0 0
        %1817 = vmatpush1.bf16.msra.mxu0 0
        %1818 = vmatprep.subr.bf16.mxu0 0
        %1819 = vmatpush1.bf16.msra.mxu0 0
        %1820 = vmatprep.subr.bf16.mxu0 0
        %1821 = vmatpush1.bf16.msra.mxu0 0
        %1822 = vmatprep.subr.bf16.mxu0 0
        %1823 = vmatpush1.bf16.msra.mxu0 0
        %1824 = vmatprep.subr.bf16.mxu0 0
        %1825 = vmatpush1.bf16.msra.mxu0 0
        %1826 = vmatprep.subr.bf16.mxu0 0
        %1827 = vmatpush1.bf16.msra.mxu0 0
        %1828 = vmatprep.subr.bf16.mxu0 0
        %1829 = vmatpush1.bf16.msra.mxu0 0
        %1830 = vmatprep.mubr.bf16.mxu0 0
        %1831 = vmatmul.mubr.bf16.gmra.mrb[0].mxu0 %v310
        %v1832 = vpop.f32.mrb[0].mxu0
        %v1833 = vadd.f32 0.0, %v1832
        %v1834 = vpop.f32.mrb[0].mxu0
        %v1835 = vpop.f32.mrb[0].mxu0
        %v1836 = vadd.f32 0.0, %v1835
        %v1837 = vpop.f32.mrb[0].mxu0
        %1838 = vmatprep.mubr.bf16.mxu0 0
        %1839 = vmatmul.mubr.bf16.gmra.mrb[0].mxu0 %v313
        %v1840 = vpop.f32.mrb[0].mxu0
        %v1841 = vadd.f32 0.0, %v1840
        %v1842 = vpop.f32.mrb[0].mxu0
        %v1843 = vpop.f32.mrb[0].mxu0
        %v1844 = vadd.f32 0.0, %v1843
        %v1845 = vpop.f32.mrb[0].mxu0
        %1846 = vmatprep.mubr.bf16.mxu0 0
        %1847 = vmatmul.mubr.bf16.gmra.mrb[0].mxu0 %v316
        %v1848 = vpop.f32.mrb[0].mxu0
        %v1849 = vadd.f32 0.0, %v1848
        %v1850 = vpop.f32.mrb[0].mxu0
        %v1851 = vpop.f32.mrb[0].mxu0
        %v1852 = vadd.f32 0.0, %v1851
        %v1853 = vpop.f32.mrb[0].mxu0
        %1854 = vmatprep.mubr.bf16.mxu0 0
        %1855 = vmatmul.mubr.bf16.gmra.mrb[0].mxu0 %v319
        %v1856 = vpop.f32.mrb[0].mxu0
        %v1857 = vadd.f32 0.0, %v1856
        %v1858 = vpop.f32.mrb[0].mxu0
        %v1859 = vpop.f32.mrb[0].mxu0
        %v1860 = vadd.f32 0.0, %v1859
        %v1861 = vpop.f32.mrb[0].mxu0
        %1862 = vmatprep.mubr.bf16.mxu0 0
        %1863 = vmatmul.mubr.bf16.gmra.mrb[0].mxu0 %v322
        %v1864 = vpop.f32.mrb[0].mxu0
        %v1865 = vadd.f32 0.0, %v1864
        %v1866 = vpop.f32.mrb[0].mxu0
        %v1867 = vpop.f32.mrb[0].mxu0
        %v1868 = vadd.f32 0.0, %v1867
        %v1869 = vpop.f32.mrb[0].mxu0
        %1870 = vmatprep.mubr.bf16.mxu0 0
        %1871 = vmatmul.mubr.bf16.gmra.mrb[0].mxu0 %v325
        %v1872 = vpop.f32.mrb[0].mxu0
        %v1873 = vadd.f32 0.0, %v1872
        %v1874 = vpop.f32.mrb[0].mxu0
        %v1875 = vpop.f32.mrb[0].mxu0
        %v1876 = vadd.f32 0.0, %v1875
        %v1877 = vpop.f32.mrb[0].mxu0
        %1878 = vmatprep.mubr.bf16.mxu0 0
        %1879 = vmatmul.mubr.bf16.gmra.mrb[0].mxu0 %v328
        %v1880 = vpop.f32.mrb[0].mxu0
        %v1881 = vadd.f32 0.0, %v1880
        %v1882 = vpop.f32.mrb[0].mxu0
        %v1883 = vpop.f32.mrb[0].mxu0
        %v1884 = vadd.f32 0.0, %v1883
        %v1885 = vpop.f32.mrb[0].mxu0
        %1886 = vmatprep.mubr.bf16.mxu0 0
        %1887 = vmatmul.mubr.bf16.gmra.mrb[0].mxu0 %v331
        %v1888 = vpop.f32.mrb[0].mxu0
        %v1889 = vadd.f32 0.0, %v1888
        %v1890 = vpop.f32.mrb[0].mxu0
        %v1891 = vpop.f32.mrb[0].mxu0
        %v1892 = vadd.f32 0.0, %v1891
        %v1893 = vpop.f32.mrb[0].mxu0
        %1894 = vmatprep.mubr.bf16.mxu0 0
        %1895 = vmatmul.mubr.bf16.gmra.mrb[0].mxu0 %v334
        %v1896 = vpop.f32.mrb[0].mxu0
        %v1897 = vadd.f32 0.0, %v1896
        %v1898 = vpop.f32.mrb[0].mxu0
        %v1899 = vpop.f32.mrb[0].mxu0
        %v1900 = vadd.f32 0.0, %v1899
        %v1901 = vpop.f32.mrb[0].mxu0
        %1902 = vmatprep.mubr.bf16.mxu0 0
        %1903 = vmatmul.mubr.bf16.gmra.mrb[0].mxu0 %v337
        %v1904 = vpop.f32.mrb[0].mxu0
        %v1905 = vadd.f32 0.0, %v1904
        %v1906 = vpop.f32.mrb[0].mxu0
        %v1907 = vpop.f32.mrb[0].mxu0
        %v1908 = vadd.f32 0.0, %v1907
        %v1909 = vpop.f32.mrb[0].mxu0
        %1910 = vmatprep.mubr.bf16.mxu0 0
        %1911 = vmatmul.mubr.bf16.gmra.mrb[0].mxu0 %v340
        %v1912 = vpop.f32.mrb[0].mxu0
        %v1913 = vadd.f32 0.0, %v1912
        %v1914 = vpop.f32.mrb[0].mxu0
        %v1915 = vpop.f32.mrb[0].mxu0
        %v1916 = vadd.f32 0.0, %v1915
        %v1917 = vpop.f32.mrb[0].mxu0
        %1918 = vmatprep.mubr.bf16.mxu0 0
        %1919 = vmatmul.mubr.bf16.gmra.mrb[0].mxu0 %v343
        %v1920 = vpop.f32.mrb[0].mxu0
        %v1921 = vadd.f32 0.0, %v1920
        %v1922 = vpop.f32.mrb[0].mxu0
        %v1923 = vpop.f32.mrb[0].mxu0
        %v1924 = vadd.f32 0.0, %v1923
        %v1925 = vpop.f32.mrb[0].mxu0
        %1926 = vmatprep.mubr.bf16.mxu0 0
        %1927 = vmatmul.mubr.bf16.gmra.mrb[0].mxu0 %v346
        %v1928 = vpop.f32.mrb[0].mxu0
        %v1929 = vadd.f32 0.0, %v1928
        %v1930 = vpop.f32.mrb[0].mxu0
        %v1931 = vpop.f32.mrb[0].mxu0
        %v1932 = vadd.f32 0.0, %v1931
        %v1933 = vpop.f32.mrb[0].mxu0
        %1934 = vmatprep.mubr.bf16.mxu0 0
        %1935 = vmatmul.mubr.bf16.gmra.mrb[0].mxu0 %v349
        %v1936 = vpop.f32.mrb[0].mxu0
        %v1937 = vadd.f32 0.0, %v1936
        %v1938 = vpop.f32.mrb[0].mxu0
        %v1939 = vpop.f32.mrb[0].mxu0
        %v1940 = vadd.f32 0.0, %v1939
        %v1941 = vpop.f32.mrb[0].mxu0
        %1942 = vmatprep.mubr.bf16.mxu0 0
        %1943 = vmatmul.mubr.bf16.gmra.mrb[0].mxu0 %v352
        %v1944 = vpop.f32.mrb[0].mxu0
        %v1945 = vadd.f32 0.0, %v1944
        %v1946 = vpop.f32.mrb[0].mxu0
        %v1947 = vpop.f32.mrb[0].mxu0
        %v1948 = vadd.f32 0.0, %v1947
        %v1949 = vpop.f32.mrb[0].mxu0
        %1950 = vmatprep.mubr.bf16.mxu0 0
        %1951 = vmatmul.mubr.bf16.gmra.mrb[0].mxu0 %v1793
        %v1952 = vpop.f32.mrb[0].mxu0
        %v1953 = vadd.f32 0.0, %v1952
        %v1954 = vpop.f32.mrb[0].mxu0
        %v1955 = vpop.f32.mrb[0].mxu0
        %v1956 = vadd.f32 0.0, %v1955
        %v1957 = vpop.f32.mrb[0].mxu0
        %1958 = vdwg.mxu0
        %v1959 = vld [vmem:[#allocation2] sm:$0xff]
        %v1960 = vld [vmem:[#allocation2 + $0x8] sm:$0xff]
        %v1961 = vld [vmem:[#allocation2 + $0x10] sm:$0xff]
        %v1962 = vld [vmem:[#allocation2 + $0x18] sm:$0xff]
        %v1963 = vld [vmem:[#allocation2 + $0x20] sm:$0xff]
        %v1964 = vld [vmem:[#allocation2 + $0x28] sm:$0xff]
        %v1965 = vld [vmem:[#allocation2 + $0x30] sm:$0xff]
        %v1966 = vld [vmem:[#allocation2 + $0x38] sm:$0xff]
        %v1967 = vld [vmem:[#allocation2 + $0x40] sm:$0xff]
        %v1968 = vld [vmem:[#allocation2 + $0x48] sm:$0xff]
        %v1969 = vld [vmem:[#allocation2 + $0x50] sm:$0xff]
        %v1970 = vld [vmem:[#allocation2 + $0x58] sm:$0xff]
        %v1971 = vld [vmem:[#allocation2 + $0x60] sm:$0xff]
        %v1972 = vld [vmem:[#allocation2 + $0x68] sm:$0xff]
        %v1973 = vld [vmem:[#allocation2 + $0x70] sm:$0xff]
        %v1974 = vld [vmem:[#allocation2 + $0x78] sm:$0xff]
        %v1975 = vld [vmem:[#allocation2 + $0x80] sm:$0xff]
        %v1976 = vld [vmem:[#allocation2 + $0x88] sm:$0xff]
        %v1977 = vld [vmem:[#allocation2 + $0x90] sm:$0xff]
        %v1978 = vld [vmem:[#allocation2 + $0x98] sm:$0xff]
        %v1979 = vld [vmem:[#allocation2 + $0xa0] sm:$0xff]
        %v1980 = vld [vmem:[#allocation2 + $0xa8] sm:$0xff]
        %v1981 = vld [vmem:[#allocation2 + $0xb0] sm:$0xff]
        %v1982 = vld [vmem:[#allocation2 + $0xb8] sm:$0xff]
        %v1983 = vld [vmem:[#allocation2 + $0xc0] sm:$0xff]
        %v1984 = vld [vmem:[#allocation2 + $0xc8] sm:$0xff]
        %v1985 = vld [vmem:[#allocation2 + $0xd0] sm:$0xff]
        %v1986 = vld [vmem:[#allocation2 + $0xd8] sm:$0xff]
        %v1987 = vld [vmem:[#allocation2 + $0xe0] sm:$0xff]
        %v1988 = vld [vmem:[#allocation2 + $0xe8] sm:$0xff]
        %v1989 = vld [vmem:[#allocation2 + $0xf0] sm:$0xff]
        %v1990 = vld [vmem:[#allocation2 + $0xf8] sm:$0xff]
        %v1991 = vadd.f32 %v1959, %v1833
        %v1992 = vadd.f32 %v1960, %v1836
        %v1993 = vadd.f32 %v1961, %v1841
        %v1994 = vadd.f32 %v1962, %v1844
        %v1995 = vadd.f32 %v1963, %v1849
        %v1996 = vadd.f32 %v1964, %v1852
        %v1997 = vadd.f32 %v1965, %v1857
        %v1998 = vadd.f32 %v1966, %v1860
        %v1999 = vadd.f32 %v1967, %v1865
        %v2000 = vadd.f32 %v1968, %v1868
        %v2001 = vadd.f32 %v1969, %v1873
        %v2002 = vadd.f32 %v1970, %v1876
        %v2003 = vadd.f32 %v1971, %v1881
        %v2004 = vadd.f32 %v1972, %v1884
        %v2005 = vadd.f32 %v1973, %v1889
        %v2006 = vadd.f32 %v1974, %v1892
        %v2007 = vadd.f32 %v1975, %v1897
        %v2008 = vadd.f32 %v1976, %v1900
        %v2009 = vadd.f32 %v1977, %v1905
        %v2010 = vadd.f32 %v1978, %v1908
        %v2011 = vadd.f32 %v1979, %v1913
        %v2012 = vadd.f32 %v1980, %v1916
        %v2013 = vadd.f32 %v1981, %v1921
        %v2014 = vadd.f32 %v1982, %v1924
        %v2015 = vadd.f32 %v1983, %v1929
        %v2016 = vadd.f32 %v1984, %v1932
        %v2017 = vadd.f32 %v1985, %v1937
        %v2018 = vadd.f32 %v1986, %v1940
        %v2019 = vadd.f32 %v1987, %v1945
        %v2020 = vadd.f32 %v1988, %v1948
        %v2021 = vadd.f32 %v1989, %v1953
        %v2022 = vadd.f32 %v1990, %v1956
        %2023 = vst [vmem:[#allocation2] sm:$0xff] %v1991
        %2024 = vst [vmem:[#allocation2 + $0x8] sm:$0xff] %v1992
        %2025 = vst [vmem:[#allocation2 + $0x10] sm:$0xff] %v1993
        %2026 = vst [vmem:[#allocation2 + $0x18] sm:$0xff] %v1994
        %2027 = vst [vmem:[#allocation2 + $0x20] sm:$0xff] %v1995
        %2028 = vst [vmem:[#allocation2 + $0x28] sm:$0xff] %v1996
        %2029 = vst [vmem:[#allocation2 + $0x30] sm:$0xff] %v1997
        %2030 = vst [vmem:[#allocation2 + $0x38] sm:$0xff] %v1998
        %2031 = vst [vmem:[#allocation2 + $0x40] sm:$0xff] %v1999
        %2032 = vst [vmem:[#allocation2 + $0x48] sm:$0xff] %v2000
        %2033 = vst [vmem:[#allocation2 + $0x50] sm:$0xff] %v2001
        %2034 = vst [vmem:[#allocation2 + $0x58] sm:$0xff] %v2002
        %2035 = vst [vmem:[#allocation2 + $0x60] sm:$0xff] %v2003
        %2036 = vst [vmem:[#allocation2 + $0x68] sm:$0xff] %v2004
        %2037 = vst [vmem:[#allocation2 + $0x70] sm:$0xff] %v2005
        %2038 = vst [vmem:[#allocation2 + $0x78] sm:$0xff] %v2006
        %2039 = vst [vmem:[#allocation2 + $0x80] sm:$0xff] %v2007
        %2040 = vst [vmem:[#allocation2 + $0x88] sm:$0xff] %v2008
        %2041 = vst [vmem:[#allocation2 + $0x90] sm:$0xff] %v2009
        %2042 = vst [vmem:[#allocation2 + $0x98] sm:$0xff] %v2010
        %2043 = vst [vmem:[#allocation2 + $0xa0] sm:$0xff] %v2011
        %2044 = vst [vmem:[#allocation2 + $0xa8] sm:$0xff] %v2012
        %2045 = vst [vmem:[#allocation2 + $0xb0] sm:$0xff] %v2013
        %2046 = vst [vmem:[#allocation2 + $0xb8] sm:$0xff] %v2014
        %2047 = vst [vmem:[#allocation2 + $0xc0] sm:$0xff] %v2015
        %2048 = vst [vmem:[#allocation2 + $0xc8] sm:$0xff] %v2016
        %2049 = vst [vmem:[#allocation2 + $0xd0] sm:$0xff] %v2017
        %2050 = vst [vmem:[#allocation2 + $0xd8] sm:$0xff] %v2018
        %2051 = vst [vmem:[#allocation2 + $0xe0] sm:$0xff] %v2019
        %2052 = vst [vmem:[#allocation2 + $0xe8] sm:$0xff] %v2020
        %2053 = vst [vmem:[#allocation2 + $0xf0] sm:$0xff] %v2021
        %2054 = vst [vmem:[#allocation2 + $0xf8] sm:$0xff] %v2022
        %v2056 = vshrl.u32 %v218, 16
        %v2058 = vrot.slane %v2056, 4
        %v2059 = vshll.u32 %v218, 16
        %v2061 = vrot.slane %v2059, 5
        %v2062 = vor.u32 %v2058, %v2061
        %v2063 = vrot.slane %v2062, 4
        %v2065 = vshll.u32 %v219, 16
        %v2067 = vrot.slane %v2065, 5
        %v2068 = vsel %vm553, %v2063, %v2067
        %v2069 = vshrl.u32 %v219, 16
        %v2071 = vrot.slane %v2069, 4
        %v2072 = vor.u32 %v2071, %v2067
        %v2073 = vrot.slane %v2072, 4
        %v2075 = vshll.u32 %v220, 16
        %v2077 = vrot.slane %v2075, 5
        %v2078 = vsel %vm553, %v2073, %v2077
        %s2079 = scalar_lea.vmem %s1, 8
        %v2080 = vld [vmem:[%s2079] sm:$0x3]
        %v2081 = vunpack.c.l.b16 %v2068
        %v2082 = vunpack.c.l.b16 %v2078
        %v2083 = vpack.c.b16 %v2082, %v2081
        %v2085 = vsel %vm305, %v2083, 0
        %v2088 = vsel %vm354, %v2080, 0
        %2090 = vmatprep.subr.bf16.mxu0 0
        %2091 = vmatpush1.bf16.msra.mxu0 %v2088
        %2092 = vmatprep.subr.bf16.mxu0 0
        %2093 = vmatpush1.bf16.msra.mxu0 0
        %2094 = vmatprep.subr.bf16.mxu0 0
        %2095 = vmatpush1.bf16.msra.mxu0 0
        %2096 = vmatprep.subr.bf16.mxu0 0
        %2097 = vmatpush1.bf16.msra.mxu0 0
        %2098 = vmatprep.subr.bf16.mxu0 0
        %2099 = vmatpush1.bf16.msra.mxu0 0
        %2100 = vmatprep.subr.bf16.mxu0 0
        %2101 = vmatpush1.bf16.msra.mxu0 0
        %2102 = vmatprep.subr.bf16.mxu0 0
        %2103 = vmatpush1.bf16.msra.mxu0 0
        %2104 = vmatprep.subr.bf16.mxu0 0
        %2105 = vmatpush1.bf16.msra.mxu0 0
        %2106 = vmatprep.subr.bf16.mxu0 0
        %2107 = vmatpush1.bf16.msra.mxu0 0
        %2108 = vmatprep.subr.bf16.mxu0 0
        %2109 = vmatpush1.bf16.msra.mxu0 0
        %2110 = vmatprep.subr.bf16.mxu0 0
        %2111 = vmatpush1.bf16.msra.mxu0 0
        %2112 = vmatprep.subr.bf16.mxu0 0
        %2113 = vmatpush1.bf16.msra.mxu0 0
        %2114 = vmatprep.subr.bf16.mxu0 0
        %2115 = vmatpush1.bf16.msra.mxu0 0
        %2116 = vmatprep.subr.bf16.mxu0 0
        %2117 = vmatpush1.bf16.msra.mxu0 0
        %2118 = vmatprep.subr.bf16.mxu0 0
        %2119 = vmatpush1.bf16.msra.mxu0 0
        %2120 = vmatprep.subr.bf16.mxu0 0
        %2121 = vmatpush1.bf16.msra.mxu0 0
        %2122 = vmatprep.mubr.bf16.mxu0 0
        %2123 = vmatmul.mubr.bf16.gmra.mrb[0].mxu0 %v992
        %v2124 = vpop.f32.mrb[0].mxu0
        %v2125 = vadd.f32 0.0, %v2124
        %v2126 = vpop.f32.mrb[0].mxu0
        %v2127 = vpop.f32.mrb[0].mxu0
        %v2128 = vadd.f32 0.0, %v2127
        %v2129 = vpop.f32.mrb[0].mxu0
        %2130 = vmatprep.mubr.bf16.mxu0 0
        %2131 = vmatmul.mubr.bf16.gmra.mrb[0].mxu0 %v995
        %v2132 = vpop.f32.mrb[0].mxu0
        %v2133 = vadd.f32 0.0, %v2132
        %v2134 = vpop.f32.mrb[0].mxu0
        %v2135 = vpop.f32.mrb[0].mxu0
        %v2136 = vadd.f32 0.0, %v2135
        %v2137 = vpop.f32.mrb[0].mxu0
        %2138 = vmatprep.mubr.bf16.mxu0 0
        %2139 = vmatmul.mubr.bf16.gmra.mrb[0].mxu0 %v998
        %v2140 = vpop.f32.mrb[0].mxu0
        %v2141 = vadd.f32 0.0, %v2140
        %v2142 = vpop.f32.mrb[0].mxu0
        %v2143 = vpop.f32.mrb[0].mxu0
        %v2144 = vadd.f32 0.0, %v2143
        %v2145 = vpop.f32.mrb[0].mxu0
        %2146 = vmatprep.mubr.bf16.mxu0 0
        %2147 = vmatmul.mubr.bf16.gmra.mrb[0].mxu0 %v1001
        %v2148 = vpop.f32.mrb[0].mxu0
        %v2149 = vadd.f32 0.0, %v2148
        %v2150 = vpop.f32.mrb[0].mxu0
        %v2151 = vpop.f32.mrb[0].mxu0
        %v2152 = vadd.f32 0.0, %v2151
        %v2153 = vpop.f32.mrb[0].mxu0
        %2154 = vmatprep.mubr.bf16.mxu0 0
        %2155 = vmatmul.mubr.bf16.gmra.mrb[0].mxu0 %v1004
        %v2156 = vpop.f32.mrb[0].mxu0
        %v2157 = vadd.f32 0.0, %v2156
        %v2158 = vpop.f32.mrb[0].mxu0
        %v2159 = vpop.f32.mrb[0].mxu0
        %v2160 = vadd.f32 0.0, %v2159
        %v2161 = vpop.f32.mrb[0].mxu0
        %2162 = vmatprep.mubr.bf16.mxu0 0
        %2163 = vmatmul.mubr.bf16.gmra.mrb[0].mxu0 %v1007
        %v2164 = vpop.f32.mrb[0].mxu0
        %v2165 = vadd.f32 0.0, %v2164
        %v2166 = vpop.f32.mrb[0].mxu0
        %v2167 = vpop.f32.mrb[0].mxu0
        %v2168 = vadd.f32 0.0, %v2167
        %v2169 = vpop.f32.mrb[0].mxu0
        %2170 = vmatprep.mubr.bf16.mxu0 0
        %2171 = vmatmul.mubr.bf16.gmra.mrb[0].mxu0 %v1010
        %v2172 = vpop.f32.mrb[0].mxu0
        %v2173 = vadd.f32 0.0, %v2172
        %v2174 = vpop.f32.mrb[0].mxu0
        %v2175 = vpop.f32.mrb[0].mxu0
        %v2176 = vadd.f32 0.0, %v2175
        %v2177 = vpop.f32.mrb[0].mxu0
        %2178 = vmatprep.mubr.bf16.mxu0 0
        %2179 = vmatmul.mubr.bf16.gmra.mrb[0].mxu0 %v1013
        %v2180 = vpop.f32.mrb[0].mxu0
        %v2181 = vadd.f32 0.0, %v2180
        %v2182 = vpop.f32.mrb[0].mxu0
        %v2183 = vpop.f32.mrb[0].mxu0
        %v2184 = vadd.f32 0.0, %v2183
        %v2185 = vpop.f32.mrb[0].mxu0
        %2186 = vmatprep.mubr.bf16.mxu0 0
        %2187 = vmatmul.mubr.bf16.gmra.mrb[0].mxu0 %v1016
        %v2188 = vpop.f32.mrb[0].mxu0
        %v2189 = vadd.f32 0.0, %v2188
        %v2190 = vpop.f32.mrb[0].mxu0
        %v2191 = vpop.f32.mrb[0].mxu0
        %v2192 = vadd.f32 0.0, %v2191
        %v2193 = vpop.f32.mrb[0].mxu0
        %2194 = vmatprep.mubr.bf16.mxu0 0
        %2195 = vmatmul.mubr.bf16.gmra.mrb[0].mxu0 %v1019
        %v2196 = vpop.f32.mrb[0].mxu0
        %v2197 = vadd.f32 0.0, %v2196
        %v2198 = vpop.f32.mrb[0].mxu0
        %v2199 = vpop.f32.mrb[0].mxu0
        %v2200 = vadd.f32 0.0, %v2199
        %v2201 = vpop.f32.mrb[0].mxu0
        %2202 = vmatprep.mubr.bf16.mxu0 0
        %2203 = vmatmul.mubr.bf16.gmra.mrb[0].mxu0 %v1022
        %v2204 = vpop.f32.mrb[0].mxu0
        %v2205 = vadd.f32 0.0, %v2204
        %v2206 = vpop.f32.mrb[0].mxu0
        %v2207 = vpop.f32.mrb[0].mxu0
        %v2208 = vadd.f32 0.0, %v2207
        %v2209 = vpop.f32.mrb[0].mxu0
        %2210 = vmatprep.mubr.bf16.mxu0 0
        %2211 = vmatmul.mubr.bf16.gmra.mrb[0].mxu0 %v1025
        %v2212 = vpop.f32.mrb[0].mxu0
        %v2213 = vadd.f32 0.0, %v2212
        %v2214 = vpop.f32.mrb[0].mxu0
        %v2215 = vpop.f32.mrb[0].mxu0
        %v2216 = vadd.f32 0.0, %v2215
        %v2217 = vpop.f32.mrb[0].mxu0
        %2218 = vmatprep.mubr.bf16.mxu0 0
        %2219 = vmatmul.mubr.bf16.gmra.mrb[0].mxu0 %v1028
        %v2220 = vpop.f32.mrb[0].mxu0
        %v2221 = vadd.f32 0.0, %v2220
        %v2222 = vpop.f32.mrb[0].mxu0
        %v2223 = vpop.f32.mrb[0].mxu0
        %v2224 = vadd.f32 0.0, %v2223
        %v2225 = vpop.f32.mrb[0].mxu0
        %2226 = vmatprep.mubr.bf16.mxu0 0
        %2227 = vmatmul.mubr.bf16.gmra.mrb[0].mxu0 %v1031
        %v2228 = vpop.f32.mrb[0].mxu0
        %v2229 = vadd.f32 0.0, %v2228
        %v2230 = vpop.f32.mrb[0].mxu0
        %v2231 = vpop.f32.mrb[0].mxu0
        %v2232 = vadd.f32 0.0, %v2231
        %v2233 = vpop.f32.mrb[0].mxu0
        %2234 = vmatprep.mubr.bf16.mxu0 0
        %2235 = vmatmul.mubr.bf16.gmra.mrb[0].mxu0 %v1034
        %v2236 = vpop.f32.mrb[0].mxu0
        %v2237 = vadd.f32 0.0, %v2236
        %v2238 = vpop.f32.mrb[0].mxu0
        %v2239 = vpop.f32.mrb[0].mxu0
        %v2240 = vadd.f32 0.0, %v2239
        %v2241 = vpop.f32.mrb[0].mxu0
        %2242 = vmatprep.mubr.bf16.mxu0 0
        %2243 = vmatmul.mubr.bf16.gmra.mrb[0].mxu0 %v2085
        %v2244 = vpop.f32.mrb[0].mxu0
        %v2245 = vadd.f32 0.0, %v2244
        %v2246 = vpop.f32.mrb[0].mxu0
        %v2247 = vpop.f32.mrb[0].mxu0
        %v2248 = vadd.f32 0.0, %v2247
        %v2249 = vpop.f32.mrb[0].mxu0
        %2250 = vdwg.mxu0
        %v2251 = vld [vmem:[#allocation2] sm:$0xff]
        %v2252 = vld [vmem:[#allocation2 + $0x8] sm:$0xff]
        %v2253 = vld [vmem:[#allocation2 + $0x10] sm:$0xff]
        %v2254 = vld [vmem:[#allocation2 + $0x18] sm:$0xff]
        %v2255 = vld [vmem:[#allocation2 + $0x20] sm:$0xff]
        %v2256 = vld [vmem:[#allocation2 + $0x28] sm:$0xff]
        %v2257 = vld [vmem:[#allocation2 + $0x30] sm:$0xff]
        %v2258 = vld [vmem:[#allocation2 + $0x38] sm:$0xff]
        %v2259 = vld [vmem:[#allocation2 + $0x40] sm:$0xff]
        %v2260 = vld [vmem:[#allocation2 + $0x48] sm:$0xff]
        %v2261 = vld [vmem:[#allocation2 + $0x50] sm:$0xff]
        %v2262 = vld [vmem:[#allocation2 + $0x58] sm:$0xff]
        %v2263 = vld [vmem:[#allocation2 + $0x60] sm:$0xff]
        %v2264 = vld [vmem:[#allocation2 + $0x68] sm:$0xff]
        %v2265 = vld [vmem:[#allocation2 + $0x70] sm:$0xff]
        %v2266 = vld [vmem:[#allocation2 + $0x78] sm:$0xff]
        %v2267 = vld [vmem:[#allocation2 + $0x80] sm:$0xff]
        %v2268 = vld [vmem:[#allocation2 + $0x88] sm:$0xff]
        %v2269 = vld [vmem:[#allocation2 + $0x90] sm:$0xff]
        %v2270 = vld [vmem:[#allocation2 + $0x98] sm:$0xff]
        %v2271 = vld [vmem:[#allocation2 + $0xa0] sm:$0xff]
        %v2272 = vld [vmem:[#allocation2 + $0xa8] sm:$0xff]
        %v2273 = vld [vmem:[#allocation2 + $0xb0] sm:$0xff]
        %v2274 = vld [vmem:[#allocation2 + $0xb8] sm:$0xff]
        %v2275 = vld [vmem:[#allocation2 + $0xc0] sm:$0xff]
        %v2276 = vld [vmem:[#allocation2 + $0xc8] sm:$0xff]
        %v2277 = vld [vmem:[#allocation2 + $0xd0] sm:$0xff]
        %v2278 = vld [vmem:[#allocation2 + $0xd8] sm:$0xff]
        %v2279 = vld [vmem:[#allocation2 + $0xe0] sm:$0xff]
        %v2280 = vld [vmem:[#allocation2 + $0xe8] sm:$0xff]
        %v2281 = vld [vmem:[#allocation2 + $0xf0] sm:$0xff]
        %v2282 = vld [vmem:[#allocation2 + $0xf8] sm:$0xff]
        %v2283 = vadd.f32 %v2251, %v2125
        %v2284 = vadd.f32 %v2252, %v2128
        %v2285 = vadd.f32 %v2253, %v2133
        %v2286 = vadd.f32 %v2254, %v2136
        %v2287 = vadd.f32 %v2255, %v2141
        %v2288 = vadd.f32 %v2256, %v2144
        %v2289 = vadd.f32 %v2257, %v2149
        %v2290 = vadd.f32 %v2258, %v2152
        %v2291 = vadd.f32 %v2259, %v2157
        %v2292 = vadd.f32 %v2260, %v2160
        %v2293 = vadd.f32 %v2261, %v2165
        %v2294 = vadd.f32 %v2262, %v2168
        %v2295 = vadd.f32 %v2263, %v2173
        %v2296 = vadd.f32 %v2264, %v2176
        %v2297 = vadd.f32 %v2265, %v2181
        %v2298 = vadd.f32 %v2266, %v2184
        %v2299 = vadd.f32 %v2267, %v2189
        %v2300 = vadd.f32 %v2268, %v2192
        %v2301 = vadd.f32 %v2269, %v2197
        %v2302 = vadd.f32 %v2270, %v2200
        %v2303 = vadd.f32 %v2271, %v2205
        %v2304 = vadd.f32 %v2272, %v2208
        %v2305 = vadd.f32 %v2273, %v2213
        %v2306 = vadd.f32 %v2274, %v2216
        %v2307 = vadd.f32 %v2275, %v2221
        %v2308 = vadd.f32 %v2276, %v2224
        %v2309 = vadd.f32 %v2277, %v2229
        %v2310 = vadd.f32 %v2278, %v2232
        %v2311 = vadd.f32 %v2279, %v2237
        %v2312 = vadd.f32 %v2280, %v2240
        %v2313 = vadd.f32 %v2281, %v2245
        %v2314 = vadd.f32 %v2282, %v2248
        %2315 = vst [vmem:[#allocation2] sm:$0xff] %v2283
        %2316 = vst [vmem:[#allocation2 + $0x8] sm:$0xff] %v2284
        %2317 = vst [vmem:[#allocation2 + $0x10] sm:$0xff] %v2285
        %2318 = vst [vmem:[#allocation2 + $0x18] sm:$0xff] %v2286
        %2319 = vst [vmem:[#allocation2 + $0x20] sm:$0xff] %v2287
        %2320 = vst [vmem:[#allocation2 + $0x28] sm:$0xff] %v2288
        %2321 = vst [vmem:[#allocation2 + $0x30] sm:$0xff] %v2289
        %2322 = vst [vmem:[#allocation2 + $0x38] sm:$0xff] %v2290
        %2323 = vst [vmem:[#allocation2 + $0x40] sm:$0xff] %v2291
        %2324 = vst [vmem:[#allocation2 + $0x48] sm:$0xff] %v2292
        %2325 = vst [vmem:[#allocation2 + $0x50] sm:$0xff] %v2293
        %2326 = vst [vmem:[#allocation2 + $0x58] sm:$0xff] %v2294
        %2327 = vst [vmem:[#allocation2 + $0x60] sm:$0xff] %v2295
        %2328 = vst [vmem:[#allocation2 + $0x68] sm:$0xff] %v2296
        %2329 = vst [vmem:[#allocation2 + $0x70] sm:$0xff] %v2297
        %2330 = vst [vmem:[#allocation2 + $0x78] sm:$0xff] %v2298
        %2331 = vst [vmem:[#allocation2 + $0x80] sm:$0xff] %v2299
        %2332 = vst [vmem:[#allocation2 + $0x88] sm:$0xff] %v2300
        %2333 = vst [vmem:[#allocation2 + $0x90] sm:$0xff] %v2301
        %2334 = vst [vmem:[#allocation2 + $0x98] sm:$0xff] %v2302
        %2335 = vst [vmem:[#allocation2 + $0xa0] sm:$0xff] %v2303
        %2336 = vst [vmem:[#allocation2 + $0xa8] sm:$0xff] %v2304
        %2337 = vst [vmem:[#allocation2 + $0xb0] sm:$0xff] %v2305
        %2338 = vst [vmem:[#allocation2 + $0xb8] sm:$0xff] %v2306
        %2339 = vst [vmem:[#allocation2 + $0xc0] sm:$0xff] %v2307
        %2340 = vst [vmem:[#allocation2 + $0xc8] sm:$0xff] %v2308
        %2341 = vst [vmem:[#allocation2 + $0xd0] sm:$0xff] %v2309
        %2342 = vst [vmem:[#allocation2 + $0xd8] sm:$0xff] %v2310
        %2343 = vst [vmem:[#allocation2 + $0xe0] sm:$0xff] %v2311
        %2344 = vst [vmem:[#allocation2 + $0xe8] sm:$0xff] %v2312
        %2345 = vst [vmem:[#allocation2 + $0xf0] sm:$0xff] %v2313
        %2346 = vst [vmem:[#allocation2 + $0xf8] sm:$0xff] %v2314
        %v2348 = vrot.slane %v218, 5
        %v2349 = vrot.slane %v2348, 4
        %v2350 = vrot.slane %v219, 5
        %v2351 = vsel %vm1314, %v2349, %v2350
        %v2352 = vrot.slane %v2350, 4
        %v2353 = vrot.slane %v220, 5
        %v2354 = vsel %vm1314, %v2352, %v2353
        %s2355 = scalar_lea.vmem %s1, 10
        %v2356 = vld [vmem:[%s2355] sm:$0x3]
        %v2357 = vunpack.c.l.b16 %v2351
        %v2358 = vunpack.c.l.b16 %v2354
        %v2359 = vpack.c.b16 %v2358, %v2357
        %v2361 = vsel %vm305, %v2359, 0
        %v2364 = vsel %vm354, %v2356, 0
        %2366 = vmatprep.subr.bf16.mxu0 0
        %2367 = vmatpush1.bf16.msra.mxu0 %v2364
        %2368 = vmatprep.subr.bf16.mxu0 0
        %2369 = vmatpush1.bf16.msra.mxu0 0
        %2370 = vmatprep.subr.bf16.mxu0 0
        %2371 = vmatpush1.bf16.msra.mxu0 0
        %2372 = vmatprep.subr.bf16.mxu0 0
        %2373 = vmatpush1.bf16.msra.mxu0 0
        %2374 = vmatprep.subr.bf16.mxu0 0
        %2375 = vmatpush1.bf16.msra.mxu0 0
        %2376 = vmatprep.subr.bf16.mxu0 0
        %2377 = vmatpush1.bf16.msra.mxu0 0
        %2378 = vmatprep.subr.bf16.mxu0 0
        %2379 = vmatpush1.bf16.msra.mxu0 0
        %2380 = vmatprep.subr.bf16.mxu0 0
        %2381 = vmatpush1.bf16.msra.mxu0 0
        %2382 = vmatprep.subr.bf16.mxu0 0
        %2383 = vmatpush1.bf16.msra.mxu0 0
        %2384 = vmatprep.subr.bf16.mxu0 0
        %2385 = vmatpush1.bf16.msra.mxu0 0
        %2386 = vmatprep.subr.bf16.mxu0 0
        %2387 = vmatpush1.bf16.msra.mxu0 0
        %2388 = vmatprep.subr.bf16.mxu0 0
        %2389 = vmatpush1.bf16.msra.mxu0 0
        %2390 = vmatprep.subr.bf16.mxu0 0
        %2391 = vmatpush1.bf16.msra.mxu0 0
        %2392 = vmatprep.subr.bf16.mxu0 0
        %2393 = vmatpush1.bf16.msra.mxu0 0
        %2394 = vmatprep.subr.bf16.mxu0 0
        %2395 = vmatpush1.bf16.msra.mxu0 0
        %2396 = vmatprep.subr.bf16.mxu0 0
        %2397 = vmatpush1.bf16.msra.mxu0 0
        %2398 = vmatprep.mubr.bf16.mxu0 0
        %2399 = vmatmul.mubr.bf16.gmra.mrb[0].mxu0 %v1481
        %v2400 = vpop.f32.mrb[0].mxu0
        %v2401 = vadd.f32 0.0, %v2400
        %v2402 = vpop.f32.mrb[0].mxu0
        %v2403 = vpop.f32.mrb[0].mxu0
        %v2404 = vadd.f32 0.0, %v2403
        %v2405 = vpop.f32.mrb[0].mxu0
        %2406 = vmatprep.mubr.bf16.mxu0 0
        %2407 = vmatmul.mubr.bf16.gmra.mrb[0].mxu0 %v1484
        %v2408 = vpop.f32.mrb[0].mxu0
        %v2409 = vadd.f32 0.0, %v2408
        %v2410 = vpop.f32.mrb[0].mxu0
        %v2411 = vpop.f32.mrb[0].mxu0
        %v2412 = vadd.f32 0.0, %v2411
        %v2413 = vpop.f32.mrb[0].mxu0
        %2414 = vmatprep.mubr.bf16.mxu0 0
        %2415 = vmatmul.mubr.bf16.gmra.mrb[0].mxu0 %v1487
        %v2416 = vpop.f32.mrb[0].mxu0
        %v2417 = vadd.f32 0.0, %v2416
        %v2418 = vpop.f32.mrb[0].mxu0
        %v2419 = vpop.f32.mrb[0].mxu0
        %v2420 = vadd.f32 0.0, %v2419
        %v2421 = vpop.f32.mrb[0].mxu0
        %2422 = vmatprep.mubr.bf16.mxu0 0
        %2423 = vmatmul.mubr.bf16.gmra.mrb[0].mxu0 %v1490
        %v2424 = vpop.f32.mrb[0].mxu0
        %v2425 = vadd.f32 0.0, %v2424
        %v2426 = vpop.f32.mrb[0].mxu0
        %v2427 = vpop.f32.mrb[0].mxu0
        %v2428 = vadd.f32 0.0, %v2427
        %v2429 = vpop.f32.mrb[0].mxu0
        %2430 = vmatprep.mubr.bf16.mxu0 0
        %2431 = vmatmul.mubr.bf16.gmra.mrb[0].mxu0 %v1493
        %v2432 = vpop.f32.mrb[0].mxu0
        %v2433 = vadd.f32 0.0, %v2432
        %v2434 = vpop.f32.mrb[0].mxu0
        %v2435 = vpop.f32.mrb[0].mxu0
        %v2436 = vadd.f32 0.0, %v2435
        %v2437 = vpop.f32.mrb[0].mxu0
        %2438 = vmatprep.mubr.bf16.mxu0 0
        %2439 = vmatmul.mubr.bf16.gmra.mrb[0].mxu0 %v1496
        %v2440 = vpop.f32.mrb[0].mxu0
        %v2441 = vadd.f32 0.0, %v2440
        %v2442 = vpop.f32.mrb[0].mxu0
        %v2443 = vpop.f32.mrb[0].mxu0
        %v2444 = vadd.f32 0.0, %v2443
        %v2445 = vpop.f32.mrb[0].mxu0
        %2446 = vmatprep.mubr.bf16.mxu0 0
        %2447 = vmatmul.mubr.bf16.gmra.mrb[0].mxu0 %v1499
        %v2448 = vpop.f32.mrb[0].mxu0
        %v2449 = vadd.f32 0.0, %v2448
        %v2450 = vpop.f32.mrb[0].mxu0
        %v2451 = vpop.f32.mrb[0].mxu0
        %v2452 = vadd.f32 0.0, %v2451
        %v2453 = vpop.f32.mrb[0].mxu0
        %2454 = vmatprep.mubr.bf16.mxu0 0
        %2455 = vmatmul.mubr.bf16.gmra.mrb[0].mxu0 %v1502
        %v2456 = vpop.f32.mrb[0].mxu0
        %v2457 = vadd.f32 0.0, %v2456
        %v2458 = vpop.f32.mrb[0].mxu0
        %v2459 = vpop.f32.mrb[0].mxu0
        %v2460 = vadd.f32 0.0, %v2459
        %v2461 = vpop.f32.mrb[0].mxu0
        %2462 = vmatprep.mubr.bf16.mxu0 0
        %2463 = vmatmul.mubr.bf16.gmra.mrb[0].mxu0 %v1505
        %v2464 = vpop.f32.mrb[0].mxu0
        %v2465 = vadd.f32 0.0, %v2464
        %v2466 = vpop.f32.mrb[0].mxu0
        %v2467 = vpop.f32.mrb[0].mxu0
        %v2468 = vadd.f32 0.0, %v2467
        %v2469 = vpop.f32.mrb[0].mxu0
        %2470 = vmatprep.mubr.bf16.mxu0 0
        %2471 = vmatmul.mubr.bf16.gmra.mrb[0].mxu0 %v1508
        %v2472 = vpop.f32.mrb[0].mxu0
        %v2473 = vadd.f32 0.0, %v2472
        %v2474 = vpop.f32.mrb[0].mxu0
        %v2475 = vpop.f32.mrb[0].mxu0
        %v2476 = vadd.f32 0.0, %v2475
        %v2477 = vpop.f32.mrb[0].mxu0
        %2478 = vmatprep.mubr.bf16.mxu0 0
        %2479 = vmatmul.mubr.bf16.gmra.mrb[0].mxu0 %v1511
        %v2480 = vpop.f32.mrb[0].mxu0
        %v2481 = vadd.f32 0.0, %v2480
        %v2482 = vpop.f32.mrb[0].mxu0
        %v2483 = vpop.f32.mrb[0].mxu0
        %v2484 = vadd.f32 0.0, %v2483
        %v2485 = vpop.f32.mrb[0].mxu0
        %2486 = vmatprep.mubr.bf16.mxu0 0
        %2487 = vmatmul.mubr.bf16.gmra.mrb[0].mxu0 %v1514
        %v2488 = vpop.f32.mrb[0].mxu0
        %v2489 = vadd.f32 0.0, %v2488
        %v2490 = vpop.f32.mrb[0].mxu0
        %v2491 = vpop.f32.mrb[0].mxu0
        %v2492 = vadd.f32 0.0, %v2491
        %v2493 = vpop.f32.mrb[0].mxu0
        %2494 = vmatprep.mubr.bf16.mxu0 0
        %2495 = vmatmul.mubr.bf16.gmra.mrb[0].mxu0 %v1517
        %v2496 = vpop.f32.mrb[0].mxu0
        %v2497 = vadd.f32 0.0, %v2496
        %v2498 = vpop.f32.mrb[0].mxu0
        %v2499 = vpop.f32.mrb[0].mxu0
        %v2500 = vadd.f32 0.0, %v2499
        %v2501 = vpop.f32.mrb[0].mxu0
        %2502 = vmatprep.mubr.bf16.mxu0 0
        %2503 = vmatmul.mubr.bf16.gmra.mrb[0].mxu0 %v1520
        %v2504 = vpop.f32.mrb[0].mxu0
        %v2505 = vadd.f32 0.0, %v2504
        %v2506 = vpop.f32.mrb[0].mxu0
        %v2507 = vpop.f32.mrb[0].mxu0
        %v2508 = vadd.f32 0.0, %v2507
        %v2509 = vpop.f32.mrb[0].mxu0
        %2510 = vmatprep.mubr.bf16.mxu0 0
        %2511 = vmatmul.mubr.bf16.gmra.mrb[0].mxu0 %v1523
        %v2512 = vpop.f32.mrb[0].mxu0
        %v2513 = vadd.f32 0.0, %v2512
        %v2514 = vpop.f32.mrb[0].mxu0
        %v2515 = vpop.f32.mrb[0].mxu0
        %v2516 = vadd.f32 0.0, %v2515
        %v2517 = vpop.f32.mrb[0].mxu0
        %2518 = vmatprep.mubr.bf16.mxu0 0
        %2519 = vmatmul.mubr.bf16.gmra.mrb[0].mxu0 %v2361
        %v2520 = vpop.f32.mrb[0].mxu0
        %v2521 = vadd.f32 0.0, %v2520
        %v2522 = vpop.f32.mrb[0].mxu0
        %v2523 = vpop.f32.mrb[0].mxu0
        %v2524 = vadd.f32 0.0, %v2523
        %v2525 = vpop.f32.mrb[0].mxu0
        %2526 = vdwg.mxu0
        %v2527 = vld [vmem:[#allocation2] sm:$0xff]
        %v2528 = vld [vmem:[#allocation2 + $0x8] sm:$0xff]
        %v2529 = vld [vmem:[#allocation2 + $0x10] sm:$0xff]
        %v2530 = vld [vmem:[#allocation2 + $0x18] sm:$0xff]
        %v2531 = vld [vmem:[#allocation2 + $0x20] sm:$0xff]
        %v2532 = vld [vmem:[#allocation2 + $0x28] sm:$0xff]
        %v2533 = vld [vmem:[#allocation2 + $0x30] sm:$0xff]
        %v2534 = vld [vmem:[#allocation2 + $0x38] sm:$0xff]
        %v2535 = vld [vmem:[#allocation2 + $0x40] sm:$0xff]
        %v2536 = vld [vmem:[#allocation2 + $0x48] sm:$0xff]
        %v2537 = vld [vmem:[#allocation2 + $0x50] sm:$0xff]
        %v2538 = vld [vmem:[#allocation2 + $0x58] sm:$0xff]
        %v2539 = vld [vmem:[#allocation2 + $0x60] sm:$0xff]
        %v2540 = vld [vmem:[#allocation2 + $0x68] sm:$0xff]
        %v2541 = vld [vmem:[#allocation2 + $0x70] sm:$0xff]
        %v2542 = vld [vmem:[#allocation2 + $0x78] sm:$0xff]
        %v2543 = vld [vmem:[#allocation2 + $0x80] sm:$0xff]
        %v2544 = vld [vmem:[#allocation2 + $0x88] sm:$0xff]
        %v2545 = vld [vmem:[#allocation2 + $0x90] sm:$0xff]
        %v2546 = vld [vmem:[#allocation2 + $0x98] sm:$0xff]
        %v2547 = vld [vmem:[#allocation2 + $0xa0] sm:$0xff]
        %v2548 = vld [vmem:[#allocation2 + $0xa8] sm:$0xff]
        %v2549 = vld [vmem:[#allocation2 + $0xb0] sm:$0xff]
        %v2550 = vld [vmem:[#allocation2 + $0xb8] sm:$0xff]
        %v2551 = vld [vmem:[#allocation2 + $0xc0] sm:$0xff]
        %v2552 = vld [vmem:[#allocation2 + $0xc8] sm:$0xff]
        %v2553 = vld [vmem:[#allocation2 + $0xd0] sm:$0xff]
        %v2554 = vld [vmem:[#allocation2 + $0xd8] sm:$0xff]
        %v2555 = vld [vmem:[#allocation2 + $0xe0] sm:$0xff]
        %v2556 = vld [vmem:[#allocation2 + $0xe8] sm:$0xff]
        %v2557 = vld [vmem:[#allocation2 + $0xf0] sm:$0xff]
        %v2558 = vld [vmem:[#allocation2 + $0xf8] sm:$0xff]
        %v2559 = vadd.f32 %v2527, %v2401
        %v2560 = vadd.f32 %v2528, %v2404
        %v2561 = vadd.f32 %v2529, %v2409
        %v2562 = vadd.f32 %v2530, %v2412
        %v2563 = vadd.f32 %v2531, %v2417
        %v2564 = vadd.f32 %v2532, %v2420
        %v2565 = vadd.f32 %v2533, %v2425
        %v2566 = vadd.f32 %v2534, %v2428
        %v2567 = vadd.f32 %v2535, %v2433
        %v2568 = vadd.f32 %v2536, %v2436
        %v2569 = vadd.f32 %v2537, %v2441
        %v2570 = vadd.f32 %v2538, %v2444
        %v2571 = vadd.f32 %v2539, %v2449
        %v2572 = vadd.f32 %v2540, %v2452
        %v2573 = vadd.f32 %v2541, %v2457
        %v2574 = vadd.f32 %v2542, %v2460
        %v2575 = vadd.f32 %v2543, %v2465
        %v2576 = vadd.f32 %v2544, %v2468
        %v2577 = vadd.f32 %v2545, %v2473
        %v2578 = vadd.f32 %v2546, %v2476
        %v2579 = vadd.f32 %v2547, %v2481
        %v2580 = vadd.f32 %v2548, %v2484
        %v2581 = vadd.f32 %v2549, %v2489
        %v2582 = vadd.f32 %v2550, %v2492
        %v2583 = vadd.f32 %v2551, %v2497
        %v2584 = vadd.f32 %v2552, %v2500
        %v2585 = vadd.f32 %v2553, %v2505
        %v2586 = vadd.f32 %v2554, %v2508
        %v2587 = vadd.f32 %v2555, %v2513
        %v2588 = vadd.f32 %v2556, %v2516
        %v2589 = vadd.f32 %v2557, %v2521
        %v2590 = vadd.f32 %v2558, %v2524
        %2591 = vst [vmem:[#allocation2] sm:$0xff] %v2559
        %2592 = vst [vmem:[#allocation2 + $0x8] sm:$0xff] %v2560
        %2593 = vst [vmem:[#allocation2 + $0x10] sm:$0xff] %v2561
        %2594 = vst [vmem:[#allocation2 + $0x18] sm:$0xff] %v2562
        %2595 = vst [vmem:[#allocation2 + $0x20] sm:$0xff] %v2563
        %2596 = vst [vmem:[#allocation2 + $0x28] sm:$0xff] %v2564
        %2597 = vst [vmem:[#allocation2 + $0x30] sm:$0xff] %v2565
        %2598 = vst [vmem:[#allocation2 + $0x38] sm:$0xff] %v2566
        %2599 = vst [vmem:[#allocation2 + $0x40] sm:$0xff] %v2567
        %2600 = vst [vmem:[#allocation2 + $0x48] sm:$0xff] %v2568
        %2601 = vst [vmem:[#allocation2 + $0x50] sm:$0xff] %v2569
        %2602 = vst [vmem:[#allocation2 + $0x58] sm:$0xff] %v2570
        %2603 = vst [vmem:[#allocation2 + $0x60] sm:$0xff] %v2571
        %2604 = vst [vmem:[#allocation2 + $0x68] sm:$0xff] %v2572
        %2605 = vst [vmem:[#allocation2 + $0x70] sm:$0xff] %v2573
        %2606 = vst [vmem:[#allocation2 + $0x78] sm:$0xff] %v2574
        %2607 = vst [vmem:[#allocation2 + $0x80] sm:$0xff] %v2575
        %2608 = vst [vmem:[#allocation2 + $0x88] sm:$0xff] %v2576
        %2609 = vst [vmem:[#allocation2 + $0x90] sm:$0xff] %v2577
        %2610 = vst [vmem:[#allocation2 + $0x98] sm:$0xff] %v2578
        %2611 = vst [vmem:[#allocation2 + $0xa0] sm:$0xff] %v2579
        %2612 = vst [vmem:[#allocation2 + $0xa8] sm:$0xff] %v2580
        %2613 = vst [vmem:[#allocation2 + $0xb0] sm:$0xff] %v2581
        %2614 = vst [vmem:[#allocation2 + $0xb8] sm:$0xff] %v2582
        %2615 = vst [vmem:[#allocation2 + $0xc0] sm:$0xff] %v2583
        %2616 = vst [vmem:[#allocation2 + $0xc8] sm:$0xff] %v2584
        %2617 = vst [vmem:[#allocation2 + $0xd0] sm:$0xff] %v2585
        %2618 = vst [vmem:[#allocation2 + $0xd8] sm:$0xff] %v2586
        %2619 = vst [vmem:[#allocation2 + $0xe0] sm:$0xff] %v2587
        %2620 = vst [vmem:[#allocation2 + $0xe8] sm:$0xff] %v2588
        %2621 = vst [vmem:[#allocation2 + $0xf0] sm:$0xff] %v2589
        %2622 = vst [vmem:[#allocation2 + $0xf8] sm:$0xff] %v2590
        %s2623 = scalar_lea.vmem %s1, 12
        %v2624 = vld [vmem:[%s2623] sm:$0x3]
        %v2627 = vunpack.c.l.b16 %v221
        %v2628 = vunpack.c.l.b16 %v222
        %v2629 = vpack.c.b16 %v2628, %v2627
        %v2631 = vsel %vm305, %v2629, 0
        %v2634 = vsel %vm354, %v2624, 0
        %2636 = vmatprep.subr.bf16.mxu0 0
        %2637 = vmatpush1.bf16.msra.mxu0 %v2634
        %2638 = vmatprep.subr.bf16.mxu0 0
        %2639 = vmatpush1.bf16.msra.mxu0 0
        %2640 = vmatprep.subr.bf16.mxu0 0
        %2641 = vmatpush1.bf16.msra.mxu0 0
        %2642 = vmatprep.subr.bf16.mxu0 0
        %2643 = vmatpush1.bf16.msra.mxu0 0
        %2644 = vmatprep.subr.bf16.mxu0 0
        %2645 = vmatpush1.bf16.msra.mxu0 0
        %2646 = vmatprep.subr.bf16.mxu0 0
        %2647 = vmatpush1.bf16.msra.mxu0 0
        %2648 = vmatprep.subr.bf16.mxu0 0
        %2649 = vmatpush1.bf16.msra.mxu0 0
        %2650 = vmatprep.subr.bf16.mxu0 0
        %2651 = vmatpush1.bf16.msra.mxu0 0
        %2652 = vmatprep.subr.bf16.mxu0 0
        %2653 = vmatpush1.bf16.msra.mxu0 0
        %2654 = vmatprep.subr.bf16.mxu0 0
        %2655 = vmatpush1.bf16.msra.mxu0 0
        %2656 = vmatprep.subr.bf16.mxu0 0
        %2657 = vmatpush1.bf16.msra.mxu0 0
        %2658 = vmatprep.subr.bf16.mxu0 0
        %2659 = vmatpush1.bf16.msra.mxu0 0
        %2660 = vmatprep.subr.bf16.mxu0 0
        %2661 = vmatpush1.bf16.msra.mxu0 0
        %2662 = vmatprep.subr.bf16.mxu0 0
        %2663 = vmatpush1.bf16.msra.mxu0 0
        %2664 = vmatprep.subr.bf16.mxu0 0
        %2665 = vmatpush1.bf16.msra.mxu0 0
        %2666 = vmatprep.subr.bf16.mxu0 0
        %2667 = vmatpush1.bf16.msra.mxu0 0
        %2668 = vmatprep.mubr.bf16.mxu0 0
        %2669 = vmatmul.mubr.bf16.gmra.mrb[0].mxu0 %v313
        %v2670 = vpop.f32.mrb[0].mxu0
        %v2671 = vadd.f32 0.0, %v2670
        %v2672 = vpop.f32.mrb[0].mxu0
        %v2673 = vpop.f32.mrb[0].mxu0
        %v2674 = vadd.f32 0.0, %v2673
        %v2675 = vpop.f32.mrb[0].mxu0
        %2676 = vmatprep.mubr.bf16.mxu0 0
        %2677 = vmatmul.mubr.bf16.gmra.mrb[0].mxu0 %v316
        %v2678 = vpop.f32.mrb[0].mxu0
        %v2679 = vadd.f32 0.0, %v2678
        %v2680 = vpop.f32.mrb[0].mxu0
        %v2681 = vpop.f32.mrb[0].mxu0
        %v2682 = vadd.f32 0.0, %v2681
        %v2683 = vpop.f32.mrb[0].mxu0
        %2684 = vmatprep.mubr.bf16.mxu0 0
        %2685 = vmatmul.mubr.bf16.gmra.mrb[0].mxu0 %v319
        %v2686 = vpop.f32.mrb[0].mxu0
        %v2687 = vadd.f32 0.0, %v2686
        %v2688 = vpop.f32.mrb[0].mxu0
        %v2689 = vpop.f32.mrb[0].mxu0
        %v2690 = vadd.f32 0.0, %v2689
        %v2691 = vpop.f32.mrb[0].mxu0
        %2692 = vmatprep.mubr.bf16.mxu0 0
        %2693 = vmatmul.mubr.bf16.gmra.mrb[0].mxu0 %v322
        %v2694 = vpop.f32.mrb[0].mxu0
        %v2695 = vadd.f32 0.0, %v2694
        %v2696 = vpop.f32.mrb[0].mxu0
        %v2697 = vpop.f32.mrb[0].mxu0
        %v2698 = vadd.f32 0.0, %v2697
        %v2699 = vpop.f32.mrb[0].mxu0
        %2700 = vmatprep.mubr.bf16.mxu0 0
        %2701 = vmatmul.mubr.bf16.gmra.mrb[0].mxu0 %v325
        %v2702 = vpop.f32.mrb[0].mxu0
        %v2703 = vadd.f32 0.0, %v2702
        %v2704 = vpop.f32.mrb[0].mxu0
        %v2705 = vpop.f32.mrb[0].mxu0
        %v2706 = vadd.f32 0.0, %v2705
        %v2707 = vpop.f32.mrb[0].mxu0
        %2708 = vmatprep.mubr.bf16.mxu0 0
        %2709 = vmatmul.mubr.bf16.gmra.mrb[0].mxu0 %v328
        %v2710 = vpop.f32.mrb[0].mxu0
        %v2711 = vadd.f32 0.0, %v2710
        %v2712 = vpop.f32.mrb[0].mxu0
        %v2713 = vpop.f32.mrb[0].mxu0
        %v2714 = vadd.f32 0.0, %v2713
        %v2715 = vpop.f32.mrb[0].mxu0
        %2716 = vmatprep.mubr.bf16.mxu0 0
        %2717 = vmatmul.mubr.bf16.gmra.mrb[0].mxu0 %v331
        %v2718 = vpop.f32.mrb[0].mxu0
        %v2719 = vadd.f32 0.0, %v2718
        %v2720 = vpop.f32.mrb[0].mxu0
        %v2721 = vpop.f32.mrb[0].mxu0
        %v2722 = vadd.f32 0.0, %v2721
        %v2723 = vpop.f32.mrb[0].mxu0
        %2724 = vmatprep.mubr.bf16.mxu0 0
        %2725 = vmatmul.mubr.bf16.gmra.mrb[0].mxu0 %v334
        %v2726 = vpop.f32.mrb[0].mxu0
        %v2727 = vadd.f32 0.0, %v2726
        %v2728 = vpop.f32.mrb[0].mxu0
        %v2729 = vpop.f32.mrb[0].mxu0
        %v2730 = vadd.f32 0.0, %v2729
        %v2731 = vpop.f32.mrb[0].mxu0
        %2732 = vmatprep.mubr.bf16.mxu0 0
        %2733 = vmatmul.mubr.bf16.gmra.mrb[0].mxu0 %v337
        %v2734 = vpop.f32.mrb[0].mxu0
        %v2735 = vadd.f32 0.0, %v2734
        %v2736 = vpop.f32.mrb[0].mxu0
        %v2737 = vpop.f32.mrb[0].mxu0
        %v2738 = vadd.f32 0.0, %v2737
        %v2739 = vpop.f32.mrb[0].mxu0
        %2740 = vmatprep.mubr.bf16.mxu0 0
        %2741 = vmatmul.mubr.bf16.gmra.mrb[0].mxu0 %v340
        %v2742 = vpop.f32.mrb[0].mxu0
        %v2743 = vadd.f32 0.0, %v2742
        %v2744 = vpop.f32.mrb[0].mxu0
        %v2745 = vpop.f32.mrb[0].mxu0
        %v2746 = vadd.f32 0.0, %v2745
        %v2747 = vpop.f32.mrb[0].mxu0
        %2748 = vmatprep.mubr.bf16.mxu0 0
        %2749 = vmatmul.mubr.bf16.gmra.mrb[0].mxu0 %v343
        %v2750 = vpop.f32.mrb[0].mxu0
        %v2751 = vadd.f32 0.0, %v2750
        %v2752 = vpop.f32.mrb[0].mxu0
        %v2753 = vpop.f32.mrb[0].mxu0
        %v2754 = vadd.f32 0.0, %v2753
        %v2755 = vpop.f32.mrb[0].mxu0
        %2756 = vmatprep.mubr.bf16.mxu0 0
        %2757 = vmatmul.mubr.bf16.gmra.mrb[0].mxu0 %v346
        %v2758 = vpop.f32.mrb[0].mxu0
        %v2759 = vadd.f32 0.0, %v2758
        %v2760 = vpop.f32.mrb[0].mxu0
        %v2761 = vpop.f32.mrb[0].mxu0
        %v2762 = vadd.f32 0.0, %v2761
        %v2763 = vpop.f32.mrb[0].mxu0
        %2764 = vmatprep.mubr.bf16.mxu0 0
        %2765 = vmatmul.mubr.bf16.gmra.mrb[0].mxu0 %v349
        %v2766 = vpop.f32.mrb[0].mxu0
        %v2767 = vadd.f32 0.0, %v2766
        %v2768 = vpop.f32.mrb[0].mxu0
        %v2769 = vpop.f32.mrb[0].mxu0
        %v2770 = vadd.f32 0.0, %v2769
        %v2771 = vpop.f32.mrb[0].mxu0
        %2772 = vmatprep.mubr.bf16.mxu0 0
        %2773 = vmatmul.mubr.bf16.gmra.mrb[0].mxu0 %v352
        %v2774 = vpop.f32.mrb[0].mxu0
        %v2775 = vadd.f32 0.0, %v2774
        %v2776 = vpop.f32.mrb[0].mxu0
        %v2777 = vpop.f32.mrb[0].mxu0
        %v2778 = vadd.f32 0.0, %v2777
        %v2779 = vpop.f32.mrb[0].mxu0
        %2780 = vmatprep.mubr.bf16.mxu0 0
        %2781 = vmatmul.mubr.bf16.gmra.mrb[0].mxu0 %v1793
        %v2782 = vpop.f32.mrb[0].mxu0
        %v2783 = vadd.f32 0.0, %v2782
        %v2784 = vpop.f32.mrb[0].mxu0
        %v2785 = vpop.f32.mrb[0].mxu0
        %v2786 = vadd.f32 0.0, %v2785
        %v2787 = vpop.f32.mrb[0].mxu0
        %2788 = vmatprep.mubr.bf16.mxu0 0
        %2789 = vmatmul.mubr.bf16.gmra.mrb[0].mxu0 %v2631
        %v2790 = vpop.f32.mrb[0].mxu0
        %v2791 = vadd.f32 0.0, %v2790
        %v2792 = vpop.f32.mrb[0].mxu0
        %v2793 = vpop.f32.mrb[0].mxu0
        %v2794 = vadd.f32 0.0, %v2793
        %v2795 = vpop.f32.mrb[0].mxu0
        %2796 = vdwg.mxu0
        %v2797 = vld [vmem:[#allocation2] sm:$0xff]
        %v2798 = vld [vmem:[#allocation2 + $0x8] sm:$0xff]
        %v2799 = vld [vmem:[#allocation2 + $0x10] sm:$0xff]
        %v2800 = vld [vmem:[#allocation2 + $0x18] sm:$0xff]
        %v2801 = vld [vmem:[#allocation2 + $0x20] sm:$0xff]
        %v2802 = vld [vmem:[#allocation2 + $0x28] sm:$0xff]
        %v2803 = vld [vmem:[#allocation2 + $0x30] sm:$0xff]
        %v2804 = vld [vmem:[#allocation2 + $0x38] sm:$0xff]
        %v2805 = vld [vmem:[#allocation2 + $0x40] sm:$0xff]
        %v2806 = vld [vmem:[#allocation2 + $0x48] sm:$0xff]
        %v2807 = vld [vmem:[#allocation2 + $0x50] sm:$0xff]
        %v2808 = vld [vmem:[#allocation2 + $0x58] sm:$0xff]
        %v2809 = vld [vmem:[#allocation2 + $0x60] sm:$0xff]
        %v2810 = vld [vmem:[#allocation2 + $0x68] sm:$0xff]
        %v2811 = vld [vmem:[#allocation2 + $0x70] sm:$0xff]
        %v2812 = vld [vmem:[#allocation2 + $0x78] sm:$0xff]
        %v2813 = vld [vmem:[#allocation2 + $0x80] sm:$0xff]
        %v2814 = vld [vmem:[#allocation2 + $0x88] sm:$0xff]
        %v2815 = vld [vmem:[#allocation2 + $0x90] sm:$0xff]
        %v2816 = vld [vmem:[#allocation2 + $0x98] sm:$0xff]
        %v2817 = vld [vmem:[#allocation2 + $0xa0] sm:$0xff]
        %v2818 = vld [vmem:[#allocation2 + $0xa8] sm:$0xff]
        %v2819 = vld [vmem:[#allocation2 + $0xb0] sm:$0xff]
        %v2820 = vld [vmem:[#allocation2 + $0xb8] sm:$0xff]
        %v2821 = vld [vmem:[#allocation2 + $0xc0] sm:$0xff]
        %v2822 = vld [vmem:[#allocation2 + $0xc8] sm:$0xff]
        %v2823 = vld [vmem:[#allocation2 + $0xd0] sm:$0xff]
        %v2824 = vld [vmem:[#allocation2 + $0xd8] sm:$0xff]
        %v2825 = vld [vmem:[#allocation2 + $0xe0] sm:$0xff]
        %v2826 = vld [vmem:[#allocation2 + $0xe8] sm:$0xff]
        %v2827 = vld [vmem:[#allocation2 + $0xf0] sm:$0xff]
        %v2828 = vld [vmem:[#allocation2 + $0xf8] sm:$0xff]
        %v2829 = vadd.f32 %v2797, %v2671
        %v2830 = vadd.f32 %v2798, %v2674
        %v2831 = vadd.f32 %v2799, %v2679
        %v2832 = vadd.f32 %v2800, %v2682
        %v2833 = vadd.f32 %v2801, %v2687
        %v2834 = vadd.f32 %v2802, %v2690
        %v2835 = vadd.f32 %v2803, %v2695
        %v2836 = vadd.f32 %v2804, %v2698
        %v2837 = vadd.f32 %v2805, %v2703
        %v2838 = vadd.f32 %v2806, %v2706
        %v2839 = vadd.f32 %v2807, %v2711
        %v2840 = vadd.f32 %v2808, %v2714
        %v2841 = vadd.f32 %v2809, %v2719
        %v2842 = vadd.f32 %v2810, %v2722
        %v2843 = vadd.f32 %v2811, %v2727
        %v2844 = vadd.f32 %v2812, %v2730
        %v2845 = vadd.f32 %v2813, %v2735
        %v2846 = vadd.f32 %v2814, %v2738
        %v2847 = vadd.f32 %v2815, %v2743
        %v2848 = vadd.f32 %v2816, %v2746
        %v2849 = vadd.f32 %v2817, %v2751
        %v2850 = vadd.f32 %v2818, %v2754
        %v2851 = vadd.f32 %v2819, %v2759
        %v2852 = vadd.f32 %v2820, %v2762
        %v2853 = vadd.f32 %v2821, %v2767
        %v2854 = vadd.f32 %v2822, %v2770
        %v2855 = vadd.f32 %v2823, %v2775
        %v2856 = vadd.f32 %v2824, %v2778
        %v2857 = vadd.f32 %v2825, %v2783
        %v2858 = vadd.f32 %v2826, %v2786
        %v2859 = vadd.f32 %v2827, %v2791
        %v2860 = vadd.f32 %v2828, %v2794
        %2861 = vst [vmem:[#allocation2] sm:$0xff] %v2829
        %2862 = vst [vmem:[#allocation2 + $0x8] sm:$0xff] %v2830
        %2863 = vst [vmem:[#allocation2 + $0x10] sm:$0xff] %v2831
        %2864 = vst [vmem:[#allocation2 + $0x18] sm:$0xff] %v2832
        %2865 = vst [vmem:[#allocation2 + $0x20] sm:$0xff] %v2833
        %2866 = vst [vmem:[#allocation2 + $0x28] sm:$0xff] %v2834
        %2867 = vst [vmem:[#allocation2 + $0x30] sm:$0xff] %v2835
        %2868 = vst [vmem:[#allocation2 + $0x38] sm:$0xff] %v2836
        %2869 = vst [vmem:[#allocation2 + $0x40] sm:$0xff] %v2837
        %2870 = vst [vmem:[#allocation2 + $0x48] sm:$0xff] %v2838
        %2871 = vst [vmem:[#allocation2 + $0x50] sm:$0xff] %v2839
        %2872 = vst [vmem:[#allocation2 + $0x58] sm:$0xff] %v2840
        %2873 = vst [vmem:[#allocation2 + $0x60] sm:$0xff] %v2841
        %2874 = vst [vmem:[#allocation2 + $0x68] sm:$0xff] %v2842
        %2875 = vst [vmem:[#allocation2 + $0x70] sm:$0xff] %v2843
        %2876 = vst [vmem:[#allocation2 + $0x78] sm:$0xff] %v2844
        %2877 = vst [vmem:[#allocation2 + $0x80] sm:$0xff] %v2845
        %2878 = vst [vmem:[#allocation2 + $0x88] sm:$0xff] %v2846
        %2879 = vst [vmem:[#allocation2 + $0x90] sm:$0xff] %v2847
        %2880 = vst [vmem:[#allocation2 + $0x98] sm:$0xff] %v2848
        %2881 = vst [vmem:[#allocation2 + $0xa0] sm:$0xff] %v2849
        %2882 = vst [vmem:[#allocation2 + $0xa8] sm:$0xff] %v2850
        %2883 = vst [vmem:[#allocation2 + $0xb0] sm:$0xff] %v2851
        %2884 = vst [vmem:[#allocation2 + $0xb8] sm:$0xff] %v2852
        %2885 = vst [vmem:[#allocation2 + $0xc0] sm:$0xff] %v2853
        %2886 = vst [vmem:[#allocation2 + $0xc8] sm:$0xff] %v2854
        %2887 = vst [vmem:[#allocation2 + $0xd0] sm:$0xff] %v2855
        %2888 = vst [vmem:[#allocation2 + $0xd8] sm:$0xff] %v2856
        %2889 = vst [vmem:[#allocation2 + $0xe0] sm:$0xff] %v2857
        %2890 = vst [vmem:[#allocation2 + $0xe8] sm:$0xff] %v2858
        %2891 = vst [vmem:[#allocation2 + $0xf0] sm:$0xff] %v2859
        %2892 = vst [vmem:[#allocation2 + $0xf8] sm:$0xff] %v2860
        %v2894 = vshrl.u32 %v221, 16
        %v2896 = vrot.slane %v2894, 4
        %v2897 = vshll.u32 %v221, 16
        %v2899 = vrot.slane %v2897, 5
        %v2900 = vor.u32 %v2896, %v2899
        %v2901 = vrot.slane %v2900, 4
        %v2903 = vshll.u32 %v222, 16
        %v2905 = vrot.slane %v2903, 5
        %v2906 = vsel %vm553, %v2901, %v2905
        %v2907 = vshrl.u32 %v222, 16
        %v2909 = vrot.slane %v2907, 4
        %v2910 = vor.u32 %v2909, %v2905
        %v2911 = vrot.slane %v2910, 4
        %v2913 = vshll.u32 %v223, 16
        %v2915 = vrot.slane %v2913, 5
        %v2916 = vsel %vm553, %v2911, %v2915
        %s2917 = scalar_lea.vmem %s1, 14
        %v2918 = vld [vmem:[%s2917] sm:$0x3]
        %v2919 = vunpack.c.l.b16 %v2906
        %v2920 = vunpack.c.l.b16 %v2916
        %v2921 = vpack.c.b16 %v2920, %v2919
        %v2923 = vsel %vm305, %v2921, 0
        %v2926 = vsel %vm354, %v2918, 0
        %2928 = vmatprep.subr.bf16.mxu0 0
        %2929 = vmatpush1.bf16.msra.mxu0 %v2926
        %2930 = vmatprep.subr.bf16.mxu0 0
        %2931 = vmatpush1.bf16.msra.mxu0 0
        %2932 = vmatprep.subr.bf16.mxu0 0
        %2933 = vmatpush1.bf16.msra.mxu0 0
        %2934 = vmatprep.subr.bf16.mxu0 0
        %2935 = vmatpush1.bf16.msra.mxu0 0
        %2936 = vmatprep.subr.bf16.mxu0 0
        %2937 = vmatpush1.bf16.msra.mxu0 0
        %2938 = vmatprep.subr.bf16.mxu0 0
        %2939 = vmatpush1.bf16.msra.mxu0 0
        %2940 = vmatprep.subr.bf16.mxu0 0
        %2941 = vmatpush1.bf16.msra.mxu0 0
        %2942 = vmatprep.subr.bf16.mxu0 0
        %2943 = vmatpush1.bf16.msra.mxu0 0
        %2944 = vmatprep.subr.bf16.mxu0 0
        %2945 = vmatpush1.bf16.msra.mxu0 0
        %2946 = vmatprep.subr.bf16.mxu0 0
        %2947 = vmatpush1.bf16.msra.mxu0 0
        %2948 = vmatprep.subr.bf16.mxu0 0
        %2949 = vmatpush1.bf16.msra.mxu0 0
        %2950 = vmatprep.subr.bf16.mxu0 0
        %2951 = vmatpush1.bf16.msra.mxu0 0
        %2952 = vmatprep.subr.bf16.mxu0 0
        %2953 = vmatpush1.bf16.msra.mxu0 0
        %2954 = vmatprep.subr.bf16.mxu0 0
        %2955 = vmatpush1.bf16.msra.mxu0 0
        %2956 = vmatprep.subr.bf16.mxu0 0
        %2957 = vmatpush1.bf16.msra.mxu0 0
        %2958 = vmatprep.subr.bf16.mxu0 0
        %2959 = vmatpush1.bf16.msra.mxu0 0
        %2960 = vmatprep.mubr.bf16.mxu0 0
        %2961 = vmatmul.mubr.bf16.gmra.mrb[0].mxu0 %v995
        %v2962 = vpop.f32.mrb[0].mxu0
        %v2963 = vadd.f32 0.0, %v2962
        %v2964 = vpop.f32.mrb[0].mxu0
        %v2965 = vpop.f32.mrb[0].mxu0
        %v2966 = vadd.f32 0.0, %v2965
        %v2967 = vpop.f32.mrb[0].mxu0
        %2968 = vmatprep.mubr.bf16.mxu0 0
        %2969 = vmatmul.mubr.bf16.gmra.mrb[0].mxu0 %v998
        %v2970 = vpop.f32.mrb[0].mxu0
        %v2971 = vadd.f32 0.0, %v2970
        %v2972 = vpop.f32.mrb[0].mxu0
        %v2973 = vpop.f32.mrb[0].mxu0
        %v2974 = vadd.f32 0.0, %v2973
        %v2975 = vpop.f32.mrb[0].mxu0
        %2976 = vmatprep.mubr.bf16.mxu0 0
        %2977 = vmatmul.mubr.bf16.gmra.mrb[0].mxu0 %v1001
        %v2978 = vpop.f32.mrb[0].mxu0
        %v2979 = vadd.f32 0.0, %v2978
        %v2980 = vpop.f32.mrb[0].mxu0
        %v2981 = vpop.f32.mrb[0].mxu0
        %v2982 = vadd.f32 0.0, %v2981
        %v2983 = vpop.f32.mrb[0].mxu0
        %2984 = vmatprep.mubr.bf16.mxu0 0
        %2985 = vmatmul.mubr.bf16.gmra.mrb[0].mxu0 %v1004
        %v2986 = vpop.f32.mrb[0].mxu0
        %v2987 = vadd.f32 0.0, %v2986
        %v2988 = vpop.f32.mrb[0].mxu0
        %v2989 = vpop.f32.mrb[0].mxu0
        %v2990 = vadd.f32 0.0, %v2989
        %v2991 = vpop.f32.mrb[0].mxu0
        %2992 = vmatprep.mubr.bf16.mxu0 0
        %2993 = vmatmul.mubr.bf16.gmra.mrb[0].mxu0 %v1007
        %v2994 = vpop.f32.mrb[0].mxu0
        %v2995 = vadd.f32 0.0, %v2994
        %v2996 = vpop.f32.mrb[0].mxu0
        %v2997 = vpop.f32.mrb[0].mxu0
        %v2998 = vadd.f32 0.0, %v2997
        %v2999 = vpop.f32.mrb[0].mxu0
        %3000 = vmatprep.mubr.bf16.mxu0 0
        %3001 = vmatmul.mubr.bf16.gmra.mrb[0].mxu0 %v1010
        %v3002 = vpop.f32.mrb[0].mxu0
        %v3003 = vadd.f32 0.0, %v3002
        %v3004 = vpop.f32.mrb[0].mxu0
        %v3005 = vpop.f32.mrb[0].mxu0
        %v3006 = vadd.f32 0.0, %v3005
        %v3007 = vpop.f32.mrb[0].mxu0
        %3008 = vmatprep.mubr.bf16.mxu0 0
        %3009 = vmatmul.mubr.bf16.gmra.mrb[0].mxu0 %v1013
        %v3010 = vpop.f32.mrb[0].mxu0
        %v3011 = vadd.f32 0.0, %v3010
        %v3012 = vpop.f32.mrb[0].mxu0
        %v3013 = vpop.f32.mrb[0].mxu0
        %v3014 = vadd.f32 0.0, %v3013
        %v3015 = vpop.f32.mrb[0].mxu0
        %3016 = vmatprep.mubr.bf16.mxu0 0
        %3017 = vmatmul.mubr.bf16.gmra.mrb[0].mxu0 %v1016
        %v3018 = vpop.f32.mrb[0].mxu0
        %v3019 = vadd.f32 0.0, %v3018
        %v3020 = vpop.f32.mrb[0].mxu0
        %v3021 = vpop.f32.mrb[0].mxu0
        %v3022 = vadd.f32 0.0, %v3021
        %v3023 = vpop.f32.mrb[0].mxu0
        %3024 = vmatprep.mubr.bf16.mxu0 0
        %3025 = vmatmul.mubr.bf16.gmra.mrb[0].mxu0 %v1019
        %v3026 = vpop.f32.mrb[0].mxu0
        %v3027 = vadd.f32 0.0, %v3026
        %v3028 = vpop.f32.mrb[0].mxu0
        %v3029 = vpop.f32.mrb[0].mxu0
        %v3030 = vadd.f32 0.0, %v3029
        %v3031 = vpop.f32.mrb[0].mxu0
        %3032 = vmatprep.mubr.bf16.mxu0 0
        %3033 = vmatmul.mubr.bf16.gmra.mrb[0].mxu0 %v1022
        %v3034 = vpop.f32.mrb[0].mxu0
        %v3035 = vadd.f32 0.0, %v3034
        %v3036 = vpop.f32.mrb[0].mxu0
        %v3037 = vpop.f32.mrb[0].mxu0
        %v3038 = vadd.f32 0.0, %v3037
        %v3039 = vpop.f32.mrb[0].mxu0
        %3040 = vmatprep.mubr.bf16.mxu0 0
        %3041 = vmatmul.mubr.bf16.gmra.mrb[0].mxu0 %v1025
        %v3042 = vpop.f32.mrb[0].mxu0
        %v3043 = vadd.f32 0.0, %v3042
        %v3044 = vpop.f32.mrb[0].mxu0
        %v3045 = vpop.f32.mrb[0].mxu0
        %v3046 = vadd.f32 0.0, %v3045
        %v3047 = vpop.f32.mrb[0].mxu0
        %3048 = vmatprep.mubr.bf16.mxu0 0
        %3049 = vmatmul.mubr.bf16.gmra.mrb[0].mxu0 %v1028
        %v3050 = vpop.f32.mrb[0].mxu0
        %v3051 = vadd.f32 0.0, %v3050
        %v3052 = vpop.f32.mrb[0].mxu0
        %v3053 = vpop.f32.mrb[0].mxu0
        %v3054 = vadd.f32 0.0, %v3053
        %v3055 = vpop.f32.mrb[0].mxu0
        %3056 = vmatprep.mubr.bf16.mxu0 0
        %3057 = vmatmul.mubr.bf16.gmra.mrb[0].mxu0 %v1031
        %v3058 = vpop.f32.mrb[0].mxu0
        %v3059 = vadd.f32 0.0, %v3058
        %v3060 = vpop.f32.mrb[0].mxu0
        %v3061 = vpop.f32.mrb[0].mxu0
        %v3062 = vadd.f32 0.0, %v3061
        %v3063 = vpop.f32.mrb[0].mxu0
        %3064 = vmatprep.mubr.bf16.mxu0 0
        %3065 = vmatmul.mubr.bf16.gmra.mrb[0].mxu0 %v1034
        %v3066 = vpop.f32.mrb[0].mxu0
        %v3067 = vadd.f32 0.0, %v3066
        %v3068 = vpop.f32.mrb[0].mxu0
        %v3069 = vpop.f32.mrb[0].mxu0
        %v3070 = vadd.f32 0.0, %v3069
        %v3071 = vpop.f32.mrb[0].mxu0
        %3072 = vmatprep.mubr.bf16.mxu0 0
        %3073 = vmatmul.mubr.bf16.gmra.mrb[0].mxu0 %v2085
        %v3074 = vpop.f32.mrb[0].mxu0
        %v3075 = vadd.f32 0.0, %v3074
        %v3076 = vpop.f32.mrb[0].mxu0
        %v3077 = vpop.f32.mrb[0].mxu0
        %v3078 = vadd.f32 0.0, %v3077
        %v3079 = vpop.f32.mrb[0].mxu0
        %3080 = vmatprep.mubr.bf16.mxu0 0
        %3081 = vmatmul.mubr.bf16.gmra.mrb[0].mxu0 %v2923
        %v3082 = vpop.f32.mrb[0].mxu0
        %v3083 = vadd.f32 0.0, %v3082
        %v3084 = vpop.f32.mrb[0].mxu0
        %v3085 = vpop.f32.mrb[0].mxu0
        %v3086 = vadd.f32 0.0, %v3085
        %v3087 = vpop.f32.mrb[0].mxu0
        %3088 = vdwg.mxu0
        %v3089 = vld [vmem:[#allocation2] sm:$0xff]
        %v3090 = vld [vmem:[#allocation2 + $0x8] sm:$0xff]
        %v3091 = vld [vmem:[#allocation2 + $0x10] sm:$0xff]
        %v3092 = vld [vmem:[#allocation2 + $0x18] sm:$0xff]
        %v3093 = vld [vmem:[#allocation2 + $0x20] sm:$0xff]
        %v3094 = vld [vmem:[#allocation2 + $0x28] sm:$0xff]
        %v3095 = vld [vmem:[#allocation2 + $0x30] sm:$0xff]
        %v3096 = vld [vmem:[#allocation2 + $0x38] sm:$0xff]
        %v3097 = vld [vmem:[#allocation2 + $0x40] sm:$0xff]
        %v3098 = vld [vmem:[#allocation2 + $0x48] sm:$0xff]
        %v3099 = vld [vmem:[#allocation2 + $0x50] sm:$0xff]
        %v3100 = vld [vmem:[#allocation2 + $0x58] sm:$0xff]
        %v3101 = vld [vmem:[#allocation2 + $0x60] sm:$0xff]
        %v3102 = vld [vmem:[#allocation2 + $0x68] sm:$0xff]
        %v3103 = vld [vmem:[#allocation2 + $0x70] sm:$0xff]
        %v3104 = vld [vmem:[#allocation2 + $0x78] sm:$0xff]
        %v3105 = vld [vmem:[#allocation2 + $0x80] sm:$0xff]
        %v3106 = vld [vmem:[#allocation2 + $0x88] sm:$0xff]
        %v3107 = vld [vmem:[#allocation2 + $0x90] sm:$0xff]
        %v3108 = vld [vmem:[#allocation2 + $0x98] sm:$0xff]
        %v3109 = vld [vmem:[#allocation2 + $0xa0] sm:$0xff]
        %v3110 = vld [vmem:[#allocation2 + $0xa8] sm:$0xff]
        %v3111 = vld [vmem:[#allocation2 + $0xb0] sm:$0xff]
        %v3112 = vld [vmem:[#allocation2 + $0xb8] sm:$0xff]
        %v3113 = vld [vmem:[#allocation2 + $0xc0] sm:$0xff]
        %v3114 = vld [vmem:[#allocation2 + $0xc8] sm:$0xff]
        %v3115 = vld [vmem:[#allocation2 + $0xd0] sm:$0xff]
        %v3116 = vld [vmem:[#allocation2 + $0xd8] sm:$0xff]
        %v3117 = vld [vmem:[#allocation2 + $0xe0] sm:$0xff]
        %v3118 = vld [vmem:[#allocation2 + $0xe8] sm:$0xff]
        %v3119 = vld [vmem:[#allocation2 + $0xf0] sm:$0xff]
        %v3120 = vld [vmem:[#allocation2 + $0xf8] sm:$0xff]
        %v3121 = vadd.f32 %v3089, %v2963
        %v3122 = vadd.f32 %v3090, %v2966
        %v3123 = vadd.f32 %v3091, %v2971
        %v3124 = vadd.f32 %v3092, %v2974
        %v3125 = vadd.f32 %v3093, %v2979
        %v3126 = vadd.f32 %v3094, %v2982
        %v3127 = vadd.f32 %v3095, %v2987
        %v3128 = vadd.f32 %v3096, %v2990
        %v3129 = vadd.f32 %v3097, %v2995
        %v3130 = vadd.f32 %v3098, %v2998
        %v3131 = vadd.f32 %v3099, %v3003
        %v3132 = vadd.f32 %v3100, %v3006
        %v3133 = vadd.f32 %v3101, %v3011
        %v3134 = vadd.f32 %v3102, %v3014
        %v3135 = vadd.f32 %v3103, %v3019
        %v3136 = vadd.f32 %v3104, %v3022
        %v3137 = vadd.f32 %v3105, %v3027
        %v3138 = vadd.f32 %v3106, %v3030
        %v3139 = vadd.f32 %v3107, %v3035
        %v3140 = vadd.f32 %v3108, %v3038
        %v3141 = vadd.f32 %v3109, %v3043
        %v3142 = vadd.f32 %v3110, %v3046
        %v3143 = vadd.f32 %v3111, %v3051
        %v3144 = vadd.f32 %v3112, %v3054
        %v3145 = vadd.f32 %v3113, %v3059
        %v3146 = vadd.f32 %v3114, %v3062
        %v3147 = vadd.f32 %v3115, %v3067
        %v3148 = vadd.f32 %v3116, %v3070
        %v3149 = vadd.f32 %v3117, %v3075
        %v3150 = vadd.f32 %v3118, %v3078
        %v3151 = vadd.f32 %v3119, %v3083
        %v3152 = vadd.f32 %v3120, %v3086
        %3153 = vst [vmem:[#allocation2] sm:$0xff] %v3121
        %3154 = vst [vmem:[#allocation2 + $0x8] sm:$0xff] %v3122
        %3155 = vst [vmem:[#allocation2 + $0x10] sm:$0xff] %v3123
        %3156 = vst [vmem:[#allocation2 + $0x18] sm:$0xff] %v3124
        %3157 = vst [vmem:[#allocation2 + $0x20] sm:$0xff] %v3125
        %3158 = vst [vmem:[#allocation2 + $0x28] sm:$0xff] %v3126
        %3159 = vst [vmem:[#allocation2 + $0x30] sm:$0xff] %v3127
        %3160 = vst [vmem:[#allocation2 + $0x38] sm:$0xff] %v3128
        %3161 = vst [vmem:[#allocation2 + $0x40] sm:$0xff] %v3129
        %3162 = vst [vmem:[#allocation2 + $0x48] sm:$0xff] %v3130
        %3163 = vst [vmem:[#allocation2 + $0x50] sm:$0xff] %v3131
        %3164 = vst [vmem:[#allocation2 + $0x58] sm:$0xff] %v3132
        %3165 = vst [vmem:[#allocation2 + $0x60] sm:$0xff] %v3133
        %3166 = vst [vmem:[#allocation2 + $0x68] sm:$0xff] %v3134
        %3167 = vst [vmem:[#allocation2 + $0x70] sm:$0xff] %v3135
        %3168 = vst [vmem:[#allocation2 + $0x78] sm:$0xff] %v3136
        %3169 = vst [vmem:[#allocation2 + $0x80] sm:$0xff] %v3137
        %3170 = vst [vmem:[#allocation2 + $0x88] sm:$0xff] %v3138
        %3171 = vst [vmem:[#allocation2 + $0x90] sm:$0xff] %v3139
        %3172 = vst [vmem:[#allocation2 + $0x98] sm:$0xff] %v3140
        %3173 = vst [vmem:[#allocation2 + $0xa0] sm:$0xff] %v3141
        %3174 = vst [vmem:[#allocation2 + $0xa8] sm:$0xff] %v3142
        %3175 = vst [vmem:[#allocation2 + $0xb0] sm:$0xff] %v3143
        %3176 = vst [vmem:[#allocation2 + $0xb8] sm:$0xff] %v3144
        %3177 = vst [vmem:[#allocation2 + $0xc0] sm:$0xff] %v3145
        %3178 = vst [vmem:[#allocation2 + $0xc8] sm:$0xff] %v3146
        %3179 = vst [vmem:[#allocation2 + $0xd0] sm:$0xff] %v3147
        %3180 = vst [vmem:[#allocation2 + $0xd8] sm:$0xff] %v3148
        %3181 = vst [vmem:[#allocation2 + $0xe0] sm:$0xff] %v3149
        %3182 = vst [vmem:[#allocation2 + $0xe8] sm:$0xff] %v3150
        %3183 = vst [vmem:[#allocation2 + $0xf0] sm:$0xff] %v3151
        %3184 = vst [vmem:[#allocation2 + $0xf8] sm:$0xff] %v3152
        %v3186 = vrot.slane %v221, 5
        %v3187 = vrot.slane %v3186, 4
        %v3188 = vrot.slane %v222, 5
        %v3189 = vsel %vm1314, %v3187, %v3188
        %v3190 = vrot.slane %v3188, 4
        %v3191 = vrot.slane %v223, 5
        %v3192 = vsel %vm1314, %v3190, %v3191
        %s3193 = scalar_lea.vmem %s1, 16
        %v3194 = vld [vmem:[%s3193] sm:$0x3]
        %v3195 = vunpack.c.l.b16 %v3189
        %v3196 = vunpack.c.l.b16 %v3192
        %v3197 = vpack.c.b16 %v3196, %v3195
        %v3199 = vsel %vm305, %v3197, 0
        %v3202 = vsel %vm354, %v3194, 0
        %3204 = vmatprep.subr.bf16.mxu0 0
        %3205 = vmatpush1.bf16.msra.mxu0 %v3202
        %3206 = vmatprep.subr.bf16.mxu0 0
        %3207 = vmatpush1.bf16.msra.mxu0 0
        %3208 = vmatprep.subr.bf16.mxu0 0
        %3209 = vmatpush1.bf16.msra.mxu0 0
        %3210 = vmatprep.subr.bf16.mxu0 0
        %3211 = vmatpush1.bf16.msra.mxu0 0
        %3212 = vmatprep.subr.bf16.mxu0 0
        %3213 = vmatpush1.bf16.msra.mxu0 0
        %3214 = vmatprep.subr.bf16.mxu0 0
        %3215 = vmatpush1.bf16.msra.mxu0 0
        %3216 = vmatprep.subr.bf16.mxu0 0
        %3217 = vmatpush1.bf16.msra.mxu0 0
        %3218 = vmatprep.subr.bf16.mxu0 0
        %3219 = vmatpush1.bf16.msra.mxu0 0
        %3220 = vmatprep.subr.bf16.mxu0 0
        %3221 = vmatpush1.bf16.msra.mxu0 0
        %3222 = vmatprep.subr.bf16.mxu0 0
        %3223 = vmatpush1.bf16.msra.mxu0 0
        %3224 = vmatprep.subr.bf16.mxu0 0
        %3225 = vmatpush1.bf16.msra.mxu0 0
        %3226 = vmatprep.subr.bf16.mxu0 0
        %3227 = vmatpush1.bf16.msra.mxu0 0
        %3228 = vmatprep.subr.bf16.mxu0 0
        %3229 = vmatpush1.bf16.msra.mxu0 0
        %3230 = vmatprep.subr.bf16.mxu0 0
        %3231 = vmatpush1.bf16.msra.mxu0 0
        %3232 = vmatprep.subr.bf16.mxu0 0
        %3233 = vmatpush1.bf16.msra.mxu0 0
        %3234 = vmatprep.subr.bf16.mxu0 0
        %3235 = vmatpush1.bf16.msra.mxu0 0
        %3236 = vmatprep.mubr.bf16.mxu0 0
        %3237 = vmatmul.mubr.bf16.gmra.mrb[0].mxu0 %v1484
        %v3238 = vpop.f32.mrb[0].mxu0
        %v3239 = vadd.f32 0.0, %v3238
        %v3240 = vpop.f32.mrb[0].mxu0
        %v3241 = vpop.f32.mrb[0].mxu0
        %v3242 = vadd.f32 0.0, %v3241
        %v3243 = vpop.f32.mrb[0].mxu0
        %3244 = vmatprep.mubr.bf16.mxu0 0
        %3245 = vmatmul.mubr.bf16.gmra.mrb[0].mxu0 %v1487
        %v3246 = vpop.f32.mrb[0].mxu0
        %v3247 = vadd.f32 0.0, %v3246
        %v3248 = vpop.f32.mrb[0].mxu0
        %v3249 = vpop.f32.mrb[0].mxu0
        %v3250 = vadd.f32 0.0, %v3249
        %v3251 = vpop.f32.mrb[0].mxu0
        %3252 = vmatprep.mubr.bf16.mxu0 0
        %3253 = vmatmul.mubr.bf16.gmra.mrb[0].mxu0 %v1490
        %v3254 = vpop.f32.mrb[0].mxu0
        %v3255 = vadd.f32 0.0, %v3254
        %v3256 = vpop.f32.mrb[0].mxu0
        %v3257 = vpop.f32.mrb[0].mxu0
        %v3258 = vadd.f32 0.0, %v3257
        %v3259 = vpop.f32.mrb[0].mxu0
        %3260 = vmatprep.mubr.bf16.mxu0 0
        %3261 = vmatmul.mubr.bf16.gmra.mrb[0].mxu0 %v1493
        %v3262 = vpop.f32.mrb[0].mxu0
        %v3263 = vadd.f32 0.0, %v3262
        %v3264 = vpop.f32.mrb[0].mxu0
        %v3265 = vpop.f32.mrb[0].mxu0
        %v3266 = vadd.f32 0.0, %v3265
        %v3267 = vpop.f32.mrb[0].mxu0
        %3268 = vmatprep.mubr.bf16.mxu0 0
        %3269 = vmatmul.mubr.bf16.gmra.mrb[0].mxu0 %v1496
        %v3270 = vpop.f32.mrb[0].mxu0
        %v3271 = vadd.f32 0.0, %v3270
        %v3272 = vpop.f32.mrb[0].mxu0
        %v3273 = vpop.f32.mrb[0].mxu0
        %v3274 = vadd.f32 0.0, %v3273
        %v3275 = vpop.f32.mrb[0].mxu0
        %3276 = vmatprep.mubr.bf16.mxu0 0
        %3277 = vmatmul.mubr.bf16.gmra.mrb[0].mxu0 %v1499
        %v3278 = vpop.f32.mrb[0].mxu0
        %v3279 = vadd.f32 0.0, %v3278
        %v3280 = vpop.f32.mrb[0].mxu0
        %v3281 = vpop.f32.mrb[0].mxu0
        %v3282 = vadd.f32 0.0, %v3281
        %v3283 = vpop.f32.mrb[0].mxu0
        %3284 = vmatprep.mubr.bf16.mxu0 0
        %3285 = vmatmul.mubr.bf16.gmra.mrb[0].mxu0 %v1502
        %v3286 = vpop.f32.mrb[0].mxu0
        %v3287 = vadd.f32 0.0, %v3286
        %v3288 = vpop.f32.mrb[0].mxu0
        %v3289 = vpop.f32.mrb[0].mxu0
        %v3290 = vadd.f32 0.0, %v3289
        %v3291 = vpop.f32.mrb[0].mxu0
        %3292 = vmatprep.mubr.bf16.mxu0 0
        %3293 = vmatmul.mubr.bf16.gmra.mrb[0].mxu0 %v1505
        %v3294 = vpop.f32.mrb[0].mxu0
        %v3295 = vadd.f32 0.0, %v3294
        %v3296 = vpop.f32.mrb[0].mxu0
        %v3297 = vpop.f32.mrb[0].mxu0
        %v3298 = vadd.f32 0.0, %v3297
        %v3299 = vpop.f32.mrb[0].mxu0
        %3300 = vmatprep.mubr.bf16.mxu0 0
        %3301 = vmatmul.mubr.bf16.gmra.mrb[0].mxu0 %v1508
        %v3302 = vpop.f32.mrb[0].mxu0
        %v3303 = vadd.f32 0.0, %v3302
        %v3304 = vpop.f32.mrb[0].mxu0
        %v3305 = vpop.f32.mrb[0].mxu0
        %v3306 = vadd.f32 0.0, %v3305
        %v3307 = vpop.f32.mrb[0].mxu0
        %3308 = vmatprep.mubr.bf16.mxu0 0
        %3309 = vmatmul.mubr.bf16.gmra.mrb[0].mxu0 %v1511
        %v3310 = vpop.f32.mrb[0].mxu0
        %v3311 = vadd.f32 0.0, %v3310
        %v3312 = vpop.f32.mrb[0].mxu0
        %v3313 = vpop.f32.mrb[0].mxu0
        %v3314 = vadd.f32 0.0, %v3313
        %v3315 = vpop.f32.mrb[0].mxu0
        %3316 = vmatprep.mubr.bf16.mxu0 0
        %3317 = vmatmul.mubr.bf16.gmra.mrb[0].mxu0 %v1514
        %v3318 = vpop.f32.mrb[0].mxu0
        %v3319 = vadd.f32 0.0, %v3318
        %v3320 = vpop.f32.mrb[0].mxu0
        %v3321 = vpop.f32.mrb[0].mxu0
        %v3322 = vadd.f32 0.0, %v3321
        %v3323 = vpop.f32.mrb[0].mxu0
        %3324 = vmatprep.mubr.bf16.mxu0 0
        %3325 = vmatmul.mubr.bf16.gmra.mrb[0].mxu0 %v1517
        %v3326 = vpop.f32.mrb[0].mxu0
        %v3327 = vadd.f32 0.0, %v3326
        %v3328 = vpop.f32.mrb[0].mxu0
        %v3329 = vpop.f32.mrb[0].mxu0
        %v3330 = vadd.f32 0.0, %v3329
        %v3331 = vpop.f32.mrb[0].mxu0
        %3332 = vmatprep.mubr.bf16.mxu0 0
        %3333 = vmatmul.mubr.bf16.gmra.mrb[0].mxu0 %v1520
        %v3334 = vpop.f32.mrb[0].mxu0
        %v3335 = vadd.f32 0.0, %v3334
        %v3336 = vpop.f32.mrb[0].mxu0
        %v3337 = vpop.f32.mrb[0].mxu0
        %v3338 = vadd.f32 0.0, %v3337
        %v3339 = vpop.f32.mrb[0].mxu0
        %3340 = vmatprep.mubr.bf16.mxu0 0
        %3341 = vmatmul.mubr.bf16.gmra.mrb[0].mxu0 %v1523
        %v3342 = vpop.f32.mrb[0].mxu0
        %v3343 = vadd.f32 0.0, %v3342
        %v3344 = vpop.f32.mrb[0].mxu0
        %v3345 = vpop.f32.mrb[0].mxu0
        %v3346 = vadd.f32 0.0, %v3345
        %v3347 = vpop.f32.mrb[0].mxu0
        %3348 = vmatprep.mubr.bf16.mxu0 0
        %3349 = vmatmul.mubr.bf16.gmra.mrb[0].mxu0 %v2361
        %v3350 = vpop.f32.mrb[0].mxu0
        %v3351 = vadd.f32 0.0, %v3350
        %v3352 = vpop.f32.mrb[0].mxu0
        %v3353 = vpop.f32.mrb[0].mxu0
        %v3354 = vadd.f32 0.0, %v3353
        %v3355 = vpop.f32.mrb[0].mxu0
        %3356 = vmatprep.mubr.bf16.mxu0 0
        %3357 = vmatmul.mubr.bf16.gmra.mrb[0].mxu0 %v3199
        %v3358 = vpop.f32.mrb[0].mxu0
        %v3359 = vadd.f32 0.0, %v3358
        %v3360 = vpop.f32.mrb[0].mxu0
        %v3361 = vpop.f32.mrb[0].mxu0
        %v3362 = vadd.f32 0.0, %v3361
        %v3363 = vpop.f32.mrb[0].mxu0
        %3364 = vdwg.mxu0
        %v3365 = vld [vmem:[#allocation2] sm:$0xff]
        %v3366 = vld [vmem:[#allocation2 + $0x8] sm:$0xff]
        %v3367 = vld [vmem:[#allocation2 + $0x10] sm:$0xff]
        %v3368 = vld [vmem:[#allocation2 + $0x18] sm:$0xff]
        %v3369 = vld [vmem:[#allocation2 + $0x20] sm:$0xff]
        %v3370 = vld [vmem:[#allocation2 + $0x28] sm:$0xff]
        %v3371 = vld [vmem:[#allocation2 + $0x30] sm:$0xff]
        %v3372 = vld [vmem:[#allocation2 + $0x38] sm:$0xff]
        %v3373 = vld [vmem:[#allocation2 + $0x40] sm:$0xff]
        %v3374 = vld [vmem:[#allocation2 + $0x48] sm:$0xff]
        %v3375 = vld [vmem:[#allocation2 + $0x50] sm:$0xff]
        %v3376 = vld [vmem:[#allocation2 + $0x58] sm:$0xff]
        %v3377 = vld [vmem:[#allocation2 + $0x60] sm:$0xff]
        %v3378 = vld [vmem:[#allocation2 + $0x68] sm:$0xff]
        %v3379 = vld [vmem:[#allocation2 + $0x70] sm:$0xff]
        %v3380 = vld [vmem:[#allocation2 + $0x78] sm:$0xff]
        %v3381 = vld [vmem:[#allocation2 + $0x80] sm:$0xff]
        %v3382 = vld [vmem:[#allocation2 + $0x88] sm:$0xff]
        %v3383 = vld [vmem:[#allocation2 + $0x90] sm:$0xff]
        %v3384 = vld [vmem:[#allocation2 + $0x98] sm:$0xff]
        %v3385 = vld [vmem:[#allocation2 + $0xa0] sm:$0xff]
        %v3386 = vld [vmem:[#allocation2 + $0xa8] sm:$0xff]
        %v3387 = vld [vmem:[#allocation2 + $0xb0] sm:$0xff]
        %v3388 = vld [vmem:[#allocation2 + $0xb8] sm:$0xff]
        %v3389 = vld [vmem:[#allocation2 + $0xc0] sm:$0xff]
        %v3390 = vld [vmem:[#allocation2 + $0xc8] sm:$0xff]
        %v3391 = vld [vmem:[#allocation2 + $0xd0] sm:$0xff]
        %v3392 = vld [vmem:[#allocation2 + $0xd8] sm:$0xff]
        %v3393 = vld [vmem:[#allocation2 + $0xe0] sm:$0xff]
        %v3394 = vld [vmem:[#allocation2 + $0xe8] sm:$0xff]
        %v3395 = vld [vmem:[#allocation2 + $0xf0] sm:$0xff]
        %v3396 = vld [vmem:[#allocation2 + $0xf8] sm:$0xff]
        %v3397 = vadd.f32 %v3365, %v3239
        %v3398 = vadd.f32 %v3366, %v3242
        %v3399 = vadd.f32 %v3367, %v3247
        %v3400 = vadd.f32 %v3368, %v3250
        %v3401 = vadd.f32 %v3369, %v3255
        %v3402 = vadd.f32 %v3370, %v3258
        %v3403 = vadd.f32 %v3371, %v3263
        %v3404 = vadd.f32 %v3372, %v3266
        %v3405 = vadd.f32 %v3373, %v3271
        %v3406 = vadd.f32 %v3374, %v3274
        %v3407 = vadd.f32 %v3375, %v3279
        %v3408 = vadd.f32 %v3376, %v3282
        %v3409 = vadd.f32 %v3377, %v3287
        %v3410 = vadd.f32 %v3378, %v3290
        %v3411 = vadd.f32 %v3379, %v3295
        %v3412 = vadd.f32 %v3380, %v3298
        %v3413 = vadd.f32 %v3381, %v3303
        %v3414 = vadd.f32 %v3382, %v3306
        %v3415 = vadd.f32 %v3383, %v3311
        %v3416 = vadd.f32 %v3384, %v3314
        %v3417 = vadd.f32 %v3385, %v3319
        %v3418 = vadd.f32 %v3386, %v3322
        %v3419 = vadd.f32 %v3387, %v3327
        %v3420 = vadd.f32 %v3388, %v3330
        %v3421 = vadd.f32 %v3389, %v3335
        %v3422 = vadd.f32 %v3390, %v3338
        %v3423 = vadd.f32 %v3391, %v3343
        %v3424 = vadd.f32 %v3392, %v3346
        %v3425 = vadd.f32 %v3393, %v3351
        %v3426 = vadd.f32 %v3394, %v3354
        %v3427 = vadd.f32 %v3395, %v3359
        %v3428 = vadd.f32 %v3396, %v3362
        %3429 = vst [vmem:[#allocation2] sm:$0xff] %v3397
        %3430 = vst [vmem:[#allocation2 + $0x8] sm:$0xff] %v3398
        %3431 = vst [vmem:[#allocation2 + $0x10] sm:$0xff] %v3399
        %3432 = vst [vmem:[#allocation2 + $0x18] sm:$0xff] %v3400
        %3433 = vst [vmem:[#allocation2 + $0x20] sm:$0xff] %v3401
        %3434 = vst [vmem:[#allocation2 + $0x28] sm:$0xff] %v3402
        %3435 = vst [vmem:[#allocation2 + $0x30] sm:$0xff] %v3403
        %3436 = vst [vmem:[#allocation2 + $0x38] sm:$0xff] %v3404
        %3437 = vst [vmem:[#allocation2 + $0x40] sm:$0xff] %v3405
        %3438 = vst [vmem:[#allocation2 + $0x48] sm:$0xff] %v3406
        %3439 = vst [vmem:[#allocation2 + $0x50] sm:$0xff] %v3407
        %3440 = vst [vmem:[#allocation2 + $0x58] sm:$0xff] %v3408
        %3441 = vst [vmem:[#allocation2 + $0x60] sm:$0xff] %v3409
        %3442 = vst [vmem:[#allocation2 + $0x68] sm:$0xff] %v3410
        %3443 = vst [vmem:[#allocation2 + $0x70] sm:$0xff] %v3411
        %3444 = vst [vmem:[#allocation2 + $0x78] sm:$0xff] %v3412
        %3445 = vst [vmem:[#allocation2 + $0x80] sm:$0xff] %v3413
        %3446 = vst [vmem:[#allocation2 + $0x88] sm:$0xff] %v3414
        %3447 = vst [vmem:[#allocation2 + $0x90] sm:$0xff] %v3415
        %3448 = vst [vmem:[#allocation2 + $0x98] sm:$0xff] %v3416
        %3449 = vst [vmem:[#allocation2 + $0xa0] sm:$0xff] %v3417
        %3450 = vst [vmem:[#allocation2 + $0xa8] sm:$0xff] %v3418
        %3451 = vst [vmem:[#allocation2 + $0xb0] sm:$0xff] %v3419
        %3452 = vst [vmem:[#allocation2 + $0xb8] sm:$0xff] %v3420
        %3453 = vst [vmem:[#allocation2 + $0xc0] sm:$0xff] %v3421
        %3454 = vst [vmem:[#allocation2 + $0xc8] sm:$0xff] %v3422
        %3455 = vst [vmem:[#allocation2 + $0xd0] sm:$0xff] %v3423
        %3456 = vst [vmem:[#allocation2 + $0xd8] sm:$0xff] %v3424
        %3457 = vst [vmem:[#allocation2 + $0xe0] sm:$0xff] %v3425
        %3458 = vst [vmem:[#allocation2 + $0xe8] sm:$0xff] %v3426
        %3459 = vst [vmem:[#allocation2 + $0xf0] sm:$0xff] %v3427
        %3460 = vst [vmem:[#allocation2 + $0xf8] sm:$0xff] %v3428
        %v3461 = vld [vmem:[#allocation2] sm:$0xff]
        %v3462 = vld [vmem:[#allocation2 + $0x8] sm:$0xff]
        %v3463 = vld [vmem:[#allocation2 + $0x10] sm:$0xff]
        %v3464 = vld [vmem:[#allocation2 + $0x18] sm:$0xff]
        %v3465 = vld [vmem:[#allocation2 + $0x20] sm:$0xff]
        %v3466 = vld [vmem:[#allocation2 + $0x28] sm:$0xff]
        %v3467 = vld [vmem:[#allocation2 + $0x30] sm:$0xff]
        %v3468 = vld [vmem:[#allocation2 + $0x38] sm:$0xff]
        %v3469 = vld [vmem:[#allocation2 + $0x40] sm:$0xff]
        %v3470 = vld [vmem:[#allocation2 + $0x48] sm:$0xff]
        %v3471 = vld [vmem:[#allocation2 + $0x50] sm:$0xff]
        %v3472 = vld [vmem:[#allocation2 + $0x58] sm:$0xff]
        %v3473 = vld [vmem:[#allocation2 + $0x60] sm:$0xff]
        %v3474 = vld [vmem:[#allocation2 + $0x68] sm:$0xff]
        %v3475 = vld [vmem:[#allocation2 + $0x70] sm:$0xff]
        %v3476 = vld [vmem:[#allocation2 + $0x78] sm:$0xff]
        %v3477 = vld [vmem:[#allocation2 + $0x80] sm:$0xff]
        %v3478 = vld [vmem:[#allocation2 + $0x88] sm:$0xff]
        %v3479 = vld [vmem:[#allocation2 + $0x90] sm:$0xff]
        %v3480 = vld [vmem:[#allocation2 + $0x98] sm:$0xff]
        %v3481 = vld [vmem:[#allocation2 + $0xa0] sm:$0xff]
        %v3482 = vld [vmem:[#allocation2 + $0xa8] sm:$0xff]
        %v3483 = vld [vmem:[#allocation2 + $0xb0] sm:$0xff]
        %v3484 = vld [vmem:[#allocation2 + $0xb8] sm:$0xff]
        %v3485 = vld [vmem:[#allocation2 + $0xc0] sm:$0xff]
        %v3486 = vld [vmem:[#allocation2 + $0xc8] sm:$0xff]
        %v3487 = vld [vmem:[#allocation2 + $0xd0] sm:$0xff]
        %v3488 = vld [vmem:[#allocation2 + $0xd8] sm:$0xff]
        %v3489 = vld [vmem:[#allocation2 + $0xe0] sm:$0xff]
        %v3490 = vld [vmem:[#allocation2 + $0xe8] sm:$0xff]
        %v3491 = vld [vmem:[#allocation2 + $0xf0] sm:$0xff]
        %v3492 = vld [vmem:[#allocation2 + $0xf8] sm:$0xff]
        %v3493 = vld [vmem:[%s2] sm:$0x1]
        %v3495 = vlaneseq
        %v3496 = vshrl.u32 %v3495, 7
        %v3497 = vsub.s32 0, %v3496
        %v3498 = vrot.slane %v3493, %v3497
        %v3500 = vadd.f32 %v3461, %v3498
        %v3501 = vadd.f32 %v3462, %v3498
        %v3502 = vadd.f32 %v3463, %v3498
        %v3503 = vadd.f32 %v3464, %v3498
        %v3504 = vadd.f32 %v3465, %v3498
        %v3505 = vadd.f32 %v3466, %v3498
        %v3506 = vadd.f32 %v3467, %v3498
        %v3507 = vadd.f32 %v3468, %v3498
        %v3508 = vadd.f32 %v3469, %v3498
        %v3509 = vadd.f32 %v3470, %v3498
        %v3510 = vadd.f32 %v3471, %v3498
        %v3511 = vadd.f32 %v3472, %v3498
        %v3512 = vadd.f32 %v3473, %v3498
        %v3513 = vadd.f32 %v3474, %v3498
        %v3514 = vadd.f32 %v3475, %v3498
        %v3515 = vadd.f32 %v3476, %v3498
        %v3516 = vadd.f32 %v3477, %v3498
        %v3517 = vadd.f32 %v3478, %v3498
        %v3518 = vadd.f32 %v3479, %v3498
        %v3519 = vadd.f32 %v3480, %v3498
        %v3520 = vadd.f32 %v3481, %v3498
        %v3521 = vadd.f32 %v3482, %v3498
        %v3522 = vadd.f32 %v3483, %v3498
        %v3523 = vadd.f32 %v3484, %v3498
        %v3524 = vadd.f32 %v3485, %v3498
        %v3525 = vadd.f32 %v3486, %v3498
        %v3526 = vadd.f32 %v3487, %v3498
        %v3527 = vadd.f32 %v3488, %v3498
        %v3528 = vadd.f32 %v3489, %v3498
        %v3529 = vadd.f32 %v3490, %v3498
        %v3530 = vadd.f32 %v3491, %v3498
        %v3531 = vadd.f32 %v3492, %v3498
        %3532 = vst [vmem:[%s163] sm:$0xff] %v3500
        %3533 = vst [vmem:[%s163 + $0x8] sm:$0xff] %v3501
        %3534 = vst [vmem:[%s163 + $0x10] sm:$0xff] %v3502
        %3535 = vst [vmem:[%s163 + $0x18] sm:$0xff] %v3503
        %3536 = vst [vmem:[%s163 + $0x20] sm:$0xff] %v3504
        %3537 = vst [vmem:[%s163 + $0x28] sm:$0xff] %v3505
        %3538 = vst [vmem:[%s163 + $0x30] sm:$0xff] %v3506
        %3539 = vst [vmem:[%s163 + $0x38] sm:$0xff] %v3507
        %3540 = vst [vmem:[%s163 + $0x40] sm:$0xff] %v3508
        %3541 = vst [vmem:[%s163 + $0x48] sm:$0xff] %v3509
        %3542 = vst [vmem:[%s163 + $0x50] sm:$0xff] %v3510
        %3543 = vst [vmem:[%s163 + $0x58] sm:$0xff] %v3511
        %3544 = vst [vmem:[%s163 + $0x60] sm:$0xff] %v3512
        %3545 = vst [vmem:[%s163 + $0x68] sm:$0xff] %v3513
        %3546 = vst [vmem:[%s163 + $0x70] sm:$0xff] %v3514
        %3547 = vst [vmem:[%s163 + $0x78] sm:$0xff] %v3515
        %3548 = vst [vmem:[%s163 + $0x80] sm:$0xff] %v3516
        %3549 = vst [vmem:[%s163 + $0x88] sm:$0xff] %v3517
        %3550 = vst [vmem:[%s163 + $0x90] sm:$0xff] %v3518
        %3551 = vst [vmem:[%s163 + $0x98] sm:$0xff] %v3519
        %3552 = vst [vmem:[%s163 + $0xa0] sm:$0xff] %v3520
        %3553 = vst [vmem:[%s163 + $0xa8] sm:$0xff] %v3521
        %3554 = vst [vmem:[%s163 + $0xb0] sm:$0xff] %v3522
        %3555 = vst [vmem:[%s163 + $0xb8] sm:$0xff] %v3523
        %3556 = vst [vmem:[%s163 + $0xc0] sm:$0xff] %v3524
        %3557 = vst [vmem:[%s163 + $0xc8] sm:$0xff] %v3525
        %3558 = vst [vmem:[%s163 + $0xd0] sm:$0xff] %v3526
        %3559 = vst [vmem:[%s163 + $0xd8] sm:$0xff] %v3527
        %3560 = vst [vmem:[%s163 + $0xe0] sm:$0xff] %v3528
        %3561 = vst [vmem:[%s163 + $0xe8] sm:$0xff] %v3529
        %3562 = vst [vmem:[%s163 + $0xf0] sm:$0xff] %v3530
        %3563 = vst [vmem:[%s163 + $0xf8] sm:$0xff] %v3531
        %s3564 = sand.u32 %s93, 1
        %s3565 = scalar_lea.sflag [#allocation4], %s3564
        %s3566 = sand.u32 %s93, 1
        %s3567 = smul.addr %s3566, 256
        %s3568 = scalar_lea.vmem [#allocation3], %s3567
        // Predicated region
        $region33: #{tpu_custom_call.1} parent=31 // pred_check
          %p3569 = pneg %p103
        $region34: #{tpu_custom_call.1} parent=31 // pred_check_branch
          %3571 = sbr.rel (%p3569) target = $region36
        $region35: #{tpu_custom_call.1} parent=31 // pred_region
          %s3573 = ssub.s32 4096, 4096
          %3574 = vsyncadd %s3565, %s3573
          %s3575 = smul.addr %s17, 32
          %s3576 = smul.addr %s3575, 128
          %s3577 = scalar_lea.hbm %s3, %s3576
          %s3578 = sshll.u32 %s3568, 4
          %s3579 = int_to_ptr.vmem [resolvable:$true] %s3578
          %3584 = dma.vmem_to_hbm [thread:$0]  %s3579, 4096, %s3577, %s3565, 128, 128, 8
        $region36: #{tpu_custom_call.1} parent=31 // pred_fallthru
          _
      $region32: #{tpu_custom_call.1} parent=5 // pred_fallthru
        _
      %p3585 = scmp.le.s32.totalorder 2, %s12
      // Predicated region
      $region37: #{tpu_custom_call.1} parent=5 // pred_check
        %p3586 = pneg %p3585
      $region38: #{tpu_custom_call.1} parent=5 // pred_check_branch
        %3588 = sbr.rel (%p3586) target = $region40
      $region39: #{tpu_custom_call.1} parent=5 // pred_region
        %s3589 = ssub.s32 %s12, 2
        // Predicated region
        $region41: #{tpu_custom_call.1} parent=39 // pred_check
          %p3590 = pneg %p109
        $region42: #{tpu_custom_call.1} parent=39 // pred_check_branch
          %3592 = sbr.rel (%p3590) target = $region44
        $region43: #{tpu_custom_call.1} parent=39 // pred_region
          %s3593 = sand.u32 %s94, 1
          %s3594 = scalar_lea.sflag [#allocation4], %s3593
          %s3595 = sand.u32 %s94, 1
          %s3596 = smul.addr %s3595, 256
          %s3597 = scalar_lea.vmem [#allocation3], %s3596
          %3598 = dma.done %s3594, 4096
        $region44: #{tpu_custom_call.1} parent=39 // pred_fallthru
          _
      $region40: #{tpu_custom_call.1} parent=5 // pred_fallthru
        _
    $region6: #{tpu_custom_call.1} parent=1 // loop_footer
      %s16 = sadd.s32 1, %s12
    $region7: #{tpu_custom_call.1} parent=1 // loop_footer_branch
      %11 = sbr.rel target = $region3
    $region8: #{tpu_custom_call.1} parent=1 // loop_exit
      _
    %3599 = vsyncpa [#allocation4], 1
    %s3600 = scalar_lea.sflag [#allocation4], 1
    %3601 = vsyncpa %s3600, 1

</llo_original>
